<compile_context>
chip_gen: v5e
topology: v5e:2x2
jax: 0.10.0
libtpu: 0.0.40
codegen_flags: <defaults>
</compile_context>

<pallas_src>
import numpy as np
import jax
import jax.numpy as jnp
from jax import lax
from jax.experimental import pallas as pl
from jax.experimental.pallas import tpu as pltpu

_EPS = 1e-5
_TAPS = tuple((dy, dx) for dy in (-1, 0, 1) for dx in (-1, 0, 1))


def _interp_matrix(in_size, up_size, pad_before, out_size):
    """(out_size, in_size): bilinear align_corners=True upsample in_size->up_size,
    embedded at row offset pad_before; rows outside the window are zero (== F.pad)."""
    A = np.zeros((out_size, in_size), dtype=np.float32)
    for i in range(up_size):
        src = 0.0 if up_size == 1 else i * (in_size - 1) / (up_size - 1)
        i0 = int(np.floor(src))
        i1 = min(i0 + 1, in_size - 1)
        f = src - i0
        A[pad_before + i, i0] += 1.0 - f
        A[pad_before + i, i1] += f
    return A


def _tap_masks(H, W):
    """(9, H*W) float32 0/1 masks: row t is 1 where the (dy,dx)=_TAPS[t] neighbour of the
    pixel is inside the image (zero-padding halo of the 3x3 'same' conv)."""
    ys, xs = np.mgrid[0:H, 0:W]
    rows = []
    for dy, dx in _TAPS:
        ok = (ys + dy >= 0) & (ys + dy < H) & (xs + dx >= 0) & (xs + dx < W)
        rows.append(ok.astype(np.float32).reshape(-1))
    return np.stack(rows, axis=0)


def _samples_per_step(N):
    """Pack several samples per grid step to amortize per-step overhead, but keep >= 2
    grid steps so the 'parallel' batch axis can still shard across the 2 v7x cores."""
    if N < 4:
        return 1
    for nb in range(N // 2, 0, -1):
        if N % nb == 0:
            return nb
    return 1


def up_forward(x1, x2, w1, w2):
    """Forward of Up(bilinear=True, Mobile=False).

    x1: (N, C1, H1, W1)       low-res features (upsampled 2x, align_corners=True)
    x2: (N, C2, H2, W2)       skip connection
    w1: (C_mid, C1+C2, 3, 3)  first DoubleConv conv weight (bias=False)
    w2: (C_out, C_mid, 3, 3)  second DoubleConv conv weight (bias=False)
    returns (N, C_out, H2, W2)
    """
    N, C1, H1, W1 = x1.shape
    N2, C2, H2, W2 = x2.shape
    C_mid, C_in, kh, kw = w1.shape
    C_out = w2.shape[0]
    assert N2 == N and kh == 3 and kw == 3
    assert C_in == C1 + C2 and w2.shape[1] == C_mid
    diffY, diffX = H2 - 2 * H1, W2 - 2 * W1
    assert diffY >= 0 and diffX >= 0
    P1, P2 = H1 * W1, H2 * W2

    # Upsample + pad folded into ONE flattened-space matrix (trace-time numpy):
    #   up_flat = x1_flat @ Mt,  Mt[p1, p2] = Ah[y2, y1] * Aw[x2, x1].
    Ah = _interp_matrix(H1, 2 * H1, diffY // 2, H2)          # (H2, H1)
    Aw = _interp_matrix(W1, 2 * W1, diffX // 2, W2)          # (W2, W1)
    mt = jnp.asarray(np.kron(Ah, Aw).T)                      # (P1, P2)
    msk = jnp.asarray(_tap_masks(H2, W2))                    # (9, P2)

    # 3x3 weights flattened to 1-D f32 -> SMEM, read as scalars inside the kernel.
    w1f = w1.astype(jnp.float32).reshape(-1)
    w2f = w2.astype(jnp.float32).reshape(-1)

    # Lane-dense layout: flatten spatial dims (free row-major reshapes, no transposes).
    x1f = x1.reshape(N, C1, P1)
    x2f = x2.reshape(N, C2, P2)

    nb = _samples_per_step(N)
    num_steps = N // nb
    inv_hw = 1.0 / float(P2)

    def kernel(x1_ref, x2_ref, mt_ref, msk_ref, w1_ref, w2_ref, o_ref):
        mtm = mt_ref[...]                                    # (P1, P2), fetched once

        def shift_mask(row, t, dy, dx):
            # out[p] = row[p + dy*W2 + dx], zeroed where the neighbour is out of range.
            off = dy * W2 + dx
            s = row
            if off != 0:
                s = pltpu.roll(s, shift=(-off) % P2, axis=1)
            if (dy, dx) != (0, 0):
                s = s * msk_ref[pl.ds(t, 1), :]              # 0/1 float mask row
            return s

        def conv3x3_inorm_relu(rows_in, w_ref, n_in, n_out):
            # 3x3 "same" conv (bias-free) + InstanceNorm2d(affine=False) + ReLU.
            # Unrolled scalar-weight VPU FMAs on (1, P2) lane-dense rows.
            accs = [jnp.zeros((1, P2), jnp.float32) for _ in range(n_out)]
            for t, (dy, dx) in enumerate(_TAPS):
                for ci in range(n_in):
                    s = shift_mask(rows_in[ci], t, dy, dx)
                    for co in range(n_out):
                        w = w_ref[((co * n_in + ci) * 3 + (dy + 1)) * 3 + (dx + 1)]
                        accs[co] = accs[co] + w * s
            outs = []
            for co in range(n_out):
                a = accs[co]
                m = jnp.sum(a, axis=1, keepdims=True) * inv_hw
                d = a - m
                var = jnp.sum(d * d, axis=1, keepdims=True) * inv_hw
                outs.append(jnp.maximum(d * lax.rsqrt(var + _EPS), 0.0))
            return outs

        for b in range(nb):
            # Bilinear 2x (align_corners=True) upsample + F.pad of x1 for sample b:
            # one small MXU matmul covering all C1 channels, result already flattened.
            up = jnp.dot(x1_ref[b].astype(jnp.float32), mtm,
                         preferred_element_type=jnp.float32)         # (C1, P2)
            up_rows = [up[ci:ci + 1, :] for ci in range(C1)]

            # torch.cat([x2, x1_up], dim=1)
            in_rows = [x2_ref[b, pl.ds(ci, 1), :].astype(jnp.float32)
                       for ci in range(C2)] + up_rows

            mid = conv3x3_inorm_relu(in_rows, w1_ref, C_in, C_mid)
            out = conv3x3_inorm_relu(mid, w2_ref, C_mid, C_out)
            for co in range(C_out):
                o_ref[b, pl.ds(co, 1), :] = out[co].astype(o_ref.dtype)

    flops = int(N * (2 * C1 * P1 * P2
                     + 2 * C_in * 9 * C_mid * P2
                     + 2 * C_mid * 9 * C_out * P2
                     + 8 * (C_mid + C_out) * P2))
    bytes_accessed = int(4 * (x1.size + x2.size + w1.size + w2.size
                              + mt.size + msk.size + N * C_out * P2))
    cost = pl.CostEstimate(flops=flops,
                           transcendentals=int(N * (C_mid + C_out)),
                           bytes_accessed=bytes_accessed)

    grid_spec = pltpu.PrefetchScalarGridSpec(
        num_scalar_prefetch=0,
        grid=(num_steps,),
        in_specs=[
            pl.BlockSpec((nb, C1, P1), lambda n: (n, 0, 0)),
            pl.BlockSpec((nb, C2, P2), lambda n: (n, 0, 0)),
            pl.BlockSpec((P1, P2), lambda n: (0, 0)),   # constant block -> fetched once
            pl.BlockSpec((9, P2), lambda n: (0, 0)),    # constant block -> fetched once
            pl.BlockSpec(memory_space=pltpu.MemorySpace.SMEM),
            pl.BlockSpec(memory_space=pltpu.MemorySpace.SMEM),
        ],
        out_specs=pl.BlockSpec((nb, C_out, P2), lambda n: (n, 0, 0)),
    )

    # TODO(synk): the bilinear=False branch (ConvTranspose2d upsampling) is not implemented.
    out_flat = pl.pallas_call(
        kernel,
        out_shape=jax.ShapeDtypeStruct((N, C_out, P2), x1.dtype),
        grid_spec=grid_spec,
        compiler_params=pltpu.CompilerParams(dimension_semantics=("parallel",)),
        cost_estimate=cost,
    )(x1f, x2f, mt, msk, w1f, w2f)
    return out_flat.reshape(N, C_out, H2, W2)


def up_reference(x1, x2, w1, w2, eps=_EPS):
    """Pure-JAX reference for Up(bilinear=True): upsample(align_corners) -> pad ->
    concat -> (conv3x3 -> InstanceNorm -> ReLU) x2."""
    N, C1, H1, W1 = x1.shape
    H2, W2 = x2.shape[2], x2.shape[3]
    Ho, Wo = 2 * H1, 2 * W1
    ys = jnp.arange(Ho) * ((H1 - 1) / (Ho - 1))
    yl = jnp.floor(ys).astype(jnp.int32)
    yh = jnp.minimum(yl + 1, H1 - 1)
    fy = (ys - yl).astype(jnp.float32)
    xs = jnp.arange(Wo) * ((W1 - 1) / (Wo - 1))
    xl = jnp.floor(xs).astype(jnp.int32)
    xh = jnp.minimum(xl + 1, W1 - 1)
    fx = (xs - xl).astype(jnp.float32)
    rows = (x1[:, :, yl, :] * (1 - fy)[None, None, :, None]
            + x1[:, :, yh, :] * fy[None, None, :, None])
    up = (rows[:, :, :, xl] * (1 - fx)[None, None, None, :]
          + rows[:, :, :, xh] * fx[None, None, None, :])
    dY, dX = H2 - Ho, W2 - Wo
    up = jnp.pad(up, ((0, 0), (0, 0), (dY // 2, dY - dY // 2), (dX // 2, dX - dX // 2)))
    x = jnp.concatenate([x2, up], axis=1)

    def conv(z, w):
        return lax.conv_general_dilated(
            z, w, window_strides=(1, 1), padding=((1, 1), (1, 1)),
            dimension_numbers=("NCHW", "OIHW", "NCHW"),
            precision=lax.Precision.HIGHEST)

    def inorm_relu(z):
        m = jnp.mean(z, axis=(2, 3), keepdims=True)
        v = jnp.mean((z - m) ** 2, axis=(2, 3), keepdims=True)
        return jnp.maximum((z - m) * lax.rsqrt(v + eps), 0.0)

    return inorm_relu(conv(inorm_relu(conv(x, w1)), w2))


if __name__ == "__main__":
    key = jax.random.PRNGKey(0)
    k1, k2, k3, k4 = jax.random.split(key, 4)

    N = 2
    C1, C2 = 2, 2            # concat -> in_channels = 4
    H1 = W1 = 8
    H2 = W2 = 16             # x2 spatial = 2x x1 spatial (diff = 0)
    C_in = C1 + C2
    C_mid = C_in             # Up(bilinear=True): DoubleConv mid_channels = in_channels
    C_out = 4

    x1 = jax.random.normal(k1, (N, C1, H1, W1), dtype=jnp.float32)
    x2 = jax.random.normal(k2, (N, C2, H2, W2), dtype=jnp.float32)
    w1 = jax.random.normal(k3, (C_mid, C_in, 3, 3), dtype=jnp.float32) * 0.2
    w2 = jax.random.normal(k4, (C_out, C_mid, 3, 3), dtype=jnp.float32) * 0.2

    out = jax.block_until_ready(up_forward(x1, x2, w1, w2))
    ref = jax.block_until_ready(up_reference(x1, x2, w1, w2))

    assert out.shape == (N, C_out, H2, W2), out.shape
    max_err = float(jnp.max(jnp.abs(out - ref)))
    assert max_err < 2e-3, f"mismatch vs reference: max_err={max_err}"
    print("KERNEL_OK")
</pallas_src>

<mosaic_0001>
module attributes {stable_mosaic.version = 11 : i64} {
  func.func @kernel(%arg0: i32, %arg1: memref<1x2x64xf32, #tpu.memory_space<vmem>>, %arg2: memref<1x2x256xf32, #tpu.memory_space<vmem>>, %arg3: memref<64x256xf32, #tpu.memory_space<vmem>>, %arg4: memref<9x256xf32, #tpu.memory_space<vmem>>, %arg5: memref<144xf32, #tpu.memory_space<smem>>, %arg6: memref<144xf32, #tpu.memory_space<smem>>, %arg7: memref<1x4x256xf32, #tpu.memory_space<vmem>>) attributes {dimension_semantics = [#tpu.dimension_semantics<parallel>], iteration_bounds = array<i64: 2>, scalar_prefetch = 0 : i64, scratch_operands = 0 : i64, tpu.core_type = #tpu.core_type<tc>, window_params = [{transform_indices = @transform_0, window_bounds = array<i64: 1, 2, 64>}, {transform_indices = @transform_1, window_bounds = array<i64: 1, 2, 256>}, {pipeline_mode = #tpu.pipeline_mode<synchronous>, transform_indices = @transform_2, window_bounds = array<i64: 64, 256>}, {pipeline_mode = #tpu.pipeline_mode<synchronous>, transform_indices = @transform_3, window_bounds = array<i64: 9, 256>}, {transform_indices = @transform_4, window_bounds = array<i64: 144>}, {transform_indices = @transform_5, window_bounds = array<i64: 144>}, {transform_indices = @transform_6, window_bounds = array<i64: 1, 4, 256>}]} {
    %c0 = arith.constant 0 : index
    %c0_0 = arith.constant 0 : index
    %0 = vector.load %arg3[%c0, %c0_0] : memref<64x256xf32, #tpu.memory_space<vmem>>, vector<64x256xf32>
    %c0_1 = arith.constant 0 : index
    %c0_2 = arith.constant 0 : index
    %c0_3 = arith.constant 0 : index
    %1 = vector.load %arg1[%c0_1, %c0_2, %c0_3] : memref<1x2x64xf32, #tpu.memory_space<vmem>>, vector<1x2x64xf32>
    %2 = vector.shape_cast %1 : vector<1x2x64xf32> to vector<2x64xf32>
    %cst = arith.constant dense<0.000000e+00> : vector<2x256xf32>
    %3 = tpu.matmul %2, %0, %cst {dimension_numbers = #tpu.dot_dimension_numbers<[1], [0], [0], [1], [0, 0, 1, 1], [], []>} : vector<2x64xf32>, vector<64x256xf32>, vector<2x256xf32> -> vector<2x256xf32>
    %4 = vector.extract_strided_slice %3 {offsets = [0, 0], sizes = [1, 256], strides = [1, 1]} : vector<2x256xf32> to vector<1x256xf32>
    %5 = vector.extract_strided_slice %3 {offsets = [1, 0], sizes = [1, 256], strides = [1, 1]} : vector<2x256xf32> to vector<1x256xf32>
    %c0_4 = arith.constant 0 : index
    %c0_5 = arith.constant 0 : index
    %c0_6 = arith.constant 0 : index
    %6 = vector.load %arg2[%c0_4, %c0_5, %c0_6] : memref<1x2x256xf32, #tpu.memory_space<vmem>>, vector<1x1x256xf32>
    %7 = vector.shape_cast %6 : vector<1x1x256xf32> to vector<1x256xf32>
    %c0_7 = arith.constant 0 : index
    %c1 = arith.constant 1 : index
    %c0_8 = arith.constant 0 : index
    %8 = vector.load %arg2[%c0_7, %c1, %c0_8] : memref<1x2x256xf32, #tpu.memory_space<vmem>>, vector<1x1x256xf32>
    %9 = vector.shape_cast %8 : vector<1x1x256xf32> to vector<1x256xf32>
    %cst_9 = arith.constant 0.000000e+00 : f32
    %10 = vector.broadcast %cst_9 : f32 to vector<1x256xf32>
    %cst_10 = arith.constant 0.000000e+00 : f32
    %11 = vector.broadcast %cst_10 : f32 to vector<1x256xf32>
    %cst_11 = arith.constant 0.000000e+00 : f32
    %12 = vector.broadcast %cst_11 : f32 to vector<1x256xf32>
    %cst_12 = arith.constant 0.000000e+00 : f32
    %13 = vector.broadcast %cst_12 : f32 to vector<1x256xf32>
    %c17_i32 = arith.constant 17 : i32
    %14 = tpu.dynamic_rotate %7 by %c17_i32 dim 1 : vector<1x256xf32>, i32 -> vector<1x256xf32>
    %c0_13 = arith.constant 0 : index
    %c0_14 = arith.constant 0 : index
    %15 = vector.load %arg4[%c0_13, %c0_14] : memref<9x256xf32, #tpu.memory_space<vmem>>, vector<1x256xf32>
    %16 = arith.mulf %14, %15 : vector<1x256xf32>
    %c0_15 = arith.constant 0 : index
    %17 = memref.load %arg5[%c0_15] : memref<144xf32, #tpu.memory_space<smem>>
    %18 = vector.broadcast %17 : f32 to vector<1x256xf32>
    %19 = arith.mulf %18, %16 : vector<1x256xf32>
    %20 = arith.addf %10, %19 : vector<1x256xf32>
    %c36 = arith.constant 36 : index
    %21 = memref.load %arg5[%c36] : memref<144xf32, #tpu.memory_space<smem>>
    %22 = vector.broadcast %21 : f32 to vector<1x256xf32>
    %23 = arith.mulf %22, %16 : vector<1x256xf32>
    %24 = arith.addf %11, %23 : vector<1x256xf32>
    %c72 = arith.constant 72 : index
    %25 = memref.load %arg5[%c72] : memref<144xf32, #tpu.memory_space<smem>>
    %26 = vector.broadcast %25 : f32 to vector<1x256xf32>
    %27 = arith.mulf %26, %16 : vector<1x256xf32>
    %28 = arith.addf %12, %27 : vector<1x256xf32>
    %c108 = arith.constant 108 : index
    %29 = memref.load %arg5[%c108] : memref<144xf32, #tpu.memory_space<smem>>
    %30 = vector.broadcast %29 : f32 to vector<1x256xf32>
    %31 = arith.mulf %30, %16 : vector<1x256xf32>
    %32 = arith.addf %13, %31 : vector<1x256xf32>
    %c17_i32_16 = arith.constant 17 : i32
    %33 = tpu.dynamic_rotate %9 by %c17_i32_16 dim 1 : vector<1x256xf32>, i32 -> vector<1x256xf32>
    %c0_17 = arith.constant 0 : index
    %c0_18 = arith.constant 0 : index
    %34 = vector.load %arg4[%c0_17, %c0_18] : memref<9x256xf32, #tpu.memory_space<vmem>>, vector<1x256xf32>
    %35 = arith.mulf %33, %34 : vector<1x256xf32>
    %c9 = arith.constant 9 : index
    %36 = memref.load %arg5[%c9] : memref<144xf32, #tpu.memory_space<smem>>
    %37 = vector.broadcast %36 : f32 to vector<1x256xf32>
    %38 = arith.mulf %37, %35 : vector<1x256xf32>
    %39 = arith.addf %20, %38 : vector<1x256xf32>
    %c45 = arith.constant 45 : index
    %40 = memref.load %arg5[%c45] : memref<144xf32, #tpu.memory_space<smem>>
    %41 = vector.broadcast %40 : f32 to vector<1x256xf32>
    %42 = arith.mulf %41, %35 : vector<1x256xf32>
    %43 = arith.addf %24, %42 : vector<1x256xf32>
    %c81 = arith.constant 81 : index
    %44 = memref.load %arg5[%c81] : memref<144xf32, #tpu.memory_space<smem>>
    %45 = vector.broadcast %44 : f32 to vector<1x256xf32>
    %46 = arith.mulf %45, %35 : vector<1x256xf32>
    %47 = arith.addf %28, %46 : vector<1x256xf32>
    %c117 = arith.constant 117 : index
    %48 = memref.load %arg5[%c117] : memref<144xf32, #tpu.memory_space<smem>>
    %49 = vector.broadcast %48 : f32 to vector<1x256xf32>
    %50 = arith.mulf %49, %35 : vector<1x256xf32>
    %51 = arith.addf %32, %50 : vector<1x256xf32>
    %c17_i32_19 = arith.constant 17 : i32
    %52 = tpu.dynamic_rotate %4 by %c17_i32_19 dim 1 : vector<1x256xf32>, i32 -> vector<1x256xf32>
    %c0_20 = arith.constant 0 : index
    %c0_21 = arith.constant 0 : index
    %53 = vector.load %arg4[%c0_20, %c0_21] : memref<9x256xf32, #tpu.memory_space<vmem>>, vector<1x256xf32>
    %54 = arith.mulf %52, %53 : vector<1x256xf32>
    %c18 = arith.constant 18 : index
    %55 = memref.load %arg5[%c18] : memref<144xf32, #tpu.memory_space<smem>>
    %56 = vector.broadcast %55 : f32 to vector<1x256xf32>
    %57 = arith.mulf %56, %54 : vector<1x256xf32>
    %58 = arith.addf %39, %57 : vector<1x256xf32>
    %c54 = arith.constant 54 : index
    %59 = memref.load %arg5[%c54] : memref<144xf32, #tpu.memory_space<smem>>
    %60 = vector.broadcast %59 : f32 to vector<1x256xf32>
    %61 = arith.mulf %60, %54 : vector<1x256xf32>
    %62 = arith.addf %43, %61 : vector<1x256xf32>
    %c90 = arith.constant 90 : index
    %63 = memref.load %arg5[%c90] : memref<144xf32, #tpu.memory_space<smem>>
    %64 = vector.broadcast %63 : f32 to vector<1x256xf32>
    %65 = arith.mulf %64, %54 : vector<1x256xf32>
    %66 = arith.addf %47, %65 : vector<1x256xf32>
    %c126 = arith.constant 126 : index
    %67 = memref.load %arg5[%c126] : memref<144xf32, #tpu.memory_space<smem>>
    %68 = vector.broadcast %67 : f32 to vector<1x256xf32>
    %69 = arith.mulf %68, %54 : vector<1x256xf32>
    %70 = arith.addf %51, %69 : vector<1x256xf32>
    %c17_i32_22 = arith.constant 17 : i32
    %71 = tpu.dynamic_rotate %5 by %c17_i32_22 dim 1 : vector<1x256xf32>, i32 -> vector<1x256xf32>
    %c0_23 = arith.constant 0 : index
    %c0_24 = arith.constant 0 : index
    %72 = vector.load %arg4[%c0_23, %c0_24] : memref<9x256xf32, #tpu.memory_space<vmem>>, vector<1x256xf32>
    %73 = arith.mulf %71, %72 : vector<1x256xf32>
    %c27 = arith.constant 27 : index
    %74 = memref.load %arg5[%c27] : memref<144xf32, #tpu.memory_space<smem>>
    %75 = vector.broadcast %74 : f32 to vector<1x256xf32>
    %76 = arith.mulf %75, %73 : vector<1x256xf32>
    %77 = arith.addf %58, %76 : vector<1x256xf32>
    %c63 = arith.constant 63 : index
    %78 = memref.load %arg5[%c63] : memref<144xf32, #tpu.memory_space<smem>>
    %79 = vector.broadcast %78 : f32 to vector<1x256xf32>
    %80 = arith.mulf %79, %73 : vector<1x256xf32>
    %81 = arith.addf %62, %80 : vector<1x256xf32>
    %c99 = arith.constant 99 : index
    %82 = memref.load %arg5[%c99] : memref<144xf32, #tpu.memory_space<smem>>
    %83 = vector.broadcast %82 : f32 to vector<1x256xf32>
    %84 = arith.mulf %83, %73 : vector<1x256xf32>
    %85 = arith.addf %66, %84 : vector<1x256xf32>
    %c135 = arith.constant 135 : index
    %86 = memref.load %arg5[%c135] : memref<144xf32, #tpu.memory_space<smem>>
    %87 = vector.broadcast %86 : f32 to vector<1x256xf32>
    %88 = arith.mulf %87, %73 : vector<1x256xf32>
    %89 = arith.addf %70, %88 : vector<1x256xf32>
    %c16_i32 = arith.constant 16 : i32
    %90 = tpu.dynamic_rotate %7 by %c16_i32 dim 1 : vector<1x256xf32>, i32 -> vector<1x256xf32>
    %c1_25 = arith.constant 1 : index
    %c0_26 = arith.constant 0 : index
    %91 = vector.load %arg4[%c1_25, %c0_26] : memref<9x256xf32, #tpu.memory_space<vmem>>, vector<1x256xf32>
    %92 = arith.mulf %90, %91 : vector<1x256xf32>
    %c1_27 = arith.constant 1 : index
    %93 = memref.load %arg5[%c1_27] : memref<144xf32, #tpu.memory_space<smem>>
    %94 = vector.broadcast %93 : f32 to vector<1x256xf32>
    %95 = arith.mulf %94, %92 : vector<1x256xf32>
    %96 = arith.addf %77, %95 : vector<1x256xf32>
    %c37 = arith.constant 37 : index
    %97 = memref.load %arg5[%c37] : memref<144xf32, #tpu.memory_space<smem>>
    %98 = vector.broadcast %97 : f32 to vector<1x256xf32>
    %99 = arith.mulf %98, %92 : vector<1x256xf32>
    %100 = arith.addf %81, %99 : vector<1x256xf32>
    %c73 = arith.constant 73 : index
    %101 = memref.load %arg5[%c73] : memref<144xf32, #tpu.memory_space<smem>>
    %102 = vector.broadcast %101 : f32 to vector<1x256xf32>
    %103 = arith.mulf %102, %92 : vector<1x256xf32>
    %104 = arith.addf %85, %103 : vector<1x256xf32>
    %c109 = arith.constant 109 : index
    %105 = memref.load %arg5[%c109] : memref<144xf32, #tpu.memory_space<smem>>
    %106 = vector.broadcast %105 : f32 to vector<1x256xf32>
    %107 = arith.mulf %106, %92 : vector<1x256xf32>
    %108 = arith.addf %89, %107 : vector<1x256xf32>
    %c16_i32_28 = arith.constant 16 : i32
    %109 = tpu.dynamic_rotate %9 by %c16_i32_28 dim 1 : vector<1x256xf32>, i32 -> vector<1x256xf32>
    %c1_29 = arith.constant 1 : index
    %c0_30 = arith.constant 0 : index
    %110 = vector.load %arg4[%c1_29, %c0_30] : memref<9x256xf32, #tpu.memory_space<vmem>>, vector<1x256xf32>
    %111 = arith.mulf %109, %110 : vector<1x256xf32>
    %c10 = arith.constant 10 : index
    %112 = memref.load %arg5[%c10] : memref<144xf32, #tpu.memory_space<smem>>
    %113 = vector.broadcast %112 : f32 to vector<1x256xf32>
    %114 = arith.mulf %113, %111 : vector<1x256xf32>
    %115 = arith.addf %96, %114 : vector<1x256xf32>
    %c46 = arith.constant 46 : index
    %116 = memref.load %arg5[%c46] : memref<144xf32, #tpu.memory_space<smem>>
    %117 = vector.broadcast %116 : f32 to vector<1x256xf32>
    %118 = arith.mulf %117, %111 : vector<1x256xf32>
    %119 = arith.addf %100, %118 : vector<1x256xf32>
    %c82 = arith.constant 82 : index
    %120 = memref.load %arg5[%c82] : memref<144xf32, #tpu.memory_space<smem>>
    %121 = vector.broadcast %120 : f32 to vector<1x256xf32>
    %122 = arith.mulf %121, %111 : vector<1x256xf32>
    %123 = arith.addf %104, %122 : vector<1x256xf32>
    %c118 = arith.constant 118 : index
    %124 = memref.load %arg5[%c118] : memref<144xf32, #tpu.memory_space<smem>>
    %125 = vector.broadcast %124 : f32 to vector<1x256xf32>
    %126 = arith.mulf %125, %111 : vector<1x256xf32>
    %127 = arith.addf %108, %126 : vector<1x256xf32>
    %c16_i32_31 = arith.constant 16 : i32
    %128 = tpu.dynamic_rotate %4 by %c16_i32_31 dim 1 : vector<1x256xf32>, i32 -> vector<1x256xf32>
    %c1_32 = arith.constant 1 : index
    %c0_33 = arith.constant 0 : index
    %129 = vector.load %arg4[%c1_32, %c0_33] : memref<9x256xf32, #tpu.memory_space<vmem>>, vector<1x256xf32>
    %130 = arith.mulf %128, %129 : vector<1x256xf32>
    %c19 = arith.constant 19 : index
    %131 = memref.load %arg5[%c19] : memref<144xf32, #tpu.memory_space<smem>>
    %132 = vector.broadcast %131 : f32 to vector<1x256xf32>
    %133 = arith.mulf %132, %130 : vector<1x256xf32>
    %134 = arith.addf %115, %133 : vector<1x256xf32>
    %c55 = arith.constant 55 : index
    %135 = memref.load %arg5[%c55] : memref<144xf32, #tpu.memory_space<smem>>
    %136 = vector.broadcast %135 : f32 to vector<1x256xf32>
    %137 = arith.mulf %136, %130 : vector<1x256xf32>
    %138 = arith.addf %119, %137 : vector<1x256xf32>
    %c91 = arith.constant 91 : index
    %139 = memref.load %arg5[%c91] : memref<144xf32, #tpu.memory_space<smem>>
    %140 = vector.broadcast %139 : f32 to vector<1x256xf32>
    %141 = arith.mulf %140, %130 : vector<1x256xf32>
    %142 = arith.addf %123, %141 : vector<1x256xf32>
    %c127 = arith.constant 127 : index
    %143 = memref.load %arg5[%c127] : memref<144xf32, #tpu.memory_space<smem>>
    %144 = vector.broadcast %143 : f32 to vector<1x256xf32>
    %145 = arith.mulf %144, %130 : vector<1x256xf32>
    %146 = arith.addf %127, %145 : vector<1x256xf32>
    %c16_i32_34 = arith.constant 16 : i32
    %147 = tpu.dynamic_rotate %5 by %c16_i32_34 dim 1 : vector<1x256xf32>, i32 -> vector<1x256xf32>
    %c1_35 = arith.constant 1 : index
    %c0_36 = arith.constant 0 : index
    %148 = vector.load %arg4[%c1_35, %c0_36] : memref<9x256xf32, #tpu.memory_space<vmem>>, vector<1x256xf32>
    %149 = arith.mulf %147, %148 : vector<1x256xf32>
    %c28 = arith.constant 28 : index
    %150 = memref.load %arg5[%c28] : memref<144xf32, #tpu.memory_space<smem>>
    %151 = vector.broadcast %150 : f32 to vector<1x256xf32>
    %152 = arith.mulf %151, %149 : vector<1x256xf32>
    %153 = arith.addf %134, %152 : vector<1x256xf32>
    %c64 = arith.constant 64 : index
    %154 = memref.load %arg5[%c64] : memref<144xf32, #tpu.memory_space<smem>>
    %155 = vector.broadcast %154 : f32 to vector<1x256xf32>
    %156 = arith.mulf %155, %149 : vector<1x256xf32>
    %157 = arith.addf %138, %156 : vector<1x256xf32>
    %c100 = arith.constant 100 : index
    %158 = memref.load %arg5[%c100] : memref<144xf32, #tpu.memory_space<smem>>
    %159 = vector.broadcast %158 : f32 to vector<1x256xf32>
    %160 = arith.mulf %159, %149 : vector<1x256xf32>
    %161 = arith.addf %142, %160 : vector<1x256xf32>
    %c136 = arith.constant 136 : index
    %162 = memref.load %arg5[%c136] : memref<144xf32, #tpu.memory_space<smem>>
    %163 = vector.broadcast %162 : f32 to vector<1x256xf32>
    %164 = arith.mulf %163, %149 : vector<1x256xf32>
    %165 = arith.addf %146, %164 : vector<1x256xf32>
    %c15_i32 = arith.constant 15 : i32
    %166 = tpu.dynamic_rotate %7 by %c15_i32 dim 1 : vector<1x256xf32>, i32 -> vector<1x256xf32>
    %c2 = arith.constant 2 : index
    %c0_37 = arith.constant 0 : index
    %167 = vector.load %arg4[%c2, %c0_37] : memref<9x256xf32, #tpu.memory_space<vmem>>, vector<1x256xf32>
    %168 = arith.mulf %166, %167 : vector<1x256xf32>
    %c2_38 = arith.constant 2 : index
    %169 = memref.load %arg5[%c2_38] : memref<144xf32, #tpu.memory_space<smem>>
    %170 = vector.broadcast %169 : f32 to vector<1x256xf32>
    %171 = arith.mulf %170, %168 : vector<1x256xf32>
    %172 = arith.addf %153, %171 : vector<1x256xf32>
    %c38 = arith.constant 38 : index
    %173 = memref.load %arg5[%c38] : memref<144xf32, #tpu.memory_space<smem>>
    %174 = vector.broadcast %173 : f32 to vector<1x256xf32>
    %175 = arith.mulf %174, %168 : vector<1x256xf32>
    %176 = arith.addf %157, %175 : vector<1x256xf32>
    %c74 = arith.constant 74 : index
    %177 = memref.load %arg5[%c74] : memref<144xf32, #tpu.memory_space<smem>>
    %178 = vector.broadcast %177 : f32 to vector<1x256xf32>
    %179 = arith.mulf %178, %168 : vector<1x256xf32>
    %180 = arith.addf %161, %179 : vector<1x256xf32>
    %c110 = arith.constant 110 : index
    %181 = memref.load %arg5[%c110] : memref<144xf32, #tpu.memory_space<smem>>
    %182 = vector.broadcast %181 : f32 to vector<1x256xf32>
    %183 = arith.mulf %182, %168 : vector<1x256xf32>
    %184 = arith.addf %165, %183 : vector<1x256xf32>
    %c15_i32_39 = arith.constant 15 : i32
    %185 = tpu.dynamic_rotate %9 by %c15_i32_39 dim 1 : vector<1x256xf32>, i32 -> vector<1x256xf32>
    %c2_40 = arith.constant 2 : index
    %c0_41 = arith.constant 0 : index
    %186 = vector.load %arg4[%c2_40, %c0_41] : memref<9x256xf32, #tpu.memory_space<vmem>>, vector<1x256xf32>
    %187 = arith.mulf %185, %186 : vector<1x256xf32>
    %c11 = arith.constant 11 : index
    %188 = memref.load %arg5[%c11] : memref<144xf32, #tpu.memory_space<smem>>
    %189 = vector.broadcast %188 : f32 to vector<1x256xf32>
    %190 = arith.mulf %189, %187 : vector<1x256xf32>
    %191 = arith.addf %172, %190 : vector<1x256xf32>
    %c47 = arith.constant 47 : index
    %192 = memref.load %arg5[%c47] : memref<144xf32, #tpu.memory_space<smem>>
    %193 = vector.broadcast %192 : f32 to vector<1x256xf32>
    %194 = arith.mulf %193, %187 : vector<1x256xf32>
    %195 = arith.addf %176, %194 : vector<1x256xf32>
    %c83 = arith.constant 83 : index
    %196 = memref.load %arg5[%c83] : memref<144xf32, #tpu.memory_space<smem>>
    %197 = vector.broadcast %196 : f32 to vector<1x256xf32>
    %198 = arith.mulf %197, %187 : vector<1x256xf32>
    %199 = arith.addf %180, %198 : vector<1x256xf32>
    %c119 = arith.constant 119 : index
    %200 = memref.load %arg5[%c119] : memref<144xf32, #tpu.memory_space<smem>>
    %201 = vector.broadcast %200 : f32 to vector<1x256xf32>
    %202 = arith.mulf %201, %187 : vector<1x256xf32>
    %203 = arith.addf %184, %202 : vector<1x256xf32>
    %c15_i32_42 = arith.constant 15 : i32
    %204 = tpu.dynamic_rotate %4 by %c15_i32_42 dim 1 : vector<1x256xf32>, i32 -> vector<1x256xf32>
    %c2_43 = arith.constant 2 : index
    %c0_44 = arith.constant 0 : index
    %205 = vector.load %arg4[%c2_43, %c0_44] : memref<9x256xf32, #tpu.memory_space<vmem>>, vector<1x256xf32>
    %206 = arith.mulf %204, %205 : vector<1x256xf32>
    %c20 = arith.constant 20 : index
    %207 = memref.load %arg5[%c20] : memref<144xf32, #tpu.memory_space<smem>>
    %208 = vector.broadcast %207 : f32 to vector<1x256xf32>
    %209 = arith.mulf %208, %206 : vector<1x256xf32>
    %210 = arith.addf %191, %209 : vector<1x256xf32>
    %c56 = arith.constant 56 : index
    %211 = memref.load %arg5[%c56] : memref<144xf32, #tpu.memory_space<smem>>
    %212 = vector.broadcast %211 : f32 to vector<1x256xf32>
    %213 = arith.mulf %212, %206 : vector<1x256xf32>
    %214 = arith.addf %195, %213 : vector<1x256xf32>
    %c92 = arith.constant 92 : index
    %215 = memref.load %arg5[%c92] : memref<144xf32, #tpu.memory_space<smem>>
    %216 = vector.broadcast %215 : f32 to vector<1x256xf32>
    %217 = arith.mulf %216, %206 : vector<1x256xf32>
    %218 = arith.addf %199, %217 : vector<1x256xf32>
    %c128 = arith.constant 128 : index
    %219 = memref.load %arg5[%c128] : memref<144xf32, #tpu.memory_space<smem>>
    %220 = vector.broadcast %219 : f32 to vector<1x256xf32>
    %221 = arith.mulf %220, %206 : vector<1x256xf32>
    %222 = arith.addf %203, %221 : vector<1x256xf32>
    %c15_i32_45 = arith.constant 15 : i32
    %223 = tpu.dynamic_rotate %5 by %c15_i32_45 dim 1 : vector<1x256xf32>, i32 -> vector<1x256xf32>
    %c2_46 = arith.constant 2 : index
    %c0_47 = arith.constant 0 : index
    %224 = vector.load %arg4[%c2_46, %c0_47] : memref<9x256xf32, #tpu.memory_space<vmem>>, vector<1x256xf32>
    %225 = arith.mulf %223, %224 : vector<1x256xf32>
    %c29 = arith.constant 29 : index
    %226 = memref.load %arg5[%c29] : memref<144xf32, #tpu.memory_space<smem>>
    %227 = vector.broadcast %226 : f32 to vector<1x256xf32>
    %228 = arith.mulf %227, %225 : vector<1x256xf32>
    %229 = arith.addf %210, %228 : vector<1x256xf32>
    %c65 = arith.constant 65 : index
    %230 = memref.load %arg5[%c65] : memref<144xf32, #tpu.memory_space<smem>>
    %231 = vector.broadcast %230 : f32 to vector<1x256xf32>
    %232 = arith.mulf %231, %225 : vector<1x256xf32>
    %233 = arith.addf %214, %232 : vector<1x256xf32>
    %c101 = arith.constant 101 : index
    %234 = memref.load %arg5[%c101] : memref<144xf32, #tpu.memory_space<smem>>
    %235 = vector.broadcast %234 : f32 to vector<1x256xf32>
    %236 = arith.mulf %235, %225 : vector<1x256xf32>
    %237 = arith.addf %218, %236 : vector<1x256xf32>
    %c137 = arith.constant 137 : index
    %238 = memref.load %arg5[%c137] : memref<144xf32, #tpu.memory_space<smem>>
    %239 = vector.broadcast %238 : f32 to vector<1x256xf32>
    %240 = arith.mulf %239, %225 : vector<1x256xf32>
    %241 = arith.addf %222, %240 : vector<1x256xf32>
    %c1_i32 = arith.constant 1 : i32
    %242 = tpu.dynamic_rotate %7 by %c1_i32 dim 1 : vector<1x256xf32>, i32 -> vector<1x256xf32>
    %c3 = arith.constant 3 : index
    %c0_48 = arith.constant 0 : index
    %243 = vector.load %arg4[%c3, %c0_48] : memref<9x256xf32, #tpu.memory_space<vmem>>, vector<1x256xf32>
    %244 = arith.mulf %242, %243 : vector<1x256xf32>
    %c3_49 = arith.constant 3 : index
    %245 = memref.load %arg5[%c3_49] : memref<144xf32, #tpu.memory_space<smem>>
    %246 = vector.broadcast %245 : f32 to vector<1x256xf32>
    %247 = arith.mulf %246, %244 : vector<1x256xf32>
    %248 = arith.addf %229, %247 : vector<1x256xf32>
    %c39 = arith.constant 39 : index
    %249 = memref.load %arg5[%c39] : memref<144xf32, #tpu.memory_space<smem>>
    %250 = vector.broadcast %249 : f32 to vector<1x256xf32>
    %251 = arith.mulf %250, %244 : vector<1x256xf32>
    %252 = arith.addf %233, %251 : vector<1x256xf32>
    %c75 = arith.constant 75 : index
    %253 = memref.load %arg5[%c75] : memref<144xf32, #tpu.memory_space<smem>>
    %254 = vector.broadcast %253 : f32 to vector<1x256xf32>
    %255 = arith.mulf %254, %244 : vector<1x256xf32>
    %256 = arith.addf %237, %255 : vector<1x256xf32>
    %c111 = arith.constant 111 : index
    %257 = memref.load %arg5[%c111] : memref<144xf32, #tpu.memory_space<smem>>
    %258 = vector.broadcast %257 : f32 to vector<1x256xf32>
    %259 = arith.mulf %258, %244 : vector<1x256xf32>
    %260 = arith.addf %241, %259 : vector<1x256xf32>
    %c1_i32_50 = arith.constant 1 : i32
    %261 = tpu.dynamic_rotate %9 by %c1_i32_50 dim 1 : vector<1x256xf32>, i32 -> vector<1x256xf32>
    %c3_51 = arith.constant 3 : index
    %c0_52 = arith.constant 0 : index
    %262 = vector.load %arg4[%c3_51, %c0_52] : memref<9x256xf32, #tpu.memory_space<vmem>>, vector<1x256xf32>
    %263 = arith.mulf %261, %262 : vector<1x256xf32>
    %c12 = arith.constant 12 : index
    %264 = memref.load %arg5[%c12] : memref<144xf32, #tpu.memory_space<smem>>
    %265 = vector.broadcast %264 : f32 to vector<1x256xf32>
    %266 = arith.mulf %265, %263 : vector<1x256xf32>
    %267 = arith.addf %248, %266 : vector<1x256xf32>
    %c48 = arith.constant 48 : index
    %268 = memref.load %arg5[%c48] : memref<144xf32, #tpu.memory_space<smem>>
    %269 = vector.broadcast %268 : f32 to vector<1x256xf32>
    %270 = arith.mulf %269, %263 : vector<1x256xf32>
    %271 = arith.addf %252, %270 : vector<1x256xf32>
    %c84 = arith.constant 84 : index
    %272 = memref.load %arg5[%c84] : memref<144xf32, #tpu.memory_space<smem>>
    %273 = vector.broadcast %272 : f32 to vector<1x256xf32>
    %274 = arith.mulf %273, %263 : vector<1x256xf32>
    %275 = arith.addf %256, %274 : vector<1x256xf32>
    %c120 = arith.constant 120 : index
    %276 = memref.load %arg5[%c120] : memref<144xf32, #tpu.memory_space<smem>>
    %277 = vector.broadcast %276 : f32 to vector<1x256xf32>
    %278 = arith.mulf %277, %263 : vector<1x256xf32>
    %279 = arith.addf %260, %278 : vector<1x256xf32>
    %c1_i32_53 = arith.constant 1 : i32
    %280 = tpu.dynamic_rotate %4 by %c1_i32_53 dim 1 : vector<1x256xf32>, i32 -> vector<1x256xf32>
    %c3_54 = arith.constant 3 : index
    %c0_55 = arith.constant 0 : index
    %281 = vector.load %arg4[%c3_54, %c0_55] : memref<9x256xf32, #tpu.memory_space<vmem>>, vector<1x256xf32>
    %282 = arith.mulf %280, %281 : vector<1x256xf32>
    %c21 = arith.constant 21 : index
    %283 = memref.load %arg5[%c21] : memref<144xf32, #tpu.memory_space<smem>>
    %284 = vector.broadcast %283 : f32 to vector<1x256xf32>
    %285 = arith.mulf %284, %282 : vector<1x256xf32>
    %286 = arith.addf %267, %285 : vector<1x256xf32>
    %c57 = arith.constant 57 : index
    %287 = memref.load %arg5[%c57] : memref<144xf32, #tpu.memory_space<smem>>
    %288 = vector.broadcast %287 : f32 to vector<1x256xf32>
    %289 = arith.mulf %288, %282 : vector<1x256xf32>
    %290 = arith.addf %271, %289 : vector<1x256xf32>
    %c93 = arith.constant 93 : index
    %291 = memref.load %arg5[%c93] : memref<144xf32, #tpu.memory_space<smem>>
    %292 = vector.broadcast %291 : f32 to vector<1x256xf32>
    %293 = arith.mulf %292, %282 : vector<1x256xf32>
    %294 = arith.addf %275, %293 : vector<1x256xf32>
    %c129 = arith.constant 129 : index
    %295 = memref.load %arg5[%c129] : memref<144xf32, #tpu.memory_space<smem>>
    %296 = vector.broadcast %295 : f32 to vector<1x256xf32>
    %297 = arith.mulf %296, %282 : vector<1x256xf32>
    %298 = arith.addf %279, %297 : vector<1x256xf32>
    %c1_i32_56 = arith.constant 1 : i32
    %299 = tpu.dynamic_rotate %5 by %c1_i32_56 dim 1 : vector<1x256xf32>, i32 -> vector<1x256xf32>
    %c3_57 = arith.constant 3 : index
    %c0_58 = arith.constant 0 : index
    %300 = vector.load %arg4[%c3_57, %c0_58] : memref<9x256xf32, #tpu.memory_space<vmem>>, vector<1x256xf32>
    %301 = arith.mulf %299, %300 : vector<1x256xf32>
    %c30 = arith.constant 30 : index
    %302 = memref.load %arg5[%c30] : memref<144xf32, #tpu.memory_space<smem>>
    %303 = vector.broadcast %302 : f32 to vector<1x256xf32>
    %304 = arith.mulf %303, %301 : vector<1x256xf32>
    %305 = arith.addf %286, %304 : vector<1x256xf32>
    %c66 = arith.constant 66 : index
    %306 = memref.load %arg5[%c66] : memref<144xf32, #tpu.memory_space<smem>>
    %307 = vector.broadcast %306 : f32 to vector<1x256xf32>
    %308 = arith.mulf %307, %301 : vector<1x256xf32>
    %309 = arith.addf %290, %308 : vector<1x256xf32>
    %c102 = arith.constant 102 : index
    %310 = memref.load %arg5[%c102] : memref<144xf32, #tpu.memory_space<smem>>
    %311 = vector.broadcast %310 : f32 to vector<1x256xf32>
    %312 = arith.mulf %311, %301 : vector<1x256xf32>
    %313 = arith.addf %294, %312 : vector<1x256xf32>
    %c138 = arith.constant 138 : index
    %314 = memref.load %arg5[%c138] : memref<144xf32, #tpu.memory_space<smem>>
    %315 = vector.broadcast %314 : f32 to vector<1x256xf32>
    %316 = arith.mulf %315, %301 : vector<1x256xf32>
    %317 = arith.addf %298, %316 : vector<1x256xf32>
    %c4 = arith.constant 4 : index
    %318 = memref.load %arg5[%c4] : memref<144xf32, #tpu.memory_space<smem>>
    %319 = vector.broadcast %318 : f32 to vector<1x256xf32>
    %320 = arith.mulf %319, %7 : vector<1x256xf32>
    %321 = arith.addf %305, %320 : vector<1x256xf32>
    %c40 = arith.constant 40 : index
    %322 = memref.load %arg5[%c40] : memref<144xf32, #tpu.memory_space<smem>>
    %323 = vector.broadcast %322 : f32 to vector<1x256xf32>
    %324 = arith.mulf %323, %7 : vector<1x256xf32>
    %325 = arith.addf %309, %324 : vector<1x256xf32>
    %c76 = arith.constant 76 : index
    %326 = memref.load %arg5[%c76] : memref<144xf32, #tpu.memory_space<smem>>
    %327 = vector.broadcast %326 : f32 to vector<1x256xf32>
    %328 = arith.mulf %327, %7 : vector<1x256xf32>
    %329 = arith.addf %313, %328 : vector<1x256xf32>
    %c112 = arith.constant 112 : index
    %330 = memref.load %arg5[%c112] : memref<144xf32, #tpu.memory_space<smem>>
    %331 = vector.broadcast %330 : f32 to vector<1x256xf32>
    %332 = arith.mulf %331, %7 : vector<1x256xf32>
    %333 = arith.addf %317, %332 : vector<1x256xf32>
    %c13 = arith.constant 13 : index
    %334 = memref.load %arg5[%c13] : memref<144xf32, #tpu.memory_space<smem>>
    %335 = vector.broadcast %334 : f32 to vector<1x256xf32>
    %336 = arith.mulf %335, %9 : vector<1x256xf32>
    %337 = arith.addf %321, %336 : vector<1x256xf32>
    %c49 = arith.constant 49 : index
    %338 = memref.load %arg5[%c49] : memref<144xf32, #tpu.memory_space<smem>>
    %339 = vector.broadcast %338 : f32 to vector<1x256xf32>
    %340 = arith.mulf %339, %9 : vector<1x256xf32>
    %341 = arith.addf %325, %340 : vector<1x256xf32>
    %c85 = arith.constant 85 : index
    %342 = memref.load %arg5[%c85] : memref<144xf32, #tpu.memory_space<smem>>
    %343 = vector.broadcast %342 : f32 to vector<1x256xf32>
    %344 = arith.mulf %343, %9 : vector<1x256xf32>
    %345 = arith.addf %329, %344 : vector<1x256xf32>
    %c121 = arith.constant 121 : index
    %346 = memref.load %arg5[%c121] : memref<144xf32, #tpu.memory_space<smem>>
    %347 = vector.broadcast %346 : f32 to vector<1x256xf32>
    %348 = arith.mulf %347, %9 : vector<1x256xf32>
    %349 = arith.addf %333, %348 : vector<1x256xf32>
    %c22 = arith.constant 22 : index
    %350 = memref.load %arg5[%c22] : memref<144xf32, #tpu.memory_space<smem>>
    %351 = vector.broadcast %350 : f32 to vector<1x256xf32>
    %352 = arith.mulf %351, %4 : vector<1x256xf32>
    %353 = arith.addf %337, %352 : vector<1x256xf32>
    %c58 = arith.constant 58 : index
    %354 = memref.load %arg5[%c58] : memref<144xf32, #tpu.memory_space<smem>>
    %355 = vector.broadcast %354 : f32 to vector<1x256xf32>
    %356 = arith.mulf %355, %4 : vector<1x256xf32>
    %357 = arith.addf %341, %356 : vector<1x256xf32>
    %c94 = arith.constant 94 : index
    %358 = memref.load %arg5[%c94] : memref<144xf32, #tpu.memory_space<smem>>
    %359 = vector.broadcast %358 : f32 to vector<1x256xf32>
    %360 = arith.mulf %359, %4 : vector<1x256xf32>
    %361 = arith.addf %345, %360 : vector<1x256xf32>
    %c130 = arith.constant 130 : index
    %362 = memref.load %arg5[%c130] : memref<144xf32, #tpu.memory_space<smem>>
    %363 = vector.broadcast %362 : f32 to vector<1x256xf32>
    %364 = arith.mulf %363, %4 : vector<1x256xf32>
    %365 = arith.addf %349, %364 : vector<1x256xf32>
    %c31 = arith.constant 31 : index
    %366 = memref.load %arg5[%c31] : memref<144xf32, #tpu.memory_space<smem>>
    %367 = vector.broadcast %366 : f32 to vector<1x256xf32>
    %368 = arith.mulf %367, %5 : vector<1x256xf32>
    %369 = arith.addf %353, %368 : vector<1x256xf32>
    %c67 = arith.constant 67 : index
    %370 = memref.load %arg5[%c67] : memref<144xf32, #tpu.memory_space<smem>>
    %371 = vector.broadcast %370 : f32 to vector<1x256xf32>
    %372 = arith.mulf %371, %5 : vector<1x256xf32>
    %373 = arith.addf %357, %372 : vector<1x256xf32>
    %c103 = arith.constant 103 : index
    %374 = memref.load %arg5[%c103] : memref<144xf32, #tpu.memory_space<smem>>
    %375 = vector.broadcast %374 : f32 to vector<1x256xf32>
    %376 = arith.mulf %375, %5 : vector<1x256xf32>
    %377 = arith.addf %361, %376 : vector<1x256xf32>
    %c139 = arith.constant 139 : index
    %378 = memref.load %arg5[%c139] : memref<144xf32, #tpu.memory_space<smem>>
    %379 = vector.broadcast %378 : f32 to vector<1x256xf32>
    %380 = arith.mulf %379, %5 : vector<1x256xf32>
    %381 = arith.addf %365, %380 : vector<1x256xf32>
    %c255_i32 = arith.constant 255 : i32
    %382 = tpu.dynamic_rotate %7 by %c255_i32 dim 1 : vector<1x256xf32>, i32 -> vector<1x256xf32>
    %c5 = arith.constant 5 : index
    %c0_59 = arith.constant 0 : index
    %383 = vector.load %arg4[%c5, %c0_59] : memref<9x256xf32, #tpu.memory_space<vmem>>, vector<1x256xf32>
    %384 = arith.mulf %382, %383 : vector<1x256xf32>
    %c5_60 = arith.constant 5 : index
    %385 = memref.load %arg5[%c5_60] : memref<144xf32, #tpu.memory_space<smem>>
    %386 = vector.broadcast %385 : f32 to vector<1x256xf32>
    %387 = arith.mulf %386, %384 : vector<1x256xf32>
    %388 = arith.addf %369, %387 : vector<1x256xf32>
    %c41 = arith.constant 41 : index
    %389 = memref.load %arg5[%c41] : memref<144xf32, #tpu.memory_space<smem>>
    %390 = vector.broadcast %389 : f32 to vector<1x256xf32>
    %391 = arith.mulf %390, %384 : vector<1x256xf32>
    %392 = arith.addf %373, %391 : vector<1x256xf32>
    %c77 = arith.constant 77 : index
    %393 = memref.load %arg5[%c77] : memref<144xf32, #tpu.memory_space<smem>>
    %394 = vector.broadcast %393 : f32 to vector<1x256xf32>
    %395 = arith.mulf %394, %384 : vector<1x256xf32>
    %396 = arith.addf %377, %395 : vector<1x256xf32>
    %c113 = arith.constant 113 : index
    %397 = memref.load %arg5[%c113] : memref<144xf32, #tpu.memory_space<smem>>
    %398 = vector.broadcast %397 : f32 to vector<1x256xf32>
    %399 = arith.mulf %398, %384 : vector<1x256xf32>
    %400 = arith.addf %381, %399 : vector<1x256xf32>
    %c255_i32_61 = arith.constant 255 : i32
    %401 = tpu.dynamic_rotate %9 by %c255_i32_61 dim 1 : vector<1x256xf32>, i32 -> vector<1x256xf32>
    %c5_62 = arith.constant 5 : index
    %c0_63 = arith.constant 0 : index
    %402 = vector.load %arg4[%c5_62, %c0_63] : memref<9x256xf32, #tpu.memory_space<vmem>>, vector<1x256xf32>
    %403 = arith.mulf %401, %402 : vector<1x256xf32>
    %c14 = arith.constant 14 : index
    %404 = memref.load %arg5[%c14] : memref<144xf32, #tpu.memory_space<smem>>
    %405 = vector.broadcast %404 : f32 to vector<1x256xf32>
    %406 = arith.mulf %405, %403 : vector<1x256xf32>
    %407 = arith.addf %388, %406 : vector<1x256xf32>
    %c50 = arith.constant 50 : index
    %408 = memref.load %arg5[%c50] : memref<144xf32, #tpu.memory_space<smem>>
    %409 = vector.broadcast %408 : f32 to vector<1x256xf32>
    %410 = arith.mulf %409, %403 : vector<1x256xf32>
    %411 = arith.addf %392, %410 : vector<1x256xf32>
    %c86 = arith.constant 86 : index
    %412 = memref.load %arg5[%c86] : memref<144xf32, #tpu.memory_space<smem>>
    %413 = vector.broadcast %412 : f32 to vector<1x256xf32>
    %414 = arith.mulf %413, %403 : vector<1x256xf32>
    %415 = arith.addf %396, %414 : vector<1x256xf32>
    %c122 = arith.constant 122 : index
    %416 = memref.load %arg5[%c122] : memref<144xf32, #tpu.memory_space<smem>>
    %417 = vector.broadcast %416 : f32 to vector<1x256xf32>
    %418 = arith.mulf %417, %403 : vector<1x256xf32>
    %419 = arith.addf %400, %418 : vector<1x256xf32>
    %c255_i32_64 = arith.constant 255 : i32
    %420 = tpu.dynamic_rotate %4 by %c255_i32_64 dim 1 : vector<1x256xf32>, i32 -> vector<1x256xf32>
    %c5_65 = arith.constant 5 : index
    %c0_66 = arith.constant 0 : index
    %421 = vector.load %arg4[%c5_65, %c0_66] : memref<9x256xf32, #tpu.memory_space<vmem>>, vector<1x256xf32>
    %422 = arith.mulf %420, %421 : vector<1x256xf32>
    %c23 = arith.constant 23 : index
    %423 = memref.load %arg5[%c23] : memref<144xf32, #tpu.memory_space<smem>>
    %424 = vector.broadcast %423 : f32 to vector<1x256xf32>
    %425 = arith.mulf %424, %422 : vector<1x256xf32>
    %426 = arith.addf %407, %425 : vector<1x256xf32>
    %c59 = arith.constant 59 : index
    %427 = memref.load %arg5[%c59] : memref<144xf32, #tpu.memory_space<smem>>
    %428 = vector.broadcast %427 : f32 to vector<1x256xf32>
    %429 = arith.mulf %428, %422 : vector<1x256xf32>
    %430 = arith.addf %411, %429 : vector<1x256xf32>
    %c95 = arith.constant 95 : index
    %431 = memref.load %arg5[%c95] : memref<144xf32, #tpu.memory_space<smem>>
    %432 = vector.broadcast %431 : f32 to vector<1x256xf32>
    %433 = arith.mulf %432, %422 : vector<1x256xf32>
    %434 = arith.addf %415, %433 : vector<1x256xf32>
    %c131 = arith.constant 131 : index
    %435 = memref.load %arg5[%c131] : memref<144xf32, #tpu.memory_space<smem>>
    %436 = vector.broadcast %435 : f32 to vector<1x256xf32>
    %437 = arith.mulf %436, %422 : vector<1x256xf32>
    %438 = arith.addf %419, %437 : vector<1x256xf32>
    %c255_i32_67 = arith.constant 255 : i32
    %439 = tpu.dynamic_rotate %5 by %c255_i32_67 dim 1 : vector<1x256xf32>, i32 -> vector<1x256xf32>
    %c5_68 = arith.constant 5 : index
    %c0_69 = arith.constant 0 : index
    %440 = vector.load %arg4[%c5_68, %c0_69] : memref<9x256xf32, #tpu.memory_space<vmem>>, vector<1x256xf32>
    %441 = arith.mulf %439, %440 : vector<1x256xf32>
    %c32 = arith.constant 32 : index
    %442 = memref.load %arg5[%c32] : memref<144xf32, #tpu.memory_space<smem>>
    %443 = vector.broadcast %442 : f32 to vector<1x256xf32>
    %444 = arith.mulf %443, %441 : vector<1x256xf32>
    %445 = arith.addf %426, %444 : vector<1x256xf32>
    %c68 = arith.constant 68 : index
    %446 = memref.load %arg5[%c68] : memref<144xf32, #tpu.memory_space<smem>>
    %447 = vector.broadcast %446 : f32 to vector<1x256xf32>
    %448 = arith.mulf %447, %441 : vector<1x256xf32>
    %449 = arith.addf %430, %448 : vector<1x256xf32>
    %c104 = arith.constant 104 : index
    %450 = memref.load %arg5[%c104] : memref<144xf32, #tpu.memory_space<smem>>
    %451 = vector.broadcast %450 : f32 to vector<1x256xf32>
    %452 = arith.mulf %451, %441 : vector<1x256xf32>
    %453 = arith.addf %434, %452 : vector<1x256xf32>
    %c140 = arith.constant 140 : index
    %454 = memref.load %arg5[%c140] : memref<144xf32, #tpu.memory_space<smem>>
    %455 = vector.broadcast %454 : f32 to vector<1x256xf32>
    %456 = arith.mulf %455, %441 : vector<1x256xf32>
    %457 = arith.addf %438, %456 : vector<1x256xf32>
    %c241_i32 = arith.constant 241 : i32
    %458 = tpu.dynamic_rotate %7 by %c241_i32 dim 1 : vector<1x256xf32>, i32 -> vector<1x256xf32>
    %c6 = arith.constant 6 : index
    %c0_70 = arith.constant 0 : index
    %459 = vector.load %arg4[%c6, %c0_70] : memref<9x256xf32, #tpu.memory_space<vmem>>, vector<1x256xf32>
    %460 = arith.mulf %458, %459 : vector<1x256xf32>
    %c6_71 = arith.constant 6 : index
    %461 = memref.load %arg5[%c6_71] : memref<144xf32, #tpu.memory_space<smem>>
    %462 = vector.broadcast %461 : f32 to vector<1x256xf32>
    %463 = arith.mulf %462, %460 : vector<1x256xf32>
    %464 = arith.addf %445, %463 : vector<1x256xf32>
    %c42 = arith.constant 42 : index
    %465 = memref.load %arg5[%c42] : memref<144xf32, #tpu.memory_space<smem>>
    %466 = vector.broadcast %465 : f32 to vector<1x256xf32>
    %467 = arith.mulf %466, %460 : vector<1x256xf32>
    %468 = arith.addf %449, %467 : vector<1x256xf32>
    %c78 = arith.constant 78 : index
    %469 = memref.load %arg5[%c78] : memref<144xf32, #tpu.memory_space<smem>>
    %470 = vector.broadcast %469 : f32 to vector<1x256xf32>
    %471 = arith.mulf %470, %460 : vector<1x256xf32>
    %472 = arith.addf %453, %471 : vector<1x256xf32>
    %c114 = arith.constant 114 : index
    %473 = memref.load %arg5[%c114] : memref<144xf32, #tpu.memory_space<smem>>
    %474 = vector.broadcast %473 : f32 to vector<1x256xf32>
    %475 = arith.mulf %474, %460 : vector<1x256xf32>
    %476 = arith.addf %457, %475 : vector<1x256xf32>
    %c241_i32_72 = arith.constant 241 : i32
    %477 = tpu.dynamic_rotate %9 by %c241_i32_72 dim 1 : vector<1x256xf32>, i32 -> vector<1x256xf32>
    %c6_73 = arith.constant 6 : index
    %c0_74 = arith.constant 0 : index
    %478 = vector.load %arg4[%c6_73, %c0_74] : memref<9x256xf32, #tpu.memory_space<vmem>>, vector<1x256xf32>
    %479 = arith.mulf %477, %478 : vector<1x256xf32>
    %c15 = arith.constant 15 : index
    %480 = memref.load %arg5[%c15] : memref<144xf32, #tpu.memory_space<smem>>
    %481 = vector.broadcast %480 : f32 to vector<1x256xf32>
    %482 = arith.mulf %481, %479 : vector<1x256xf32>
    %483 = arith.addf %464, %482 : vector<1x256xf32>
    %c51 = arith.constant 51 : index
    %484 = memref.load %arg5[%c51] : memref<144xf32, #tpu.memory_space<smem>>
    %485 = vector.broadcast %484 : f32 to vector<1x256xf32>
    %486 = arith.mulf %485, %479 : vector<1x256xf32>
    %487 = arith.addf %468, %486 : vector<1x256xf32>
    %c87 = arith.constant 87 : index
    %488 = memref.load %arg5[%c87] : memref<144xf32, #tpu.memory_space<smem>>
    %489 = vector.broadcast %488 : f32 to vector<1x256xf32>
    %490 = arith.mulf %489, %479 : vector<1x256xf32>
    %491 = arith.addf %472, %490 : vector<1x256xf32>
    %c123 = arith.constant 123 : index
    %492 = memref.load %arg5[%c123] : memref<144xf32, #tpu.memory_space<smem>>
    %493 = vector.broadcast %492 : f32 to vector<1x256xf32>
    %494 = arith.mulf %493, %479 : vector<1x256xf32>
    %495 = arith.addf %476, %494 : vector<1x256xf32>
    %c241_i32_75 = arith.constant 241 : i32
    %496 = tpu.dynamic_rotate %4 by %c241_i32_75 dim 1 : vector<1x256xf32>, i32 -> vector<1x256xf32>
    %c6_76 = arith.constant 6 : index
    %c0_77 = arith.constant 0 : index
    %497 = vector.load %arg4[%c6_76, %c0_77] : memref<9x256xf32, #tpu.memory_space<vmem>>, vector<1x256xf32>
    %498 = arith.mulf %496, %497 : vector<1x256xf32>
    %c24 = arith.constant 24 : index
    %499 = memref.load %arg5[%c24] : memref<144xf32, #tpu.memory_space<smem>>
    %500 = vector.broadcast %499 : f32 to vector<1x256xf32>
    %501 = arith.mulf %500, %498 : vector<1x256xf32>
    %502 = arith.addf %483, %501 : vector<1x256xf32>
    %c60 = arith.constant 60 : index
    %503 = memref.load %arg5[%c60] : memref<144xf32, #tpu.memory_space<smem>>
    %504 = vector.broadcast %503 : f32 to vector<1x256xf32>
    %505 = arith.mulf %504, %498 : vector<1x256xf32>
    %506 = arith.addf %487, %505 : vector<1x256xf32>
    %c96 = arith.constant 96 : index
    %507 = memref.load %arg5[%c96] : memref<144xf32, #tpu.memory_space<smem>>
    %508 = vector.broadcast %507 : f32 to vector<1x256xf32>
    %509 = arith.mulf %508, %498 : vector<1x256xf32>
    %510 = arith.addf %491, %509 : vector<1x256xf32>
    %c132 = arith.constant 132 : index
    %511 = memref.load %arg5[%c132] : memref<144xf32, #tpu.memory_space<smem>>
    %512 = vector.broadcast %511 : f32 to vector<1x256xf32>
    %513 = arith.mulf %512, %498 : vector<1x256xf32>
    %514 = arith.addf %495, %513 : vector<1x256xf32>
    %c241_i32_78 = arith.constant 241 : i32
    %515 = tpu.dynamic_rotate %5 by %c241_i32_78 dim 1 : vector<1x256xf32>, i32 -> vector<1x256xf32>
    %c6_79 = arith.constant 6 : index
    %c0_80 = arith.constant 0 : index
    %516 = vector.load %arg4[%c6_79, %c0_80] : memref<9x256xf32, #tpu.memory_space<vmem>>, vector<1x256xf32>
    %517 = arith.mulf %515, %516 : vector<1x256xf32>
    %c33 = arith.constant 33 : index
    %518 = memref.load %arg5[%c33] : memref<144xf32, #tpu.memory_space<smem>>
    %519 = vector.broadcast %518 : f32 to vector<1x256xf32>
    %520 = arith.mulf %519, %517 : vector<1x256xf32>
    %521 = arith.addf %502, %520 : vector<1x256xf32>
    %c69 = arith.constant 69 : index
    %522 = memref.load %arg5[%c69] : memref<144xf32, #tpu.memory_space<smem>>
    %523 = vector.broadcast %522 : f32 to vector<1x256xf32>
    %524 = arith.mulf %523, %517 : vector<1x256xf32>
    %525 = arith.addf %506, %524 : vector<1x256xf32>
    %c105 = arith.constant 105 : index
    %526 = memref.load %arg5[%c105] : memref<144xf32, #tpu.memory_space<smem>>
    %527 = vector.broadcast %526 : f32 to vector<1x256xf32>
    %528 = arith.mulf %527, %517 : vector<1x256xf32>
    %529 = arith.addf %510, %528 : vector<1x256xf32>
    %c141 = arith.constant 141 : index
    %530 = memref.load %arg5[%c141] : memref<144xf32, #tpu.memory_space<smem>>
    %531 = vector.broadcast %530 : f32 to vector<1x256xf32>
    %532 = arith.mulf %531, %517 : vector<1x256xf32>
    %533 = arith.addf %514, %532 : vector<1x256xf32>
    %c240_i32 = arith.constant 240 : i32
    %534 = tpu.dynamic_rotate %7 by %c240_i32 dim 1 : vector<1x256xf32>, i32 -> vector<1x256xf32>
    %c7 = arith.constant 7 : index
    %c0_81 = arith.constant 0 : index
    %535 = vector.load %arg4[%c7, %c0_81] : memref<9x256xf32, #tpu.memory_space<vmem>>, vector<1x256xf32>
    %536 = arith.mulf %534, %535 : vector<1x256xf32>
    %c7_82 = arith.constant 7 : index
    %537 = memref.load %arg5[%c7_82] : memref<144xf32, #tpu.memory_space<smem>>
    %538 = vector.broadcast %537 : f32 to vector<1x256xf32>
    %539 = arith.mulf %538, %536 : vector<1x256xf32>
    %540 = arith.addf %521, %539 : vector<1x256xf32>
    %c43 = arith.constant 43 : index
    %541 = memref.load %arg5[%c43] : memref<144xf32, #tpu.memory_space<smem>>
    %542 = vector.broadcast %541 : f32 to vector<1x256xf32>
    %543 = arith.mulf %542, %536 : vector<1x256xf32>
    %544 = arith.addf %525, %543 : vector<1x256xf32>
    %c79 = arith.constant 79 : index
    %545 = memref.load %arg5[%c79] : memref<144xf32, #tpu.memory_space<smem>>
    %546 = vector.broadcast %545 : f32 to vector<1x256xf32>
    %547 = arith.mulf %546, %536 : vector<1x256xf32>
    %548 = arith.addf %529, %547 : vector<1x256xf32>
    %c115 = arith.constant 115 : index
    %549 = memref.load %arg5[%c115] : memref<144xf32, #tpu.memory_space<smem>>
    %550 = vector.broadcast %549 : f32 to vector<1x256xf32>
    %551 = arith.mulf %550, %536 : vector<1x256xf32>
    %552 = arith.addf %533, %551 : vector<1x256xf32>
    %c240_i32_83 = arith.constant 240 : i32
    %553 = tpu.dynamic_rotate %9 by %c240_i32_83 dim 1 : vector<1x256xf32>, i32 -> vector<1x256xf32>
    %c7_84 = arith.constant 7 : index
    %c0_85 = arith.constant 0 : index
    %554 = vector.load %arg4[%c7_84, %c0_85] : memref<9x256xf32, #tpu.memory_space<vmem>>, vector<1x256xf32>
    %555 = arith.mulf %553, %554 : vector<1x256xf32>
    %c16 = arith.constant 16 : index
    %556 = memref.load %arg5[%c16] : memref<144xf32, #tpu.memory_space<smem>>
    %557 = vector.broadcast %556 : f32 to vector<1x256xf32>
    %558 = arith.mulf %557, %555 : vector<1x256xf32>
    %559 = arith.addf %540, %558 : vector<1x256xf32>
    %c52 = arith.constant 52 : index
    %560 = memref.load %arg5[%c52] : memref<144xf32, #tpu.memory_space<smem>>
    %561 = vector.broadcast %560 : f32 to vector<1x256xf32>
    %562 = arith.mulf %561, %555 : vector<1x256xf32>
    %563 = arith.addf %544, %562 : vector<1x256xf32>
    %c88 = arith.constant 88 : index
    %564 = memref.load %arg5[%c88] : memref<144xf32, #tpu.memory_space<smem>>
    %565 = vector.broadcast %564 : f32 to vector<1x256xf32>
    %566 = arith.mulf %565, %555 : vector<1x256xf32>
    %567 = arith.addf %548, %566 : vector<1x256xf32>
    %c124 = arith.constant 124 : index
    %568 = memref.load %arg5[%c124] : memref<144xf32, #tpu.memory_space<smem>>
    %569 = vector.broadcast %568 : f32 to vector<1x256xf32>
    %570 = arith.mulf %569, %555 : vector<1x256xf32>
    %571 = arith.addf %552, %570 : vector<1x256xf32>
    %c240_i32_86 = arith.constant 240 : i32
    %572 = tpu.dynamic_rotate %4 by %c240_i32_86 dim 1 : vector<1x256xf32>, i32 -> vector<1x256xf32>
    %c7_87 = arith.constant 7 : index
    %c0_88 = arith.constant 0 : index
    %573 = vector.load %arg4[%c7_87, %c0_88] : memref<9x256xf32, #tpu.memory_space<vmem>>, vector<1x256xf32>
    %574 = arith.mulf %572, %573 : vector<1x256xf32>
    %c25 = arith.constant 25 : index
    %575 = memref.load %arg5[%c25] : memref<144xf32, #tpu.memory_space<smem>>
    %576 = vector.broadcast %575 : f32 to vector<1x256xf32>
    %577 = arith.mulf %576, %574 : vector<1x256xf32>
    %578 = arith.addf %559, %577 : vector<1x256xf32>
    %c61 = arith.constant 61 : index
    %579 = memref.load %arg5[%c61] : memref<144xf32, #tpu.memory_space<smem>>
    %580 = vector.broadcast %579 : f32 to vector<1x256xf32>
    %581 = arith.mulf %580, %574 : vector<1x256xf32>
    %582 = arith.addf %563, %581 : vector<1x256xf32>
    %c97 = arith.constant 97 : index
    %583 = memref.load %arg5[%c97] : memref<144xf32, #tpu.memory_space<smem>>
    %584 = vector.broadcast %583 : f32 to vector<1x256xf32>
    %585 = arith.mulf %584, %574 : vector<1x256xf32>
    %586 = arith.addf %567, %585 : vector<1x256xf32>
    %c133 = arith.constant 133 : index
    %587 = memref.load %arg5[%c133] : memref<144xf32, #tpu.memory_space<smem>>
    %588 = vector.broadcast %587 : f32 to vector<1x256xf32>
    %589 = arith.mulf %588, %574 : vector<1x256xf32>
    %590 = arith.addf %571, %589 : vector<1x256xf32>
    %c240_i32_89 = arith.constant 240 : i32
    %591 = tpu.dynamic_rotate %5 by %c240_i32_89 dim 1 : vector<1x256xf32>, i32 -> vector<1x256xf32>
    %c7_90 = arith.constant 7 : index
    %c0_91 = arith.constant 0 : index
    %592 = vector.load %arg4[%c7_90, %c0_91] : memref<9x256xf32, #tpu.memory_space<vmem>>, vector<1x256xf32>
    %593 = arith.mulf %591, %592 : vector<1x256xf32>
    %c34 = arith.constant 34 : index
    %594 = memref.load %arg5[%c34] : memref<144xf32, #tpu.memory_space<smem>>
    %595 = vector.broadcast %594 : f32 to vector<1x256xf32>
    %596 = arith.mulf %595, %593 : vector<1x256xf32>
    %597 = arith.addf %578, %596 : vector<1x256xf32>
    %c70 = arith.constant 70 : index
    %598 = memref.load %arg5[%c70] : memref<144xf32, #tpu.memory_space<smem>>
    %599 = vector.broadcast %598 : f32 to vector<1x256xf32>
    %600 = arith.mulf %599, %593 : vector<1x256xf32>
    %601 = arith.addf %582, %600 : vector<1x256xf32>
    %c106 = arith.constant 106 : index
    %602 = memref.load %arg5[%c106] : memref<144xf32, #tpu.memory_space<smem>>
    %603 = vector.broadcast %602 : f32 to vector<1x256xf32>
    %604 = arith.mulf %603, %593 : vector<1x256xf32>
    %605 = arith.addf %586, %604 : vector<1x256xf32>
    %c142 = arith.constant 142 : index
    %606 = memref.load %arg5[%c142] : memref<144xf32, #tpu.memory_space<smem>>
    %607 = vector.broadcast %606 : f32 to vector<1x256xf32>
    %608 = arith.mulf %607, %593 : vector<1x256xf32>
    %609 = arith.addf %590, %608 : vector<1x256xf32>
    %c239_i32 = arith.constant 239 : i32
    %610 = tpu.dynamic_rotate %7 by %c239_i32 dim 1 : vector<1x256xf32>, i32 -> vector<1x256xf32>
    %c8 = arith.constant 8 : index
    %c0_92 = arith.constant 0 : index
    %611 = vector.load %arg4[%c8, %c0_92] : memref<9x256xf32, #tpu.memory_space<vmem>>, vector<1x256xf32>
    %612 = arith.mulf %610, %611 : vector<1x256xf32>
    %c8_93 = arith.constant 8 : index
    %613 = memref.load %arg5[%c8_93] : memref<144xf32, #tpu.memory_space<smem>>
    %614 = vector.broadcast %613 : f32 to vector<1x256xf32>
    %615 = arith.mulf %614, %612 : vector<1x256xf32>
    %616 = arith.addf %597, %615 : vector<1x256xf32>
    %c44 = arith.constant 44 : index
    %617 = memref.load %arg5[%c44] : memref<144xf32, #tpu.memory_space<smem>>
    %618 = vector.broadcast %617 : f32 to vector<1x256xf32>
    %619 = arith.mulf %618, %612 : vector<1x256xf32>
    %620 = arith.addf %601, %619 : vector<1x256xf32>
    %c80 = arith.constant 80 : index
    %621 = memref.load %arg5[%c80] : memref<144xf32, #tpu.memory_space<smem>>
    %622 = vector.broadcast %621 : f32 to vector<1x256xf32>
    %623 = arith.mulf %622, %612 : vector<1x256xf32>
    %624 = arith.addf %605, %623 : vector<1x256xf32>
    %c116 = arith.constant 116 : index
    %625 = memref.load %arg5[%c116] : memref<144xf32, #tpu.memory_space<smem>>
    %626 = vector.broadcast %625 : f32 to vector<1x256xf32>
    %627 = arith.mulf %626, %612 : vector<1x256xf32>
    %628 = arith.addf %609, %627 : vector<1x256xf32>
    %c239_i32_94 = arith.constant 239 : i32
    %629 = tpu.dynamic_rotate %9 by %c239_i32_94 dim 1 : vector<1x256xf32>, i32 -> vector<1x256xf32>
    %c8_95 = arith.constant 8 : index
    %c0_96 = arith.constant 0 : index
    %630 = vector.load %arg4[%c8_95, %c0_96] : memref<9x256xf32, #tpu.memory_space<vmem>>, vector<1x256xf32>
    %631 = arith.mulf %629, %630 : vector<1x256xf32>
    %c17 = arith.constant 17 : index
    %632 = memref.load %arg5[%c17] : memref<144xf32, #tpu.memory_space<smem>>
    %633 = vector.broadcast %632 : f32 to vector<1x256xf32>
    %634 = arith.mulf %633, %631 : vector<1x256xf32>
    %635 = arith.addf %616, %634 : vector<1x256xf32>
    %c53 = arith.constant 53 : index
    %636 = memref.load %arg5[%c53] : memref<144xf32, #tpu.memory_space<smem>>
    %637 = vector.broadcast %636 : f32 to vector<1x256xf32>
    %638 = arith.mulf %637, %631 : vector<1x256xf32>
    %639 = arith.addf %620, %638 : vector<1x256xf32>
    %c89 = arith.constant 89 : index
    %640 = memref.load %arg5[%c89] : memref<144xf32, #tpu.memory_space<smem>>
    %641 = vector.broadcast %640 : f32 to vector<1x256xf32>
    %642 = arith.mulf %641, %631 : vector<1x256xf32>
    %643 = arith.addf %624, %642 : vector<1x256xf32>
    %c125 = arith.constant 125 : index
    %644 = memref.load %arg5[%c125] : memref<144xf32, #tpu.memory_space<smem>>
    %645 = vector.broadcast %644 : f32 to vector<1x256xf32>
    %646 = arith.mulf %645, %631 : vector<1x256xf32>
    %647 = arith.addf %628, %646 : vector<1x256xf32>
    %c239_i32_97 = arith.constant 239 : i32
    %648 = tpu.dynamic_rotate %4 by %c239_i32_97 dim 1 : vector<1x256xf32>, i32 -> vector<1x256xf32>
    %c8_98 = arith.constant 8 : index
    %c0_99 = arith.constant 0 : index
    %649 = vector.load %arg4[%c8_98, %c0_99] : memref<9x256xf32, #tpu.memory_space<vmem>>, vector<1x256xf32>
    %650 = arith.mulf %648, %649 : vector<1x256xf32>
    %c26 = arith.constant 26 : index
    %651 = memref.load %arg5[%c26] : memref<144xf32, #tpu.memory_space<smem>>
    %652 = vector.broadcast %651 : f32 to vector<1x256xf32>
    %653 = arith.mulf %652, %650 : vector<1x256xf32>
    %654 = arith.addf %635, %653 : vector<1x256xf32>
    %c62 = arith.constant 62 : index
    %655 = memref.load %arg5[%c62] : memref<144xf32, #tpu.memory_space<smem>>
    %656 = vector.broadcast %655 : f32 to vector<1x256xf32>
    %657 = arith.mulf %656, %650 : vector<1x256xf32>
    %658 = arith.addf %639, %657 : vector<1x256xf32>
    %c98 = arith.constant 98 : index
    %659 = memref.load %arg5[%c98] : memref<144xf32, #tpu.memory_space<smem>>
    %660 = vector.broadcast %659 : f32 to vector<1x256xf32>
    %661 = arith.mulf %660, %650 : vector<1x256xf32>
    %662 = arith.addf %643, %661 : vector<1x256xf32>
    %c134 = arith.constant 134 : index
    %663 = memref.load %arg5[%c134] : memref<144xf32, #tpu.memory_space<smem>>
    %664 = vector.broadcast %663 : f32 to vector<1x256xf32>
    %665 = arith.mulf %664, %650 : vector<1x256xf32>
    %666 = arith.addf %647, %665 : vector<1x256xf32>
    %c239_i32_100 = arith.constant 239 : i32
    %667 = tpu.dynamic_rotate %5 by %c239_i32_100 dim 1 : vector<1x256xf32>, i32 -> vector<1x256xf32>
    %c8_101 = arith.constant 8 : index
    %c0_102 = arith.constant 0 : index
    %668 = vector.load %arg4[%c8_101, %c0_102] : memref<9x256xf32, #tpu.memory_space<vmem>>, vector<1x256xf32>
    %669 = arith.mulf %667, %668 : vector<1x256xf32>
    %c35 = arith.constant 35 : index
    %670 = memref.load %arg5[%c35] : memref<144xf32, #tpu.memory_space<smem>>
    %671 = vector.broadcast %670 : f32 to vector<1x256xf32>
    %672 = arith.mulf %671, %669 : vector<1x256xf32>
    %673 = arith.addf %654, %672 : vector<1x256xf32>
    %c71 = arith.constant 71 : index
    %674 = memref.load %arg5[%c71] : memref<144xf32, #tpu.memory_space<smem>>
    %675 = vector.broadcast %674 : f32 to vector<1x256xf32>
    %676 = arith.mulf %675, %669 : vector<1x256xf32>
    %677 = arith.addf %658, %676 : vector<1x256xf32>
    %c107 = arith.constant 107 : index
    %678 = memref.load %arg5[%c107] : memref<144xf32, #tpu.memory_space<smem>>
    %679 = vector.broadcast %678 : f32 to vector<1x256xf32>
    %680 = arith.mulf %679, %669 : vector<1x256xf32>
    %681 = arith.addf %662, %680 : vector<1x256xf32>
    %c143 = arith.constant 143 : index
    %682 = memref.load %arg5[%c143] : memref<144xf32, #tpu.memory_space<smem>>
    %683 = vector.broadcast %682 : f32 to vector<1x256xf32>
    %684 = arith.mulf %683, %669 : vector<1x256xf32>
    %685 = arith.addf %666, %684 : vector<1x256xf32>
    %cst_103 = arith.constant dense<0.000000e+00> : vector<1xf32>
    %686 = vector.multi_reduction <add>, %673, %cst_103 [1] : vector<1x256xf32> to vector<1xf32>
    %687 = vector.shape_cast %686 : vector<1xf32> to vector<1x1xf32>
    %cst_104 = arith.constant 3.906250e-03 : f32
    %688 = vector.broadcast %cst_104 : f32 to vector<1x1xf32>
    %689 = arith.mulf %687, %688 : vector<1x1xf32>
    %690 = vector.broadcast %689 : vector<1x1xf32> to vector<1x256xf32>
    %691 = arith.subf %673, %690 : vector<1x256xf32>
    %692 = arith.mulf %691, %691 : vector<1x256xf32>
    %cst_105 = arith.constant dense<0.000000e+00> : vector<1xf32>
    %693 = vector.multi_reduction <add>, %692, %cst_105 [1] : vector<1x256xf32> to vector<1xf32>
    %694 = vector.shape_cast %693 : vector<1xf32> to vector<1x1xf32>
    %cst_106 = arith.constant 3.906250e-03 : f32
    %695 = vector.broadcast %cst_106 : f32 to vector<1x1xf32>
    %696 = arith.mulf %694, %695 : vector<1x1xf32>
    %cst_107 = arith.constant 9.99999974E-6 : f32
    %697 = vector.broadcast %cst_107 : f32 to vector<1x1xf32>
    %698 = arith.addf %696, %697 : vector<1x1xf32>
    %699 = math.rsqrt %698 : vector<1x1xf32>
    %700 = vector.broadcast %699 : vector<1x1xf32> to vector<1x256xf32>
    %701 = arith.mulf %691, %700 : vector<1x256xf32>
    %cst_108 = arith.constant 0.000000e+00 : f32
    %702 = vector.broadcast %cst_108 : f32 to vector<1x256xf32>
    %703 = arith.maximumf %701, %702 : vector<1x256xf32>
    %cst_109 = arith.constant dense<0.000000e+00> : vector<1xf32>
    %704 = vector.multi_reduction <add>, %677, %cst_109 [1] : vector<1x256xf32> to vector<1xf32>
    %705 = vector.shape_cast %704 : vector<1xf32> to vector<1x1xf32>
    %cst_110 = arith.constant 3.906250e-03 : f32
    %706 = vector.broadcast %cst_110 : f32 to vector<1x1xf32>
    %707 = arith.mulf %705, %706 : vector<1x1xf32>
    %708 = vector.broadcast %707 : vector<1x1xf32> to vector<1x256xf32>
    %709 = arith.subf %677, %708 : vector<1x256xf32>
    %710 = arith.mulf %709, %709 : vector<1x256xf32>
    %cst_111 = arith.constant dense<0.000000e+00> : vector<1xf32>
    %711 = vector.multi_reduction <add>, %710, %cst_111 [1] : vector<1x256xf32> to vector<1xf32>
    %712 = vector.shape_cast %711 : vector<1xf32> to vector<1x1xf32>
    %cst_112 = arith.constant 3.906250e-03 : f32
    %713 = vector.broadcast %cst_112 : f32 to vector<1x1xf32>
    %714 = arith.mulf %712, %713 : vector<1x1xf32>
    %cst_113 = arith.constant 9.99999974E-6 : f32
    %715 = vector.broadcast %cst_113 : f32 to vector<1x1xf32>
    %716 = arith.addf %714, %715 : vector<1x1xf32>
    %717 = math.rsqrt %716 : vector<1x1xf32>
    %718 = vector.broadcast %717 : vector<1x1xf32> to vector<1x256xf32>
    %719 = arith.mulf %709, %718 : vector<1x256xf32>
    %cst_114 = arith.constant 0.000000e+00 : f32
    %720 = vector.broadcast %cst_114 : f32 to vector<1x256xf32>
    %721 = arith.maximumf %719, %720 : vector<1x256xf32>
    %cst_115 = arith.constant dense<0.000000e+00> : vector<1xf32>
    %722 = vector.multi_reduction <add>, %681, %cst_115 [1] : vector<1x256xf32> to vector<1xf32>
    %723 = vector.shape_cast %722 : vector<1xf32> to vector<1x1xf32>
    %cst_116 = arith.constant 3.906250e-03 : f32
    %724 = vector.broadcast %cst_116 : f32 to vector<1x1xf32>
    %725 = arith.mulf %723, %724 : vector<1x1xf32>
    %726 = vector.broadcast %725 : vector<1x1xf32> to vector<1x256xf32>
    %727 = arith.subf %681, %726 : vector<1x256xf32>
    %728 = arith.mulf %727, %727 : vector<1x256xf32>
    %cst_117 = arith.constant dense<0.000000e+00> : vector<1xf32>
    %729 = vector.multi_reduction <add>, %728, %cst_117 [1] : vector<1x256xf32> to vector<1xf32>
    %730 = vector.shape_cast %729 : vector<1xf32> to vector<1x1xf32>
    %cst_118 = arith.constant 3.906250e-03 : f32
    %731 = vector.broadcast %cst_118 : f32 to vector<1x1xf32>
    %732 = arith.mulf %730, %731 : vector<1x1xf32>
    %cst_119 = arith.constant 9.99999974E-6 : f32
    %733 = vector.broadcast %cst_119 : f32 to vector<1x1xf32>
    %734 = arith.addf %732, %733 : vector<1x1xf32>
    %735 = math.rsqrt %734 : vector<1x1xf32>
    %736 = vector.broadcast %735 : vector<1x1xf32> to vector<1x256xf32>
    %737 = arith.mulf %727, %736 : vector<1x256xf32>
    %cst_120 = arith.constant 0.000000e+00 : f32
    %738 = vector.broadcast %cst_120 : f32 to vector<1x256xf32>
    %739 = arith.maximumf %737, %738 : vector<1x256xf32>
    %cst_121 = arith.constant dense<0.000000e+00> : vector<1xf32>
    %740 = vector.multi_reduction <add>, %685, %cst_121 [1] : vector<1x256xf32> to vector<1xf32>
    %741 = vector.shape_cast %740 : vector<1xf32> to vector<1x1xf32>
    %cst_122 = arith.constant 3.906250e-03 : f32
    %742 = vector.broadcast %cst_122 : f32 to vector<1x1xf32>
    %743 = arith.mulf %741, %742 : vector<1x1xf32>
    %744 = vector.broadcast %743 : vector<1x1xf32> to vector<1x256xf32>
    %745 = arith.subf %685, %744 : vector<1x256xf32>
    %746 = arith.mulf %745, %745 : vector<1x256xf32>
    %cst_123 = arith.constant dense<0.000000e+00> : vector<1xf32>
    %747 = vector.multi_reduction <add>, %746, %cst_123 [1] : vector<1x256xf32> to vector<1xf32>
    %748 = vector.shape_cast %747 : vector<1xf32> to vector<1x1xf32>
    %cst_124 = arith.constant 3.906250e-03 : f32
    %749 = vector.broadcast %cst_124 : f32 to vector<1x1xf32>
    %750 = arith.mulf %748, %749 : vector<1x1xf32>
    %cst_125 = arith.constant 9.99999974E-6 : f32
    %751 = vector.broadcast %cst_125 : f32 to vector<1x1xf32>
    %752 = arith.addf %750, %751 : vector<1x1xf32>
    %753 = math.rsqrt %752 : vector<1x1xf32>
    %754 = vector.broadcast %753 : vector<1x1xf32> to vector<1x256xf32>
    %755 = arith.mulf %745, %754 : vector<1x256xf32>
    %cst_126 = arith.constant 0.000000e+00 : f32
    %756 = vector.broadcast %cst_126 : f32 to vector<1x256xf32>
    %757 = arith.maximumf %755, %756 : vector<1x256xf32>
    %cst_127 = arith.constant 0.000000e+00 : f32
    %758 = vector.broadcast %cst_127 : f32 to vector<1x256xf32>
    %cst_128 = arith.constant 0.000000e+00 : f32
    %759 = vector.broadcast %cst_128 : f32 to vector<1x256xf32>
    %cst_129 = arith.constant 0.000000e+00 : f32
    %760 = vector.broadcast %cst_129 : f32 to vector<1x256xf32>
    %cst_130 = arith.constant 0.000000e+00 : f32
    %761 = vector.broadcast %cst_130 : f32 to vector<1x256xf32>
    %c17_i32_131 = arith.constant 17 : i32
    %762 = tpu.dynamic_rotate %703 by %c17_i32_131 dim 1 : vector<1x256xf32>, i32 -> vector<1x256xf32>
    %c0_132 = arith.constant 0 : index
    %c0_133 = arith.constant 0 : index
    %763 = vector.load %arg4[%c0_132, %c0_133] : memref<9x256xf32, #tpu.memory_space<vmem>>, vector<1x256xf32>
    %764 = arith.mulf %762, %763 : vector<1x256xf32>
    %c0_134 = arith.constant 0 : index
    %765 = memref.load %arg6[%c0_134] : memref<144xf32, #tpu.memory_space<smem>>
    %766 = vector.broadcast %765 : f32 to vector<1x256xf32>
    %767 = arith.mulf %766, %764 : vector<1x256xf32>
    %768 = arith.addf %758, %767 : vector<1x256xf32>
    %c36_135 = arith.constant 36 : index
    %769 = memref.load %arg6[%c36_135] : memref<144xf32, #tpu.memory_space<smem>>
    %770 = vector.broadcast %769 : f32 to vector<1x256xf32>
    %771 = arith.mulf %770, %764 : vector<1x256xf32>
    %772 = arith.addf %759, %771 : vector<1x256xf32>
    %c72_136 = arith.constant 72 : index
    %773 = memref.load %arg6[%c72_136] : memref<144xf32, #tpu.memory_space<smem>>
    %774 = vector.broadcast %773 : f32 to vector<1x256xf32>
    %775 = arith.mulf %774, %764 : vector<1x256xf32>
    %776 = arith.addf %760, %775 : vector<1x256xf32>
    %c108_137 = arith.constant 108 : index
    %777 = memref.load %arg6[%c108_137] : memref<144xf32, #tpu.memory_space<smem>>
    %778 = vector.broadcast %777 : f32 to vector<1x256xf32>
    %779 = arith.mulf %778, %764 : vector<1x256xf32>
    %780 = arith.addf %761, %779 : vector<1x256xf32>
    %c17_i32_138 = arith.constant 17 : i32
    %781 = tpu.dynamic_rotate %721 by %c17_i32_138 dim 1 : vector<1x256xf32>, i32 -> vector<1x256xf32>
    %c0_139 = arith.constant 0 : index
    %c0_140 = arith.constant 0 : index
    %782 = vector.load %arg4[%c0_139, %c0_140] : memref<9x256xf32, #tpu.memory_space<vmem>>, vector<1x256xf32>
    %783 = arith.mulf %781, %782 : vector<1x256xf32>
    %c9_141 = arith.constant 9 : index
    %784 = memref.load %arg6[%c9_141] : memref<144xf32, #tpu.memory_space<smem>>
    %785 = vector.broadcast %784 : f32 to vector<1x256xf32>
    %786 = arith.mulf %785, %783 : vector<1x256xf32>
    %787 = arith.addf %768, %786 : vector<1x256xf32>
    %c45_142 = arith.constant 45 : index
    %788 = memref.load %arg6[%c45_142] : memref<144xf32, #tpu.memory_space<smem>>
    %789 = vector.broadcast %788 : f32 to vector<1x256xf32>
    %790 = arith.mulf %789, %783 : vector<1x256xf32>
    %791 = arith.addf %772, %790 : vector<1x256xf32>
    %c81_143 = arith.constant 81 : index
    %792 = memref.load %arg6[%c81_143] : memref<144xf32, #tpu.memory_space<smem>>
    %793 = vector.broadcast %792 : f32 to vector<1x256xf32>
    %794 = arith.mulf %793, %783 : vector<1x256xf32>
    %795 = arith.addf %776, %794 : vector<1x256xf32>
    %c117_144 = arith.constant 117 : index
    %796 = memref.load %arg6[%c117_144] : memref<144xf32, #tpu.memory_space<smem>>
    %797 = vector.broadcast %796 : f32 to vector<1x256xf32>
    %798 = arith.mulf %797, %783 : vector<1x256xf32>
    %799 = arith.addf %780, %798 : vector<1x256xf32>
    %c17_i32_145 = arith.constant 17 : i32
    %800 = tpu.dynamic_rotate %739 by %c17_i32_145 dim 1 : vector<1x256xf32>, i32 -> vector<1x256xf32>
    %c0_146 = arith.constant 0 : index
    %c0_147 = arith.constant 0 : index
    %801 = vector.load %arg4[%c0_146, %c0_147] : memref<9x256xf32, #tpu.memory_space<vmem>>, vector<1x256xf32>
    %802 = arith.mulf %800, %801 : vector<1x256xf32>
    %c18_148 = arith.constant 18 : index
    %803 = memref.load %arg6[%c18_148] : memref<144xf32, #tpu.memory_space<smem>>
    %804 = vector.broadcast %803 : f32 to vector<1x256xf32>
    %805 = arith.mulf %804, %802 : vector<1x256xf32>
    %806 = arith.addf %787, %805 : vector<1x256xf32>
    %c54_149 = arith.constant 54 : index
    %807 = memref.load %arg6[%c54_149] : memref<144xf32, #tpu.memory_space<smem>>
    %808 = vector.broadcast %807 : f32 to vector<1x256xf32>
    %809 = arith.mulf %808, %802 : vector<1x256xf32>
    %810 = arith.addf %791, %809 : vector<1x256xf32>
    %c90_150 = arith.constant 90 : index
    %811 = memref.load %arg6[%c90_150] : memref<144xf32, #tpu.memory_space<smem>>
    %812 = vector.broadcast %811 : f32 to vector<1x256xf32>
    %813 = arith.mulf %812, %802 : vector<1x256xf32>
    %814 = arith.addf %795, %813 : vector<1x256xf32>
    %c126_151 = arith.constant 126 : index
    %815 = memref.load %arg6[%c126_151] : memref<144xf32, #tpu.memory_space<smem>>
    %816 = vector.broadcast %815 : f32 to vector<1x256xf32>
    %817 = arith.mulf %816, %802 : vector<1x256xf32>
    %818 = arith.addf %799, %817 : vector<1x256xf32>
    %c17_i32_152 = arith.constant 17 : i32
    %819 = tpu.dynamic_rotate %757 by %c17_i32_152 dim 1 : vector<1x256xf32>, i32 -> vector<1x256xf32>
    %c0_153 = arith.constant 0 : index
    %c0_154 = arith.constant 0 : index
    %820 = vector.load %arg4[%c0_153, %c0_154] : memref<9x256xf32, #tpu.memory_space<vmem>>, vector<1x256xf32>
    %821 = arith.mulf %819, %820 : vector<1x256xf32>
    %c27_155 = arith.constant 27 : index
    %822 = memref.load %arg6[%c27_155] : memref<144xf32, #tpu.memory_space<smem>>
    %823 = vector.broadcast %822 : f32 to vector<1x256xf32>
    %824 = arith.mulf %823, %821 : vector<1x256xf32>
    %825 = arith.addf %806, %824 : vector<1x256xf32>
    %c63_156 = arith.constant 63 : index
    %826 = memref.load %arg6[%c63_156] : memref<144xf32, #tpu.memory_space<smem>>
    %827 = vector.broadcast %826 : f32 to vector<1x256xf32>
    %828 = arith.mulf %827, %821 : vector<1x256xf32>
    %829 = arith.addf %810, %828 : vector<1x256xf32>
    %c99_157 = arith.constant 99 : index
    %830 = memref.load %arg6[%c99_157] : memref<144xf32, #tpu.memory_space<smem>>
    %831 = vector.broadcast %830 : f32 to vector<1x256xf32>
    %832 = arith.mulf %831, %821 : vector<1x256xf32>
    %833 = arith.addf %814, %832 : vector<1x256xf32>
    %c135_158 = arith.constant 135 : index
    %834 = memref.load %arg6[%c135_158] : memref<144xf32, #tpu.memory_space<smem>>
    %835 = vector.broadcast %834 : f32 to vector<1x256xf32>
    %836 = arith.mulf %835, %821 : vector<1x256xf32>
    %837 = arith.addf %818, %836 : vector<1x256xf32>
    %c16_i32_159 = arith.constant 16 : i32
    %838 = tpu.dynamic_rotate %703 by %c16_i32_159 dim 1 : vector<1x256xf32>, i32 -> vector<1x256xf32>
    %c1_160 = arith.constant 1 : index
    %c0_161 = arith.constant 0 : index
    %839 = vector.load %arg4[%c1_160, %c0_161] : memref<9x256xf32, #tpu.memory_space<vmem>>, vector<1x256xf32>
    %840 = arith.mulf %838, %839 : vector<1x256xf32>
    %c1_162 = arith.constant 1 : index
    %841 = memref.load %arg6[%c1_162] : memref<144xf32, #tpu.memory_space<smem>>
    %842 = vector.broadcast %841 : f32 to vector<1x256xf32>
    %843 = arith.mulf %842, %840 : vector<1x256xf32>
    %844 = arith.addf %825, %843 : vector<1x256xf32>
    %c37_163 = arith.constant 37 : index
    %845 = memref.load %arg6[%c37_163] : memref<144xf32, #tpu.memory_space<smem>>
    %846 = vector.broadcast %845 : f32 to vector<1x256xf32>
    %847 = arith.mulf %846, %840 : vector<1x256xf32>
    %848 = arith.addf %829, %847 : vector<1x256xf32>
    %c73_164 = arith.constant 73 : index
    %849 = memref.load %arg6[%c73_164] : memref<144xf32, #tpu.memory_space<smem>>
    %850 = vector.broadcast %849 : f32 to vector<1x256xf32>
    %851 = arith.mulf %850, %840 : vector<1x256xf32>
    %852 = arith.addf %833, %851 : vector<1x256xf32>
    %c109_165 = arith.constant 109 : index
    %853 = memref.load %arg6[%c109_165] : memref<144xf32, #tpu.memory_space<smem>>
    %854 = vector.broadcast %853 : f32 to vector<1x256xf32>
    %855 = arith.mulf %854, %840 : vector<1x256xf32>
    %856 = arith.addf %837, %855 : vector<1x256xf32>
    %c16_i32_166 = arith.constant 16 : i32
    %857 = tpu.dynamic_rotate %721 by %c16_i32_166 dim 1 : vector<1x256xf32>, i32 -> vector<1x256xf32>
    %c1_167 = arith.constant 1 : index
    %c0_168 = arith.constant 0 : index
    %858 = vector.load %arg4[%c1_167, %c0_168] : memref<9x256xf32, #tpu.memory_space<vmem>>, vector<1x256xf32>
    %859 = arith.mulf %857, %858 : vector<1x256xf32>
    %c10_169 = arith.constant 10 : index
    %860 = memref.load %arg6[%c10_169] : memref<144xf32, #tpu.memory_space<smem>>
    %861 = vector.broadcast %860 : f32 to vector<1x256xf32>
    %862 = arith.mulf %861, %859 : vector<1x256xf32>
    %863 = arith.addf %844, %862 : vector<1x256xf32>
    %c46_170 = arith.constant 46 : index
    %864 = memref.load %arg6[%c46_170] : memref<144xf32, #tpu.memory_space<smem>>
    %865 = vector.broadcast %864 : f32 to vector<1x256xf32>
    %866 = arith.mulf %865, %859 : vector<1x256xf32>
    %867 = arith.addf %848, %866 : vector<1x256xf32>
    %c82_171 = arith.constant 82 : index
    %868 = memref.load %arg6[%c82_171] : memref<144xf32, #tpu.memory_space<smem>>
    %869 = vector.broadcast %868 : f32 to vector<1x256xf32>
    %870 = arith.mulf %869, %859 : vector<1x256xf32>
    %871 = arith.addf %852, %870 : vector<1x256xf32>
    %c118_172 = arith.constant 118 : index
    %872 = memref.load %arg6[%c118_172] : memref<144xf32, #tpu.memory_space<smem>>
    %873 = vector.broadcast %872 : f32 to vector<1x256xf32>
    %874 = arith.mulf %873, %859 : vector<1x256xf32>
    %875 = arith.addf %856, %874 : vector<1x256xf32>
    %c16_i32_173 = arith.constant 16 : i32
    %876 = tpu.dynamic_rotate %739 by %c16_i32_173 dim 1 : vector<1x256xf32>, i32 -> vector<1x256xf32>
    %c1_174 = arith.constant 1 : index
    %c0_175 = arith.constant 0 : index
    %877 = vector.load %arg4[%c1_174, %c0_175] : memref<9x256xf32, #tpu.memory_space<vmem>>, vector<1x256xf32>
    %878 = arith.mulf %876, %877 : vector<1x256xf32>
    %c19_176 = arith.constant 19 : index
    %879 = memref.load %arg6[%c19_176] : memref<144xf32, #tpu.memory_space<smem>>
    %880 = vector.broadcast %879 : f32 to vector<1x256xf32>
    %881 = arith.mulf %880, %878 : vector<1x256xf32>
    %882 = arith.addf %863, %881 : vector<1x256xf32>
    %c55_177 = arith.constant 55 : index
    %883 = memref.load %arg6[%c55_177] : memref<144xf32, #tpu.memory_space<smem>>
    %884 = vector.broadcast %883 : f32 to vector<1x256xf32>
    %885 = arith.mulf %884, %878 : vector<1x256xf32>
    %886 = arith.addf %867, %885 : vector<1x256xf32>
    %c91_178 = arith.constant 91 : index
    %887 = memref.load %arg6[%c91_178] : memref<144xf32, #tpu.memory_space<smem>>
    %888 = vector.broadcast %887 : f32 to vector<1x256xf32>
    %889 = arith.mulf %888, %878 : vector<1x256xf32>
    %890 = arith.addf %871, %889 : vector<1x256xf32>
    %c127_179 = arith.constant 127 : index
    %891 = memref.load %arg6[%c127_179] : memref<144xf32, #tpu.memory_space<smem>>
    %892 = vector.broadcast %891 : f32 to vector<1x256xf32>
    %893 = arith.mulf %892, %878 : vector<1x256xf32>
    %894 = arith.addf %875, %893 : vector<1x256xf32>
    %c16_i32_180 = arith.constant 16 : i32
    %895 = tpu.dynamic_rotate %757 by %c16_i32_180 dim 1 : vector<1x256xf32>, i32 -> vector<1x256xf32>
    %c1_181 = arith.constant 1 : index
    %c0_182 = arith.constant 0 : index
    %896 = vector.load %arg4[%c1_181, %c0_182] : memref<9x256xf32, #tpu.memory_space<vmem>>, vector<1x256xf32>
    %897 = arith.mulf %895, %896 : vector<1x256xf32>
    %c28_183 = arith.constant 28 : index
    %898 = memref.load %arg6[%c28_183] : memref<144xf32, #tpu.memory_space<smem>>
    %899 = vector.broadcast %898 : f32 to vector<1x256xf32>
    %900 = arith.mulf %899, %897 : vector<1x256xf32>
    %901 = arith.addf %882, %900 : vector<1x256xf32>
    %c64_184 = arith.constant 64 : index
    %902 = memref.load %arg6[%c64_184] : memref<144xf32, #tpu.memory_space<smem>>
    %903 = vector.broadcast %902 : f32 to vector<1x256xf32>
    %904 = arith.mulf %903, %897 : vector<1x256xf32>
    %905 = arith.addf %886, %904 : vector<1x256xf32>
    %c100_185 = arith.constant 100 : index
    %906 = memref.load %arg6[%c100_185] : memref<144xf32, #tpu.memory_space<smem>>
    %907 = vector.broadcast %906 : f32 to vector<1x256xf32>
    %908 = arith.mulf %907, %897 : vector<1x256xf32>
    %909 = arith.addf %890, %908 : vector<1x256xf32>
    %c136_186 = arith.constant 136 : index
    %910 = memref.load %arg6[%c136_186] : memref<144xf32, #tpu.memory_space<smem>>
    %911 = vector.broadcast %910 : f32 to vector<1x256xf32>
    %912 = arith.mulf %911, %897 : vector<1x256xf32>
    %913 = arith.addf %894, %912 : vector<1x256xf32>
    %c15_i32_187 = arith.constant 15 : i32
    %914 = tpu.dynamic_rotate %703 by %c15_i32_187 dim 1 : vector<1x256xf32>, i32 -> vector<1x256xf32>
    %c2_188 = arith.constant 2 : index
    %c0_189 = arith.constant 0 : index
    %915 = vector.load %arg4[%c2_188, %c0_189] : memref<9x256xf32, #tpu.memory_space<vmem>>, vector<1x256xf32>
    %916 = arith.mulf %914, %915 : vector<1x256xf32>
    %c2_190 = arith.constant 2 : index
    %917 = memref.load %arg6[%c2_190] : memref<144xf32, #tpu.memory_space<smem>>
    %918 = vector.broadcast %917 : f32 to vector<1x256xf32>
    %919 = arith.mulf %918, %916 : vector<1x256xf32>
    %920 = arith.addf %901, %919 : vector<1x256xf32>
    %c38_191 = arith.constant 38 : index
    %921 = memref.load %arg6[%c38_191] : memref<144xf32, #tpu.memory_space<smem>>
    %922 = vector.broadcast %921 : f32 to vector<1x256xf32>
    %923 = arith.mulf %922, %916 : vector<1x256xf32>
    %924 = arith.addf %905, %923 : vector<1x256xf32>
    %c74_192 = arith.constant 74 : index
    %925 = memref.load %arg6[%c74_192] : memref<144xf32, #tpu.memory_space<smem>>
    %926 = vector.broadcast %925 : f32 to vector<1x256xf32>
    %927 = arith.mulf %926, %916 : vector<1x256xf32>
    %928 = arith.addf %909, %927 : vector<1x256xf32>
    %c110_193 = arith.constant 110 : index
    %929 = memref.load %arg6[%c110_193] : memref<144xf32, #tpu.memory_space<smem>>
    %930 = vector.broadcast %929 : f32 to vector<1x256xf32>
    %931 = arith.mulf %930, %916 : vector<1x256xf32>
    %932 = arith.addf %913, %931 : vector<1x256xf32>
    %c15_i32_194 = arith.constant 15 : i32
    %933 = tpu.dynamic_rotate %721 by %c15_i32_194 dim 1 : vector<1x256xf32>, i32 -> vector<1x256xf32>
    %c2_195 = arith.constant 2 : index
    %c0_196 = arith.constant 0 : index
    %934 = vector.load %arg4[%c2_195, %c0_196] : memref<9x256xf32, #tpu.memory_space<vmem>>, vector<1x256xf32>
    %935 = arith.mulf %933, %934 : vector<1x256xf32>
    %c11_197 = arith.constant 11 : index
    %936 = memref.load %arg6[%c11_197] : memref<144xf32, #tpu.memory_space<smem>>
    %937 = vector.broadcast %936 : f32 to vector<1x256xf32>
    %938 = arith.mulf %937, %935 : vector<1x256xf32>
    %939 = arith.addf %920, %938 : vector<1x256xf32>
    %c47_198 = arith.constant 47 : index
    %940 = memref.load %arg6[%c47_198] : memref<144xf32, #tpu.memory_space<smem>>
    %941 = vector.broadcast %940 : f32 to vector<1x256xf32>
    %942 = arith.mulf %941, %935 : vector<1x256xf32>
    %943 = arith.addf %924, %942 : vector<1x256xf32>
    %c83_199 = arith.constant 83 : index
    %944 = memref.load %arg6[%c83_199] : memref<144xf32, #tpu.memory_space<smem>>
    %945 = vector.broadcast %944 : f32 to vector<1x256xf32>
    %946 = arith.mulf %945, %935 : vector<1x256xf32>
    %947 = arith.addf %928, %946 : vector<1x256xf32>
    %c119_200 = arith.constant 119 : index
    %948 = memref.load %arg6[%c119_200] : memref<144xf32, #tpu.memory_space<smem>>
    %949 = vector.broadcast %948 : f32 to vector<1x256xf32>
    %950 = arith.mulf %949, %935 : vector<1x256xf32>
    %951 = arith.addf %932, %950 : vector<1x256xf32>
    %c15_i32_201 = arith.constant 15 : i32
    %952 = tpu.dynamic_rotate %739 by %c15_i32_201 dim 1 : vector<1x256xf32>, i32 -> vector<1x256xf32>
    %c2_202 = arith.constant 2 : index
    %c0_203 = arith.constant 0 : index
    %953 = vector.load %arg4[%c2_202, %c0_203] : memref<9x256xf32, #tpu.memory_space<vmem>>, vector<1x256xf32>
    %954 = arith.mulf %952, %953 : vector<1x256xf32>
    %c20_204 = arith.constant 20 : index
    %955 = memref.load %arg6[%c20_204] : memref<144xf32, #tpu.memory_space<smem>>
    %956 = vector.broadcast %955 : f32 to vector<1x256xf32>
    %957 = arith.mulf %956, %954 : vector<1x256xf32>
    %958 = arith.addf %939, %957 : vector<1x256xf32>
    %c56_205 = arith.constant 56 : index
    %959 = memref.load %arg6[%c56_205] : memref<144xf32, #tpu.memory_space<smem>>
    %960 = vector.broadcast %959 : f32 to vector<1x256xf32>
    %961 = arith.mulf %960, %954 : vector<1x256xf32>
    %962 = arith.addf %943, %961 : vector<1x256xf32>
    %c92_206 = arith.constant 92 : index
    %963 = memref.load %arg6[%c92_206] : memref<144xf32, #tpu.memory_space<smem>>
    %964 = vector.broadcast %963 : f32 to vector<1x256xf32>
    %965 = arith.mulf %964, %954 : vector<1x256xf32>
    %966 = arith.addf %947, %965 : vector<1x256xf32>
    %c128_207 = arith.constant 128 : index
    %967 = memref.load %arg6[%c128_207] : memref<144xf32, #tpu.memory_space<smem>>
    %968 = vector.broadcast %967 : f32 to vector<1x256xf32>
    %969 = arith.mulf %968, %954 : vector<1x256xf32>
    %970 = arith.addf %951, %969 : vector<1x256xf32>
    %c15_i32_208 = arith.constant 15 : i32
    %971 = tpu.dynamic_rotate %757 by %c15_i32_208 dim 1 : vector<1x256xf32>, i32 -> vector<1x256xf32>
    %c2_209 = arith.constant 2 : index
    %c0_210 = arith.constant 0 : index
    %972 = vector.load %arg4[%c2_209, %c0_210] : memref<9x256xf32, #tpu.memory_space<vmem>>, vector<1x256xf32>
    %973 = arith.mulf %971, %972 : vector<1x256xf32>
    %c29_211 = arith.constant 29 : index
    %974 = memref.load %arg6[%c29_211] : memref<144xf32, #tpu.memory_space<smem>>
    %975 = vector.broadcast %974 : f32 to vector<1x256xf32>
    %976 = arith.mulf %975, %973 : vector<1x256xf32>
    %977 = arith.addf %958, %976 : vector<1x256xf32>
    %c65_212 = arith.constant 65 : index
    %978 = memref.load %arg6[%c65_212] : memref<144xf32, #tpu.memory_space<smem>>
    %979 = vector.broadcast %978 : f32 to vector<1x256xf32>
    %980 = arith.mulf %979, %973 : vector<1x256xf32>
    %981 = arith.addf %962, %980 : vector<1x256xf32>
    %c101_213 = arith.constant 101 : index
    %982 = memref.load %arg6[%c101_213] : memref<144xf32, #tpu.memory_space<smem>>
    %983 = vector.broadcast %982 : f32 to vector<1x256xf32>
    %984 = arith.mulf %983, %973 : vector<1x256xf32>
    %985 = arith.addf %966, %984 : vector<1x256xf32>
    %c137_214 = arith.constant 137 : index
    %986 = memref.load %arg6[%c137_214] : memref<144xf32, #tpu.memory_space<smem>>
    %987 = vector.broadcast %986 : f32 to vector<1x256xf32>
    %988 = arith.mulf %987, %973 : vector<1x256xf32>
    %989 = arith.addf %970, %988 : vector<1x256xf32>
    %c1_i32_215 = arith.constant 1 : i32
    %990 = tpu.dynamic_rotate %703 by %c1_i32_215 dim 1 : vector<1x256xf32>, i32 -> vector<1x256xf32>
    %c3_216 = arith.constant 3 : index
    %c0_217 = arith.constant 0 : index
    %991 = vector.load %arg4[%c3_216, %c0_217] : memref<9x256xf32, #tpu.memory_space<vmem>>, vector<1x256xf32>
    %992 = arith.mulf %990, %991 : vector<1x256xf32>
    %c3_218 = arith.constant 3 : index
    %993 = memref.load %arg6[%c3_218] : memref<144xf32, #tpu.memory_space<smem>>
    %994 = vector.broadcast %993 : f32 to vector<1x256xf32>
    %995 = arith.mulf %994, %992 : vector<1x256xf32>
    %996 = arith.addf %977, %995 : vector<1x256xf32>
    %c39_219 = arith.constant 39 : index
    %997 = memref.load %arg6[%c39_219] : memref<144xf32, #tpu.memory_space<smem>>
    %998 = vector.broadcast %997 : f32 to vector<1x256xf32>
    %999 = arith.mulf %998, %992 : vector<1x256xf32>
    %1000 = arith.addf %981, %999 : vector<1x256xf32>
    %c75_220 = arith.constant 75 : index
    %1001 = memref.load %arg6[%c75_220] : memref<144xf32, #tpu.memory_space<smem>>
    %1002 = vector.broadcast %1001 : f32 to vector<1x256xf32>
    %1003 = arith.mulf %1002, %992 : vector<1x256xf32>
    %1004 = arith.addf %985, %1003 : vector<1x256xf32>
    %c111_221 = arith.constant 111 : index
    %1005 = memref.load %arg6[%c111_221] : memref<144xf32, #tpu.memory_space<smem>>
    %1006 = vector.broadcast %1005 : f32 to vector<1x256xf32>
    %1007 = arith.mulf %1006, %992 : vector<1x256xf32>
    %1008 = arith.addf %989, %1007 : vector<1x256xf32>
    %c1_i32_222 = arith.constant 1 : i32
    %1009 = tpu.dynamic_rotate %721 by %c1_i32_222 dim 1 : vector<1x256xf32>, i32 -> vector<1x256xf32>
    %c3_223 = arith.constant 3 : index
    %c0_224 = arith.constant 0 : index
    %1010 = vector.load %arg4[%c3_223, %c0_224] : memref<9x256xf32, #tpu.memory_space<vmem>>, vector<1x256xf32>
    %1011 = arith.mulf %1009, %1010 : vector<1x256xf32>
    %c12_225 = arith.constant 12 : index
    %1012 = memref.load %arg6[%c12_225] : memref<144xf32, #tpu.memory_space<smem>>
    %1013 = vector.broadcast %1012 : f32 to vector<1x256xf32>
    %1014 = arith.mulf %1013, %1011 : vector<1x256xf32>
    %1015 = arith.addf %996, %1014 : vector<1x256xf32>
    %c48_226 = arith.constant 48 : index
    %1016 = memref.load %arg6[%c48_226] : memref<144xf32, #tpu.memory_space<smem>>
    %1017 = vector.broadcast %1016 : f32 to vector<1x256xf32>
    %1018 = arith.mulf %1017, %1011 : vector<1x256xf32>
    %1019 = arith.addf %1000, %1018 : vector<1x256xf32>
    %c84_227 = arith.constant 84 : index
    %1020 = memref.load %arg6[%c84_227] : memref<144xf32, #tpu.memory_space<smem>>
    %1021 = vector.broadcast %1020 : f32 to vector<1x256xf32>
    %1022 = arith.mulf %1021, %1011 : vector<1x256xf32>
    %1023 = arith.addf %1004, %1022 : vector<1x256xf32>
    %c120_228 = arith.constant 120 : index
    %1024 = memref.load %arg6[%c120_228] : memref<144xf32, #tpu.memory_space<smem>>
    %1025 = vector.broadcast %1024 : f32 to vector<1x256xf32>
    %1026 = arith.mulf %1025, %1011 : vector<1x256xf32>
    %1027 = arith.addf %1008, %1026 : vector<1x256xf32>
    %c1_i32_229 = arith.constant 1 : i32
    %1028 = tpu.dynamic_rotate %739 by %c1_i32_229 dim 1 : vector<1x256xf32>, i32 -> vector<1x256xf32>
    %c3_230 = arith.constant 3 : index
    %c0_231 = arith.constant 0 : index
    %1029 = vector.load %arg4[%c3_230, %c0_231] : memref<9x256xf32, #tpu.memory_space<vmem>>, vector<1x256xf32>
    %1030 = arith.mulf %1028, %1029 : vector<1x256xf32>
    %c21_232 = arith.constant 21 : index
    %1031 = memref.load %arg6[%c21_232] : memref<144xf32, #tpu.memory_space<smem>>
    %1032 = vector.broadcast %1031 : f32 to vector<1x256xf32>
    %1033 = arith.mulf %1032, %1030 : vector<1x256xf32>
    %1034 = arith.addf %1015, %1033 : vector<1x256xf32>
    %c57_233 = arith.constant 57 : index
    %1035 = memref.load %arg6[%c57_233] : memref<144xf32, #tpu.memory_space<smem>>
    %1036 = vector.broadcast %1035 : f32 to vector<1x256xf32>
    %1037 = arith.mulf %1036, %1030 : vector<1x256xf32>
    %1038 = arith.addf %1019, %1037 : vector<1x256xf32>
    %c93_234 = arith.constant 93 : index
    %1039 = memref.load %arg6[%c93_234] : memref<144xf32, #tpu.memory_space<smem>>
    %1040 = vector.broadcast %1039 : f32 to vector<1x256xf32>
    %1041 = arith.mulf %1040, %1030 : vector<1x256xf32>
    %1042 = arith.addf %1023, %1041 : vector<1x256xf32>
    %c129_235 = arith.constant 129 : index
    %1043 = memref.load %arg6[%c129_235] : memref<144xf32, #tpu.memory_space<smem>>
    %1044 = vector.broadcast %1043 : f32 to vector<1x256xf32>
    %1045 = arith.mulf %1044, %1030 : vector<1x256xf32>
    %1046 = arith.addf %1027, %1045 : vector<1x256xf32>
    %c1_i32_236 = arith.constant 1 : i32
    %1047 = tpu.dynamic_rotate %757 by %c1_i32_236 dim 1 : vector<1x256xf32>, i32 -> vector<1x256xf32>
    %c3_237 = arith.constant 3 : index
    %c0_238 = arith.constant 0 : index
    %1048 = vector.load %arg4[%c3_237, %c0_238] : memref<9x256xf32, #tpu.memory_space<vmem>>, vector<1x256xf32>
    %1049 = arith.mulf %1047, %1048 : vector<1x256xf32>
    %c30_239 = arith.constant 30 : index
    %1050 = memref.load %arg6[%c30_239] : memref<144xf32, #tpu.memory_space<smem>>
    %1051 = vector.broadcast %1050 : f32 to vector<1x256xf32>
    %1052 = arith.mulf %1051, %1049 : vector<1x256xf32>
    %1053 = arith.addf %1034, %1052 : vector<1x256xf32>
    %c66_240 = arith.constant 66 : index
    %1054 = memref.load %arg6[%c66_240] : memref<144xf32, #tpu.memory_space<smem>>
    %1055 = vector.broadcast %1054 : f32 to vector<1x256xf32>
    %1056 = arith.mulf %1055, %1049 : vector<1x256xf32>
    %1057 = arith.addf %1038, %1056 : vector<1x256xf32>
    %c102_241 = arith.constant 102 : index
    %1058 = memref.load %arg6[%c102_241] : memref<144xf32, #tpu.memory_space<smem>>
    %1059 = vector.broadcast %1058 : f32 to vector<1x256xf32>
    %1060 = arith.mulf %1059, %1049 : vector<1x256xf32>
    %1061 = arith.addf %1042, %1060 : vector<1x256xf32>
    %c138_242 = arith.constant 138 : index
    %1062 = memref.load %arg6[%c138_242] : memref<144xf32, #tpu.memory_space<smem>>
    %1063 = vector.broadcast %1062 : f32 to vector<1x256xf32>
    %1064 = arith.mulf %1063, %1049 : vector<1x256xf32>
    %1065 = arith.addf %1046, %1064 : vector<1x256xf32>
    %c4_243 = arith.constant 4 : index
    %1066 = memref.load %arg6[%c4_243] : memref<144xf32, #tpu.memory_space<smem>>
    %1067 = vector.broadcast %1066 : f32 to vector<1x256xf32>
    %1068 = arith.mulf %1067, %703 : vector<1x256xf32>
    %1069 = arith.addf %1053, %1068 : vector<1x256xf32>
    %c40_244 = arith.constant 40 : index
    %1070 = memref.load %arg6[%c40_244] : memref<144xf32, #tpu.memory_space<smem>>
    %1071 = vector.broadcast %1070 : f32 to vector<1x256xf32>
    %1072 = arith.mulf %1071, %703 : vector<1x256xf32>
    %1073 = arith.addf %1057, %1072 : vector<1x256xf32>
    %c76_245 = arith.constant 76 : index
    %1074 = memref.load %arg6[%c76_245] : memref<144xf32, #tpu.memory_space<smem>>
    %1075 = vector.broadcast %1074 : f32 to vector<1x256xf32>
    %1076 = arith.mulf %1075, %703 : vector<1x256xf32>
    %1077 = arith.addf %1061, %1076 : vector<1x256xf32>
    %c112_246 = arith.constant 112 : index
    %1078 = memref.load %arg6[%c112_246] : memref<144xf32, #tpu.memory_space<smem>>
    %1079 = vector.broadcast %1078 : f32 to vector<1x256xf32>
    %1080 = arith.mulf %1079, %703 : vector<1x256xf32>
    %1081 = arith.addf %1065, %1080 : vector<1x256xf32>
    %c13_247 = arith.constant 13 : index
    %1082 = memref.load %arg6[%c13_247] : memref<144xf32, #tpu.memory_space<smem>>
    %1083 = vector.broadcast %1082 : f32 to vector<1x256xf32>
    %1084 = arith.mulf %1083, %721 : vector<1x256xf32>
    %1085 = arith.addf %1069, %1084 : vector<1x256xf32>
    %c49_248 = arith.constant 49 : index
    %1086 = memref.load %arg6[%c49_248] : memref<144xf32, #tpu.memory_space<smem>>
    %1087 = vector.broadcast %1086 : f32 to vector<1x256xf32>
    %1088 = arith.mulf %1087, %721 : vector<1x256xf32>
    %1089 = arith.addf %1073, %1088 : vector<1x256xf32>
    %c85_249 = arith.constant 85 : index
    %1090 = memref.load %arg6[%c85_249] : memref<144xf32, #tpu.memory_space<smem>>
    %1091 = vector.broadcast %1090 : f32 to vector<1x256xf32>
    %1092 = arith.mulf %1091, %721 : vector<1x256xf32>
    %1093 = arith.addf %1077, %1092 : vector<1x256xf32>
    %c121_250 = arith.constant 121 : index
    %1094 = memref.load %arg6[%c121_250] : memref<144xf32, #tpu.memory_space<smem>>
    %1095 = vector.broadcast %1094 : f32 to vector<1x256xf32>
    %1096 = arith.mulf %1095, %721 : vector<1x256xf32>
    %1097 = arith.addf %1081, %1096 : vector<1x256xf32>
    %c22_251 = arith.constant 22 : index
    %1098 = memref.load %arg6[%c22_251] : memref<144xf32, #tpu.memory_space<smem>>
    %1099 = vector.broadcast %1098 : f32 to vector<1x256xf32>
    %1100 = arith.mulf %1099, %739 : vector<1x256xf32>
    %1101 = arith.addf %1085, %1100 : vector<1x256xf32>
    %c58_252 = arith.constant 58 : index
    %1102 = memref.load %arg6[%c58_252] : memref<144xf32, #tpu.memory_space<smem>>
    %1103 = vector.broadcast %1102 : f32 to vector<1x256xf32>
    %1104 = arith.mulf %1103, %739 : vector<1x256xf32>
    %1105 = arith.addf %1089, %1104 : vector<1x256xf32>
    %c94_253 = arith.constant 94 : index
    %1106 = memref.load %arg6[%c94_253] : memref<144xf32, #tpu.memory_space<smem>>
    %1107 = vector.broadcast %1106 : f32 to vector<1x256xf32>
    %1108 = arith.mulf %1107, %739 : vector<1x256xf32>
    %1109 = arith.addf %1093, %1108 : vector<1x256xf32>
    %c130_254 = arith.constant 130 : index
    %1110 = memref.load %arg6[%c130_254] : memref<144xf32, #tpu.memory_space<smem>>
    %1111 = vector.broadcast %1110 : f32 to vector<1x256xf32>
    %1112 = arith.mulf %1111, %739 : vector<1x256xf32>
    %1113 = arith.addf %1097, %1112 : vector<1x256xf32>
    %c31_255 = arith.constant 31 : index
    %1114 = memref.load %arg6[%c31_255] : memref<144xf32, #tpu.memory_space<smem>>
    %1115 = vector.broadcast %1114 : f32 to vector<1x256xf32>
    %1116 = arith.mulf %1115, %757 : vector<1x256xf32>
    %1117 = arith.addf %1101, %1116 : vector<1x256xf32>
    %c67_256 = arith.constant 67 : index
    %1118 = memref.load %arg6[%c67_256] : memref<144xf32, #tpu.memory_space<smem>>
    %1119 = vector.broadcast %1118 : f32 to vector<1x256xf32>
    %1120 = arith.mulf %1119, %757 : vector<1x256xf32>
    %1121 = arith.addf %1105, %1120 : vector<1x256xf32>
    %c103_257 = arith.constant 103 : index
    %1122 = memref.load %arg6[%c103_257] : memref<144xf32, #tpu.memory_space<smem>>
    %1123 = vector.broadcast %1122 : f32 to vector<1x256xf32>
    %1124 = arith.mulf %1123, %757 : vector<1x256xf32>
    %1125 = arith.addf %1109, %1124 : vector<1x256xf32>
    %c139_258 = arith.constant 139 : index
    %1126 = memref.load %arg6[%c139_258] : memref<144xf32, #tpu.memory_space<smem>>
    %1127 = vector.broadcast %1126 : f32 to vector<1x256xf32>
    %1128 = arith.mulf %1127, %757 : vector<1x256xf32>
    %1129 = arith.addf %1113, %1128 : vector<1x256xf32>
    %c255_i32_259 = arith.constant 255 : i32
    %1130 = tpu.dynamic_rotate %703 by %c255_i32_259 dim 1 : vector<1x256xf32>, i32 -> vector<1x256xf32>
    %c5_260 = arith.constant 5 : index
    %c0_261 = arith.constant 0 : index
    %1131 = vector.load %arg4[%c5_260, %c0_261] : memref<9x256xf32, #tpu.memory_space<vmem>>, vector<1x256xf32>
    %1132 = arith.mulf %1130, %1131 : vector<1x256xf32>
    %c5_262 = arith.constant 5 : index
    %1133 = memref.load %arg6[%c5_262] : memref<144xf32, #tpu.memory_space<smem>>
    %1134 = vector.broadcast %1133 : f32 to vector<1x256xf32>
    %1135 = arith.mulf %1134, %1132 : vector<1x256xf32>
    %1136 = arith.addf %1117, %1135 : vector<1x256xf32>
    %c41_263 = arith.constant 41 : index
    %1137 = memref.load %arg6[%c41_263] : memref<144xf32, #tpu.memory_space<smem>>
    %1138 = vector.broadcast %1137 : f32 to vector<1x256xf32>
    %1139 = arith.mulf %1138, %1132 : vector<1x256xf32>
    %1140 = arith.addf %1121, %1139 : vector<1x256xf32>
    %c77_264 = arith.constant 77 : index
    %1141 = memref.load %arg6[%c77_264] : memref<144xf32, #tpu.memory_space<smem>>
    %1142 = vector.broadcast %1141 : f32 to vector<1x256xf32>
    %1143 = arith.mulf %1142, %1132 : vector<1x256xf32>
    %1144 = arith.addf %1125, %1143 : vector<1x256xf32>
    %c113_265 = arith.constant 113 : index
    %1145 = memref.load %arg6[%c113_265] : memref<144xf32, #tpu.memory_space<smem>>
    %1146 = vector.broadcast %1145 : f32 to vector<1x256xf32>
    %1147 = arith.mulf %1146, %1132 : vector<1x256xf32>
    %1148 = arith.addf %1129, %1147 : vector<1x256xf32>
    %c255_i32_266 = arith.constant 255 : i32
    %1149 = tpu.dynamic_rotate %721 by %c255_i32_266 dim 1 : vector<1x256xf32>, i32 -> vector<1x256xf32>
    %c5_267 = arith.constant 5 : index
    %c0_268 = arith.constant 0 : index
    %1150 = vector.load %arg4[%c5_267, %c0_268] : memref<9x256xf32, #tpu.memory_space<vmem>>, vector<1x256xf32>
    %1151 = arith.mulf %1149, %1150 : vector<1x256xf32>
    %c14_269 = arith.constant 14 : index
    %1152 = memref.load %arg6[%c14_269] : memref<144xf32, #tpu.memory_space<smem>>
    %1153 = vector.broadcast %1152 : f32 to vector<1x256xf32>
    %1154 = arith.mulf %1153, %1151 : vector<1x256xf32>
    %1155 = arith.addf %1136, %1154 : vector<1x256xf32>
    %c50_270 = arith.constant 50 : index
    %1156 = memref.load %arg6[%c50_270] : memref<144xf32, #tpu.memory_space<smem>>
    %1157 = vector.broadcast %1156 : f32 to vector<1x256xf32>
    %1158 = arith.mulf %1157, %1151 : vector<1x256xf32>
    %1159 = arith.addf %1140, %1158 : vector<1x256xf32>
    %c86_271 = arith.constant 86 : index
    %1160 = memref.load %arg6[%c86_271] : memref<144xf32, #tpu.memory_space<smem>>
    %1161 = vector.broadcast %1160 : f32 to vector<1x256xf32>
    %1162 = arith.mulf %1161, %1151 : vector<1x256xf32>
    %1163 = arith.addf %1144, %1162 : vector<1x256xf32>
    %c122_272 = arith.constant 122 : index
    %1164 = memref.load %arg6[%c122_272] : memref<144xf32, #tpu.memory_space<smem>>
    %1165 = vector.broadcast %1164 : f32 to vector<1x256xf32>
    %1166 = arith.mulf %1165, %1151 : vector<1x256xf32>
    %1167 = arith.addf %1148, %1166 : vector<1x256xf32>
    %c255_i32_273 = arith.constant 255 : i32
    %1168 = tpu.dynamic_rotate %739 by %c255_i32_273 dim 1 : vector<1x256xf32>, i32 -> vector<1x256xf32>
    %c5_274 = arith.constant 5 : index
    %c0_275 = arith.constant 0 : index
    %1169 = vector.load %arg4[%c5_274, %c0_275] : memref<9x256xf32, #tpu.memory_space<vmem>>, vector<1x256xf32>
    %1170 = arith.mulf %1168, %1169 : vector<1x256xf32>
    %c23_276 = arith.constant 23 : index
    %1171 = memref.load %arg6[%c23_276] : memref<144xf32, #tpu.memory_space<smem>>
    %1172 = vector.broadcast %1171 : f32 to vector<1x256xf32>
    %1173 = arith.mulf %1172, %1170 : vector<1x256xf32>
    %1174 = arith.addf %1155, %1173 : vector<1x256xf32>
    %c59_277 = arith.constant 59 : index
    %1175 = memref.load %arg6[%c59_277] : memref<144xf32, #tpu.memory_space<smem>>
    %1176 = vector.broadcast %1175 : f32 to vector<1x256xf32>
    %1177 = arith.mulf %1176, %1170 : vector<1x256xf32>
    %1178 = arith.addf %1159, %1177 : vector<1x256xf32>
    %c95_278 = arith.constant 95 : index
    %1179 = memref.load %arg6[%c95_278] : memref<144xf32, #tpu.memory_space<smem>>
    %1180 = vector.broadcast %1179 : f32 to vector<1x256xf32>
    %1181 = arith.mulf %1180, %1170 : vector<1x256xf32>
    %1182 = arith.addf %1163, %1181 : vector<1x256xf32>
    %c131_279 = arith.constant 131 : index
    %1183 = memref.load %arg6[%c131_279] : memref<144xf32, #tpu.memory_space<smem>>
    %1184 = vector.broadcast %1183 : f32 to vector<1x256xf32>
    %1185 = arith.mulf %1184, %1170 : vector<1x256xf32>
    %1186 = arith.addf %1167, %1185 : vector<1x256xf32>
    %c255_i32_280 = arith.constant 255 : i32
    %1187 = tpu.dynamic_rotate %757 by %c255_i32_280 dim 1 : vector<1x256xf32>, i32 -> vector<1x256xf32>
    %c5_281 = arith.constant 5 : index
    %c0_282 = arith.constant 0 : index
    %1188 = vector.load %arg4[%c5_281, %c0_282] : memref<9x256xf32, #tpu.memory_space<vmem>>, vector<1x256xf32>
    %1189 = arith.mulf %1187, %1188 : vector<1x256xf32>
    %c32_283 = arith.constant 32 : index
    %1190 = memref.load %arg6[%c32_283] : memref<144xf32, #tpu.memory_space<smem>>
    %1191 = vector.broadcast %1190 : f32 to vector<1x256xf32>
    %1192 = arith.mulf %1191, %1189 : vector<1x256xf32>
    %1193 = arith.addf %1174, %1192 : vector<1x256xf32>
    %c68_284 = arith.constant 68 : index
    %1194 = memref.load %arg6[%c68_284] : memref<144xf32, #tpu.memory_space<smem>>
    %1195 = vector.broadcast %1194 : f32 to vector<1x256xf32>
    %1196 = arith.mulf %1195, %1189 : vector<1x256xf32>
    %1197 = arith.addf %1178, %1196 : vector<1x256xf32>
    %c104_285 = arith.constant 104 : index
    %1198 = memref.load %arg6[%c104_285] : memref<144xf32, #tpu.memory_space<smem>>
    %1199 = vector.broadcast %1198 : f32 to vector<1x256xf32>
    %1200 = arith.mulf %1199, %1189 : vector<1x256xf32>
    %1201 = arith.addf %1182, %1200 : vector<1x256xf32>
    %c140_286 = arith.constant 140 : index
    %1202 = memref.load %arg6[%c140_286] : memref<144xf32, #tpu.memory_space<smem>>
    %1203 = vector.broadcast %1202 : f32 to vector<1x256xf32>
    %1204 = arith.mulf %1203, %1189 : vector<1x256xf32>
    %1205 = arith.addf %1186, %1204 : vector<1x256xf32>
    %c241_i32_287 = arith.constant 241 : i32
    %1206 = tpu.dynamic_rotate %703 by %c241_i32_287 dim 1 : vector<1x256xf32>, i32 -> vector<1x256xf32>
    %c6_288 = arith.constant 6 : index
    %c0_289 = arith.constant 0 : index
    %1207 = vector.load %arg4[%c6_288, %c0_289] : memref<9x256xf32, #tpu.memory_space<vmem>>, vector<1x256xf32>
    %1208 = arith.mulf %1206, %1207 : vector<1x256xf32>
    %c6_290 = arith.constant 6 : index
    %1209 = memref.load %arg6[%c6_290] : memref<144xf32, #tpu.memory_space<smem>>
    %1210 = vector.broadcast %1209 : f32 to vector<1x256xf32>
    %1211 = arith.mulf %1210, %1208 : vector<1x256xf32>
    %1212 = arith.addf %1193, %1211 : vector<1x256xf32>
    %c42_291 = arith.constant 42 : index
    %1213 = memref.load %arg6[%c42_291] : memref<144xf32, #tpu.memory_space<smem>>
    %1214 = vector.broadcast %1213 : f32 to vector<1x256xf32>
    %1215 = arith.mulf %1214, %1208 : vector<1x256xf32>
    %1216 = arith.addf %1197, %1215 : vector<1x256xf32>
    %c78_292 = arith.constant 78 : index
    %1217 = memref.load %arg6[%c78_292] : memref<144xf32, #tpu.memory_space<smem>>
    %1218 = vector.broadcast %1217 : f32 to vector<1x256xf32>
    %1219 = arith.mulf %1218, %1208 : vector<1x256xf32>
    %1220 = arith.addf %1201, %1219 : vector<1x256xf32>
    %c114_293 = arith.constant 114 : index
    %1221 = memref.load %arg6[%c114_293] : memref<144xf32, #tpu.memory_space<smem>>
    %1222 = vector.broadcast %1221 : f32 to vector<1x256xf32>
    %1223 = arith.mulf %1222, %1208 : vector<1x256xf32>
    %1224 = arith.addf %1205, %1223 : vector<1x256xf32>
    %c241_i32_294 = arith.constant 241 : i32
    %1225 = tpu.dynamic_rotate %721 by %c241_i32_294 dim 1 : vector<1x256xf32>, i32 -> vector<1x256xf32>
    %c6_295 = arith.constant 6 : index
    %c0_296 = arith.constant 0 : index
    %1226 = vector.load %arg4[%c6_295, %c0_296] : memref<9x256xf32, #tpu.memory_space<vmem>>, vector<1x256xf32>
    %1227 = arith.mulf %1225, %1226 : vector<1x256xf32>
    %c15_297 = arith.constant 15 : index
    %1228 = memref.load %arg6[%c15_297] : memref<144xf32, #tpu.memory_space<smem>>
    %1229 = vector.broadcast %1228 : f32 to vector<1x256xf32>
    %1230 = arith.mulf %1229, %1227 : vector<1x256xf32>
    %1231 = arith.addf %1212, %1230 : vector<1x256xf32>
    %c51_298 = arith.constant 51 : index
    %1232 = memref.load %arg6[%c51_298] : memref<144xf32, #tpu.memory_space<smem>>
    %1233 = vector.broadcast %1232 : f32 to vector<1x256xf32>
    %1234 = arith.mulf %1233, %1227 : vector<1x256xf32>
    %1235 = arith.addf %1216, %1234 : vector<1x256xf32>
    %c87_299 = arith.constant 87 : index
    %1236 = memref.load %arg6[%c87_299] : memref<144xf32, #tpu.memory_space<smem>>
    %1237 = vector.broadcast %1236 : f32 to vector<1x256xf32>
    %1238 = arith.mulf %1237, %1227 : vector<1x256xf32>
    %1239 = arith.addf %1220, %1238 : vector<1x256xf32>
    %c123_300 = arith.constant 123 : index
    %1240 = memref.load %arg6[%c123_300] : memref<144xf32, #tpu.memory_space<smem>>
    %1241 = vector.broadcast %1240 : f32 to vector<1x256xf32>
    %1242 = arith.mulf %1241, %1227 : vector<1x256xf32>
    %1243 = arith.addf %1224, %1242 : vector<1x256xf32>
    %c241_i32_301 = arith.constant 241 : i32
    %1244 = tpu.dynamic_rotate %739 by %c241_i32_301 dim 1 : vector<1x256xf32>, i32 -> vector<1x256xf32>
    %c6_302 = arith.constant 6 : index
    %c0_303 = arith.constant 0 : index
    %1245 = vector.load %arg4[%c6_302, %c0_303] : memref<9x256xf32, #tpu.memory_space<vmem>>, vector<1x256xf32>
    %1246 = arith.mulf %1244, %1245 : vector<1x256xf32>
    %c24_304 = arith.constant 24 : index
    %1247 = memref.load %arg6[%c24_304] : memref<144xf32, #tpu.memory_space<smem>>
    %1248 = vector.broadcast %1247 : f32 to vector<1x256xf32>
    %1249 = arith.mulf %1248, %1246 : vector<1x256xf32>
    %1250 = arith.addf %1231, %1249 : vector<1x256xf32>
    %c60_305 = arith.constant 60 : index
    %1251 = memref.load %arg6[%c60_305] : memref<144xf32, #tpu.memory_space<smem>>
    %1252 = vector.broadcast %1251 : f32 to vector<1x256xf32>
    %1253 = arith.mulf %1252, %1246 : vector<1x256xf32>
    %1254 = arith.addf %1235, %1253 : vector<1x256xf32>
    %c96_306 = arith.constant 96 : index
    %1255 = memref.load %arg6[%c96_306] : memref<144xf32, #tpu.memory_space<smem>>
    %1256 = vector.broadcast %1255 : f32 to vector<1x256xf32>
    %1257 = arith.mulf %1256, %1246 : vector<1x256xf32>
    %1258 = arith.addf %1239, %1257 : vector<1x256xf32>
    %c132_307 = arith.constant 132 : index
    %1259 = memref.load %arg6[%c132_307] : memref<144xf32, #tpu.memory_space<smem>>
    %1260 = vector.broadcast %1259 : f32 to vector<1x256xf32>
    %1261 = arith.mulf %1260, %1246 : vector<1x256xf32>
    %1262 = arith.addf %1243, %1261 : vector<1x256xf32>
    %c241_i32_308 = arith.constant 241 : i32
    %1263 = tpu.dynamic_rotate %757 by %c241_i32_308 dim 1 : vector<1x256xf32>, i32 -> vector<1x256xf32>
    %c6_309 = arith.constant 6 : index
    %c0_310 = arith.constant 0 : index
    %1264 = vector.load %arg4[%c6_309, %c0_310] : memref<9x256xf32, #tpu.memory_space<vmem>>, vector<1x256xf32>
    %1265 = arith.mulf %1263, %1264 : vector<1x256xf32>
    %c33_311 = arith.constant 33 : index
    %1266 = memref.load %arg6[%c33_311] : memref<144xf32, #tpu.memory_space<smem>>
    %1267 = vector.broadcast %1266 : f32 to vector<1x256xf32>
    %1268 = arith.mulf %1267, %1265 : vector<1x256xf32>
    %1269 = arith.addf %1250, %1268 : vector<1x256xf32>
    %c69_312 = arith.constant 69 : index
    %1270 = memref.load %arg6[%c69_312] : memref<144xf32, #tpu.memory_space<smem>>
    %1271 = vector.broadcast %1270 : f32 to vector<1x256xf32>
    %1272 = arith.mulf %1271, %1265 : vector<1x256xf32>
    %1273 = arith.addf %1254, %1272 : vector<1x256xf32>
    %c105_313 = arith.constant 105 : index
    %1274 = memref.load %arg6[%c105_313] : memref<144xf32, #tpu.memory_space<smem>>
    %1275 = vector.broadcast %1274 : f32 to vector<1x256xf32>
    %1276 = arith.mulf %1275, %1265 : vector<1x256xf32>
    %1277 = arith.addf %1258, %1276 : vector<1x256xf32>
    %c141_314 = arith.constant 141 : index
    %1278 = memref.load %arg6[%c141_314] : memref<144xf32, #tpu.memory_space<smem>>
    %1279 = vector.broadcast %1278 : f32 to vector<1x256xf32>
    %1280 = arith.mulf %1279, %1265 : vector<1x256xf32>
    %1281 = arith.addf %1262, %1280 : vector<1x256xf32>
    %c240_i32_315 = arith.constant 240 : i32
    %1282 = tpu.dynamic_rotate %703 by %c240_i32_315 dim 1 : vector<1x256xf32>, i32 -> vector<1x256xf32>
    %c7_316 = arith.constant 7 : index
    %c0_317 = arith.constant 0 : index
    %1283 = vector.load %arg4[%c7_316, %c0_317] : memref<9x256xf32, #tpu.memory_space<vmem>>, vector<1x256xf32>
    %1284 = arith.mulf %1282, %1283 : vector<1x256xf32>
    %c7_318 = arith.constant 7 : index
    %1285 = memref.load %arg6[%c7_318] : memref<144xf32, #tpu.memory_space<smem>>
    %1286 = vector.broadcast %1285 : f32 to vector<1x256xf32>
    %1287 = arith.mulf %1286, %1284 : vector<1x256xf32>
    %1288 = arith.addf %1269, %1287 : vector<1x256xf32>
    %c43_319 = arith.constant 43 : index
    %1289 = memref.load %arg6[%c43_319] : memref<144xf32, #tpu.memory_space<smem>>
    %1290 = vector.broadcast %1289 : f32 to vector<1x256xf32>
    %1291 = arith.mulf %1290, %1284 : vector<1x256xf32>
    %1292 = arith.addf %1273, %1291 : vector<1x256xf32>
    %c79_320 = arith.constant 79 : index
    %1293 = memref.load %arg6[%c79_320] : memref<144xf32, #tpu.memory_space<smem>>
    %1294 = vector.broadcast %1293 : f32 to vector<1x256xf32>
    %1295 = arith.mulf %1294, %1284 : vector<1x256xf32>
    %1296 = arith.addf %1277, %1295 : vector<1x256xf32>
    %c115_321 = arith.constant 115 : index
    %1297 = memref.load %arg6[%c115_321] : memref<144xf32, #tpu.memory_space<smem>>
    %1298 = vector.broadcast %1297 : f32 to vector<1x256xf32>
    %1299 = arith.mulf %1298, %1284 : vector<1x256xf32>
    %1300 = arith.addf %1281, %1299 : vector<1x256xf32>
    %c240_i32_322 = arith.constant 240 : i32
    %1301 = tpu.dynamic_rotate %721 by %c240_i32_322 dim 1 : vector<1x256xf32>, i32 -> vector<1x256xf32>
    %c7_323 = arith.constant 7 : index
    %c0_324 = arith.constant 0 : index
    %1302 = vector.load %arg4[%c7_323, %c0_324] : memref<9x256xf32, #tpu.memory_space<vmem>>, vector<1x256xf32>
    %1303 = arith.mulf %1301, %1302 : vector<1x256xf32>
    %c16_325 = arith.constant 16 : index
    %1304 = memref.load %arg6[%c16_325] : memref<144xf32, #tpu.memory_space<smem>>
    %1305 = vector.broadcast %1304 : f32 to vector<1x256xf32>
    %1306 = arith.mulf %1305, %1303 : vector<1x256xf32>
    %1307 = arith.addf %1288, %1306 : vector<1x256xf32>
    %c52_326 = arith.constant 52 : index
    %1308 = memref.load %arg6[%c52_326] : memref<144xf32, #tpu.memory_space<smem>>
    %1309 = vector.broadcast %1308 : f32 to vector<1x256xf32>
    %1310 = arith.mulf %1309, %1303 : vector<1x256xf32>
    %1311 = arith.addf %1292, %1310 : vector<1x256xf32>
    %c88_327 = arith.constant 88 : index
    %1312 = memref.load %arg6[%c88_327] : memref<144xf32, #tpu.memory_space<smem>>
    %1313 = vector.broadcast %1312 : f32 to vector<1x256xf32>
    %1314 = arith.mulf %1313, %1303 : vector<1x256xf32>
    %1315 = arith.addf %1296, %1314 : vector<1x256xf32>
    %c124_328 = arith.constant 124 : index
    %1316 = memref.load %arg6[%c124_328] : memref<144xf32, #tpu.memory_space<smem>>
    %1317 = vector.broadcast %1316 : f32 to vector<1x256xf32>
    %1318 = arith.mulf %1317, %1303 : vector<1x256xf32>
    %1319 = arith.addf %1300, %1318 : vector<1x256xf32>
    %c240_i32_329 = arith.constant 240 : i32
    %1320 = tpu.dynamic_rotate %739 by %c240_i32_329 dim 1 : vector<1x256xf32>, i32 -> vector<1x256xf32>
    %c7_330 = arith.constant 7 : index
    %c0_331 = arith.constant 0 : index
    %1321 = vector.load %arg4[%c7_330, %c0_331] : memref<9x256xf32, #tpu.memory_space<vmem>>, vector<1x256xf32>
    %1322 = arith.mulf %1320, %1321 : vector<1x256xf32>
    %c25_332 = arith.constant 25 : index
    %1323 = memref.load %arg6[%c25_332] : memref<144xf32, #tpu.memory_space<smem>>
    %1324 = vector.broadcast %1323 : f32 to vector<1x256xf32>
    %1325 = arith.mulf %1324, %1322 : vector<1x256xf32>
    %1326 = arith.addf %1307, %1325 : vector<1x256xf32>
    %c61_333 = arith.constant 61 : index
    %1327 = memref.load %arg6[%c61_333] : memref<144xf32, #tpu.memory_space<smem>>
    %1328 = vector.broadcast %1327 : f32 to vector<1x256xf32>
    %1329 = arith.mulf %1328, %1322 : vector<1x256xf32>
    %1330 = arith.addf %1311, %1329 : vector<1x256xf32>
    %c97_334 = arith.constant 97 : index
    %1331 = memref.load %arg6[%c97_334] : memref<144xf32, #tpu.memory_space<smem>>
    %1332 = vector.broadcast %1331 : f32 to vector<1x256xf32>
    %1333 = arith.mulf %1332, %1322 : vector<1x256xf32>
    %1334 = arith.addf %1315, %1333 : vector<1x256xf32>
    %c133_335 = arith.constant 133 : index
    %1335 = memref.load %arg6[%c133_335] : memref<144xf32, #tpu.memory_space<smem>>
    %1336 = vector.broadcast %1335 : f32 to vector<1x256xf32>
    %1337 = arith.mulf %1336, %1322 : vector<1x256xf32>
    %1338 = arith.addf %1319, %1337 : vector<1x256xf32>
    %c240_i32_336 = arith.constant 240 : i32
    %1339 = tpu.dynamic_rotate %757 by %c240_i32_336 dim 1 : vector<1x256xf32>, i32 -> vector<1x256xf32>
    %c7_337 = arith.constant 7 : index
    %c0_338 = arith.constant 0 : index
    %1340 = vector.load %arg4[%c7_337, %c0_338] : memref<9x256xf32, #tpu.memory_space<vmem>>, vector<1x256xf32>
    %1341 = arith.mulf %1339, %1340 : vector<1x256xf32>
    %c34_339 = arith.constant 34 : index
    %1342 = memref.load %arg6[%c34_339] : memref<144xf32, #tpu.memory_space<smem>>
    %1343 = vector.broadcast %1342 : f32 to vector<1x256xf32>
    %1344 = arith.mulf %1343, %1341 : vector<1x256xf32>
    %1345 = arith.addf %1326, %1344 : vector<1x256xf32>
    %c70_340 = arith.constant 70 : index
    %1346 = memref.load %arg6[%c70_340] : memref<144xf32, #tpu.memory_space<smem>>
    %1347 = vector.broadcast %1346 : f32 to vector<1x256xf32>
    %1348 = arith.mulf %1347, %1341 : vector<1x256xf32>
    %1349 = arith.addf %1330, %1348 : vector<1x256xf32>
    %c106_341 = arith.constant 106 : index
    %1350 = memref.load %arg6[%c106_341] : memref<144xf32, #tpu.memory_space<smem>>
    %1351 = vector.broadcast %1350 : f32 to vector<1x256xf32>
    %1352 = arith.mulf %1351, %1341 : vector<1x256xf32>
    %1353 = arith.addf %1334, %1352 : vector<1x256xf32>
    %c142_342 = arith.constant 142 : index
    %1354 = memref.load %arg6[%c142_342] : memref<144xf32, #tpu.memory_space<smem>>
    %1355 = vector.broadcast %1354 : f32 to vector<1x256xf32>
    %1356 = arith.mulf %1355, %1341 : vector<1x256xf32>
    %1357 = arith.addf %1338, %1356 : vector<1x256xf32>
    %c239_i32_343 = arith.constant 239 : i32
    %1358 = tpu.dynamic_rotate %703 by %c239_i32_343 dim 1 : vector<1x256xf32>, i32 -> vector<1x256xf32>
    %c8_344 = arith.constant 8 : index
    %c0_345 = arith.constant 0 : index
    %1359 = vector.load %arg4[%c8_344, %c0_345] : memref<9x256xf32, #tpu.memory_space<vmem>>, vector<1x256xf32>
    %1360 = arith.mulf %1358, %1359 : vector<1x256xf32>
    %c8_346 = arith.constant 8 : index
    %1361 = memref.load %arg6[%c8_346] : memref<144xf32, #tpu.memory_space<smem>>
    %1362 = vector.broadcast %1361 : f32 to vector<1x256xf32>
    %1363 = arith.mulf %1362, %1360 : vector<1x256xf32>
    %1364 = arith.addf %1345, %1363 : vector<1x256xf32>
    %c44_347 = arith.constant 44 : index
    %1365 = memref.load %arg6[%c44_347] : memref<144xf32, #tpu.memory_space<smem>>
    %1366 = vector.broadcast %1365 : f32 to vector<1x256xf32>
    %1367 = arith.mulf %1366, %1360 : vector<1x256xf32>
    %1368 = arith.addf %1349, %1367 : vector<1x256xf32>
    %c80_348 = arith.constant 80 : index
    %1369 = memref.load %arg6[%c80_348] : memref<144xf32, #tpu.memory_space<smem>>
    %1370 = vector.broadcast %1369 : f32 to vector<1x256xf32>
    %1371 = arith.mulf %1370, %1360 : vector<1x256xf32>
    %1372 = arith.addf %1353, %1371 : vector<1x256xf32>
    %c116_349 = arith.constant 116 : index
    %1373 = memref.load %arg6[%c116_349] : memref<144xf32, #tpu.memory_space<smem>>
    %1374 = vector.broadcast %1373 : f32 to vector<1x256xf32>
    %1375 = arith.mulf %1374, %1360 : vector<1x256xf32>
    %1376 = arith.addf %1357, %1375 : vector<1x256xf32>
    %c239_i32_350 = arith.constant 239 : i32
    %1377 = tpu.dynamic_rotate %721 by %c239_i32_350 dim 1 : vector<1x256xf32>, i32 -> vector<1x256xf32>
    %c8_351 = arith.constant 8 : index
    %c0_352 = arith.constant 0 : index
    %1378 = vector.load %arg4[%c8_351, %c0_352] : memref<9x256xf32, #tpu.memory_space<vmem>>, vector<1x256xf32>
    %1379 = arith.mulf %1377, %1378 : vector<1x256xf32>
    %c17_353 = arith.constant 17 : index
    %1380 = memref.load %arg6[%c17_353] : memref<144xf32, #tpu.memory_space<smem>>
    %1381 = vector.broadcast %1380 : f32 to vector<1x256xf32>
    %1382 = arith.mulf %1381, %1379 : vector<1x256xf32>
    %1383 = arith.addf %1364, %1382 : vector<1x256xf32>
    %c53_354 = arith.constant 53 : index
    %1384 = memref.load %arg6[%c53_354] : memref<144xf32, #tpu.memory_space<smem>>
    %1385 = vector.broadcast %1384 : f32 to vector<1x256xf32>
    %1386 = arith.mulf %1385, %1379 : vector<1x256xf32>
    %1387 = arith.addf %1368, %1386 : vector<1x256xf32>
    %c89_355 = arith.constant 89 : index
    %1388 = memref.load %arg6[%c89_355] : memref<144xf32, #tpu.memory_space<smem>>
    %1389 = vector.broadcast %1388 : f32 to vector<1x256xf32>
    %1390 = arith.mulf %1389, %1379 : vector<1x256xf32>
    %1391 = arith.addf %1372, %1390 : vector<1x256xf32>
    %c125_356 = arith.constant 125 : index
    %1392 = memref.load %arg6[%c125_356] : memref<144xf32, #tpu.memory_space<smem>>
    %1393 = vector.broadcast %1392 : f32 to vector<1x256xf32>
    %1394 = arith.mulf %1393, %1379 : vector<1x256xf32>
    %1395 = arith.addf %1376, %1394 : vector<1x256xf32>
    %c239_i32_357 = arith.constant 239 : i32
    %1396 = tpu.dynamic_rotate %739 by %c239_i32_357 dim 1 : vector<1x256xf32>, i32 -> vector<1x256xf32>
    %c8_358 = arith.constant 8 : index
    %c0_359 = arith.constant 0 : index
    %1397 = vector.load %arg4[%c8_358, %c0_359] : memref<9x256xf32, #tpu.memory_space<vmem>>, vector<1x256xf32>
    %1398 = arith.mulf %1396, %1397 : vector<1x256xf32>
    %c26_360 = arith.constant 26 : index
    %1399 = memref.load %arg6[%c26_360] : memref<144xf32, #tpu.memory_space<smem>>
    %1400 = vector.broadcast %1399 : f32 to vector<1x256xf32>
    %1401 = arith.mulf %1400, %1398 : vector<1x256xf32>
    %1402 = arith.addf %1383, %1401 : vector<1x256xf32>
    %c62_361 = arith.constant 62 : index
    %1403 = memref.load %arg6[%c62_361] : memref<144xf32, #tpu.memory_space<smem>>
    %1404 = vector.broadcast %1403 : f32 to vector<1x256xf32>
    %1405 = arith.mulf %1404, %1398 : vector<1x256xf32>
    %1406 = arith.addf %1387, %1405 : vector<1x256xf32>
    %c98_362 = arith.constant 98 : index
    %1407 = memref.load %arg6[%c98_362] : memref<144xf32, #tpu.memory_space<smem>>
    %1408 = vector.broadcast %1407 : f32 to vector<1x256xf32>
    %1409 = arith.mulf %1408, %1398 : vector<1x256xf32>
    %1410 = arith.addf %1391, %1409 : vector<1x256xf32>
    %c134_363 = arith.constant 134 : index
    %1411 = memref.load %arg6[%c134_363] : memref<144xf32, #tpu.memory_space<smem>>
    %1412 = vector.broadcast %1411 : f32 to vector<1x256xf32>
    %1413 = arith.mulf %1412, %1398 : vector<1x256xf32>
    %1414 = arith.addf %1395, %1413 : vector<1x256xf32>
    %c239_i32_364 = arith.constant 239 : i32
    %1415 = tpu.dynamic_rotate %757 by %c239_i32_364 dim 1 : vector<1x256xf32>, i32 -> vector<1x256xf32>
    %c8_365 = arith.constant 8 : index
    %c0_366 = arith.constant 0 : index
    %1416 = vector.load %arg4[%c8_365, %c0_366] : memref<9x256xf32, #tpu.memory_space<vmem>>, vector<1x256xf32>
    %1417 = arith.mulf %1415, %1416 : vector<1x256xf32>
    %c35_367 = arith.constant 35 : index
    %1418 = memref.load %arg6[%c35_367] : memref<144xf32, #tpu.memory_space<smem>>
    %1419 = vector.broadcast %1418 : f32 to vector<1x256xf32>
    %1420 = arith.mulf %1419, %1417 : vector<1x256xf32>
    %1421 = arith.addf %1402, %1420 : vector<1x256xf32>
    %c71_368 = arith.constant 71 : index
    %1422 = memref.load %arg6[%c71_368] : memref<144xf32, #tpu.memory_space<smem>>
    %1423 = vector.broadcast %1422 : f32 to vector<1x256xf32>
    %1424 = arith.mulf %1423, %1417 : vector<1x256xf32>
    %1425 = arith.addf %1406, %1424 : vector<1x256xf32>
    %c107_369 = arith.constant 107 : index
    %1426 = memref.load %arg6[%c107_369] : memref<144xf32, #tpu.memory_space<smem>>
    %1427 = vector.broadcast %1426 : f32 to vector<1x256xf32>
    %1428 = arith.mulf %1427, %1417 : vector<1x256xf32>
    %1429 = arith.addf %1410, %1428 : vector<1x256xf32>
    %c143_370 = arith.constant 143 : index
    %1430 = memref.load %arg6[%c143_370] : memref<144xf32, #tpu.memory_space<smem>>
    %1431 = vector.broadcast %1430 : f32 to vector<1x256xf32>
    %1432 = arith.mulf %1431, %1417 : vector<1x256xf32>
    %1433 = arith.addf %1414, %1432 : vector<1x256xf32>
    %cst_371 = arith.constant dense<0.000000e+00> : vector<1xf32>
    %1434 = vector.multi_reduction <add>, %1421, %cst_371 [1] : vector<1x256xf32> to vector<1xf32>
    %1435 = vector.shape_cast %1434 : vector<1xf32> to vector<1x1xf32>
    %cst_372 = arith.constant 3.906250e-03 : f32
    %1436 = vector.broadcast %cst_372 : f32 to vector<1x1xf32>
    %1437 = arith.mulf %1435, %1436 : vector<1x1xf32>
    %1438 = vector.broadcast %1437 : vector<1x1xf32> to vector<1x256xf32>
    %1439 = arith.subf %1421, %1438 : vector<1x256xf32>
    %1440 = arith.mulf %1439, %1439 : vector<1x256xf32>
    %cst_373 = arith.constant dense<0.000000e+00> : vector<1xf32>
    %1441 = vector.multi_reduction <add>, %1440, %cst_373 [1] : vector<1x256xf32> to vector<1xf32>
    %1442 = vector.shape_cast %1441 : vector<1xf32> to vector<1x1xf32>
    %cst_374 = arith.constant 3.906250e-03 : f32
    %1443 = vector.broadcast %cst_374 : f32 to vector<1x1xf32>
    %1444 = arith.mulf %1442, %1443 : vector<1x1xf32>
    %cst_375 = arith.constant 9.99999974E-6 : f32
    %1445 = vector.broadcast %cst_375 : f32 to vector<1x1xf32>
    %1446 = arith.addf %1444, %1445 : vector<1x1xf32>
    %1447 = math.rsqrt %1446 : vector<1x1xf32>
    %1448 = vector.broadcast %1447 : vector<1x1xf32> to vector<1x256xf32>
    %1449 = arith.mulf %1439, %1448 : vector<1x256xf32>
    %cst_376 = arith.constant 0.000000e+00 : f32
    %1450 = vector.broadcast %cst_376 : f32 to vector<1x256xf32>
    %1451 = arith.maximumf %1449, %1450 : vector<1x256xf32>
    %cst_377 = arith.constant dense<0.000000e+00> : vector<1xf32>
    %1452 = vector.multi_reduction <add>, %1425, %cst_377 [1] : vector<1x256xf32> to vector<1xf32>
    %1453 = vector.shape_cast %1452 : vector<1xf32> to vector<1x1xf32>
    %cst_378 = arith.constant 3.906250e-03 : f32
    %1454 = vector.broadcast %cst_378 : f32 to vector<1x1xf32>
    %1455 = arith.mulf %1453, %1454 : vector<1x1xf32>
    %1456 = vector.broadcast %1455 : vector<1x1xf32> to vector<1x256xf32>
    %1457 = arith.subf %1425, %1456 : vector<1x256xf32>
    %1458 = arith.mulf %1457, %1457 : vector<1x256xf32>
    %cst_379 = arith.constant dense<0.000000e+00> : vector<1xf32>
    %1459 = vector.multi_reduction <add>, %1458, %cst_379 [1] : vector<1x256xf32> to vector<1xf32>
    %1460 = vector.shape_cast %1459 : vector<1xf32> to vector<1x1xf32>
    %cst_380 = arith.constant 3.906250e-03 : f32
    %1461 = vector.broadcast %cst_380 : f32 to vector<1x1xf32>
    %1462 = arith.mulf %1460, %1461 : vector<1x1xf32>
    %cst_381 = arith.constant 9.99999974E-6 : f32
    %1463 = vector.broadcast %cst_381 : f32 to vector<1x1xf32>
    %1464 = arith.addf %1462, %1463 : vector<1x1xf32>
    %1465 = math.rsqrt %1464 : vector<1x1xf32>
    %1466 = vector.broadcast %1465 : vector<1x1xf32> to vector<1x256xf32>
    %1467 = arith.mulf %1457, %1466 : vector<1x256xf32>
    %cst_382 = arith.constant 0.000000e+00 : f32
    %1468 = vector.broadcast %cst_382 : f32 to vector<1x256xf32>
    %1469 = arith.maximumf %1467, %1468 : vector<1x256xf32>
    %cst_383 = arith.constant dense<0.000000e+00> : vector<1xf32>
    %1470 = vector.multi_reduction <add>, %1429, %cst_383 [1] : vector<1x256xf32> to vector<1xf32>
    %1471 = vector.shape_cast %1470 : vector<1xf32> to vector<1x1xf32>
    %cst_384 = arith.constant 3.906250e-03 : f32
    %1472 = vector.broadcast %cst_384 : f32 to vector<1x1xf32>
    %1473 = arith.mulf %1471, %1472 : vector<1x1xf32>
    %1474 = vector.broadcast %1473 : vector<1x1xf32> to vector<1x256xf32>
    %1475 = arith.subf %1429, %1474 : vector<1x256xf32>
    %1476 = arith.mulf %1475, %1475 : vector<1x256xf32>
    %cst_385 = arith.constant dense<0.000000e+00> : vector<1xf32>
    %1477 = vector.multi_reduction <add>, %1476, %cst_385 [1] : vector<1x256xf32> to vector<1xf32>
    %1478 = vector.shape_cast %1477 : vector<1xf32> to vector<1x1xf32>
    %cst_386 = arith.constant 3.906250e-03 : f32
    %1479 = vector.broadcast %cst_386 : f32 to vector<1x1xf32>
    %1480 = arith.mulf %1478, %1479 : vector<1x1xf32>
    %cst_387 = arith.constant 9.99999974E-6 : f32
    %1481 = vector.broadcast %cst_387 : f32 to vector<1x1xf32>
    %1482 = arith.addf %1480, %1481 : vector<1x1xf32>
    %1483 = math.rsqrt %1482 : vector<1x1xf32>
    %1484 = vector.broadcast %1483 : vector<1x1xf32> to vector<1x256xf32>
    %1485 = arith.mulf %1475, %1484 : vector<1x256xf32>
    %cst_388 = arith.constant 0.000000e+00 : f32
    %1486 = vector.broadcast %cst_388 : f32 to vector<1x256xf32>
    %1487 = arith.maximumf %1485, %1486 : vector<1x256xf32>
    %cst_389 = arith.constant dense<0.000000e+00> : vector<1xf32>
    %1488 = vector.multi_reduction <add>, %1433, %cst_389 [1] : vector<1x256xf32> to vector<1xf32>
    %1489 = vector.shape_cast %1488 : vector<1xf32> to vector<1x1xf32>
    %cst_390 = arith.constant 3.906250e-03 : f32
    %1490 = vector.broadcast %cst_390 : f32 to vector<1x1xf32>
    %1491 = arith.mulf %1489, %1490 : vector<1x1xf32>
    %1492 = vector.broadcast %1491 : vector<1x1xf32> to vector<1x256xf32>
    %1493 = arith.subf %1433, %1492 : vector<1x256xf32>
    %1494 = arith.mulf %1493, %1493 : vector<1x256xf32>
    %cst_391 = arith.constant dense<0.000000e+00> : vector<1xf32>
    %1495 = vector.multi_reduction <add>, %1494, %cst_391 [1] : vector<1x256xf32> to vector<1xf32>
    %1496 = vector.shape_cast %1495 : vector<1xf32> to vector<1x1xf32>
    %cst_392 = arith.constant 3.906250e-03 : f32
    %1497 = vector.broadcast %cst_392 : f32 to vector<1x1xf32>
    %1498 = arith.mulf %1496, %1497 : vector<1x1xf32>
    %cst_393 = arith.constant 9.99999974E-6 : f32
    %1499 = vector.broadcast %cst_393 : f32 to vector<1x1xf32>
    %1500 = arith.addf %1498, %1499 : vector<1x1xf32>
    %1501 = math.rsqrt %1500 : vector<1x1xf32>
    %1502 = vector.broadcast %1501 : vector<1x1xf32> to vector<1x256xf32>
    %1503 = arith.mulf %1493, %1502 : vector<1x256xf32>
    %cst_394 = arith.constant 0.000000e+00 : f32
    %1504 = vector.broadcast %cst_394 : f32 to vector<1x256xf32>
    %1505 = arith.maximumf %1503, %1504 : vector<1x256xf32>
    %c0_395 = arith.constant 0 : index
    %c0_396 = arith.constant 0 : index
    %c0_397 = arith.constant 0 : index
    %1506 = vector.load %arg7[%c0_395, %c0_396, %c0_397] : memref<1x4x256xf32, #tpu.memory_space<vmem>>, vector<1x1x256xf32>
    %1507 = vector.shape_cast %1506 : vector<1x1x256xf32> to vector<1x256xf32>
    %1508 = vector.shape_cast %1451 : vector<1x256xf32> to vector<1x1x256xf32>
    tpu.vector_store %arg7[%c0_395, %c0_396, %c0_397], %1508 {strides = array<i32>} : memref<1x4x256xf32, #tpu.memory_space<vmem>>, vector<1x1x256xf32>,
    %c0_398 = arith.constant 0 : index
    %c1_399 = arith.constant 1 : index
    %c0_400 = arith.constant 0 : index
    %1509 = vector.load %arg7[%c0_398, %c1_399, %c0_400] : memref<1x4x256xf32, #tpu.memory_space<vmem>>, vector<1x1x256xf32>
    %1510 = vector.shape_cast %1509 : vector<1x1x256xf32> to vector<1x256xf32>
    %1511 = vector.shape_cast %1469 : vector<1x256xf32> to vector<1x1x256xf32>
    tpu.vector_store %arg7[%c0_398, %c1_399, %c0_400], %1511 {strides = array<i32>} : memref<1x4x256xf32, #tpu.memory_space<vmem>>, vector<1x1x256xf32>,
    %c0_401 = arith.constant 0 : index
    %c2_402 = arith.constant 2 : index
    %c0_403 = arith.constant 0 : index
    %1512 = vector.load %arg7[%c0_401, %c2_402, %c0_403] : memref<1x4x256xf32, #tpu.memory_space<vmem>>, vector<1x1x256xf32>
    %1513 = vector.shape_cast %1512 : vector<1x1x256xf32> to vector<1x256xf32>
    %1514 = vector.shape_cast %1487 : vector<1x256xf32> to vector<1x1x256xf32>
    tpu.vector_store %arg7[%c0_401, %c2_402, %c0_403], %1514 {strides = array<i32>} : memref<1x4x256xf32, #tpu.memory_space<vmem>>, vector<1x1x256xf32>,
    %c0_404 = arith.constant 0 : index
    %c3_405 = arith.constant 3 : index
    %c0_406 = arith.constant 0 : index
    %1515 = vector.load %arg7[%c0_404, %c3_405, %c0_406] : memref<1x4x256xf32, #tpu.memory_space<vmem>>, vector<1x1x256xf32>
    %1516 = vector.shape_cast %1515 : vector<1x1x256xf32> to vector<1x256xf32>
    %1517 = vector.shape_cast %1505 : vector<1x256xf32> to vector<1x1x256xf32>
    tpu.vector_store %arg7[%c0_404, %c3_405, %c0_406], %1517 {strides = array<i32>} : memref<1x4x256xf32, #tpu.memory_space<vmem>>, vector<1x1x256xf32>,
    return
  }
  func.func @transform_0(%arg0: i32) -> (i32, i32, i32) {
    %c0_i32 = arith.constant 0 : i32
    %c0_i32_0 = arith.constant 0 : i32
    %c0_i32_1 = arith.constant 0 : i32
    return %arg0, %c0_i32, %c0_i32_0 : i32, i32, i32
  }
  func.func @transform_1(%arg0: i32) -> (i32, i32, i32) {
    %c0_i32 = arith.constant 0 : i32
    %c0_i32_0 = arith.constant 0 : i32
    %c0_i32_1 = arith.constant 0 : i32
    return %arg0, %c0_i32, %c0_i32_0 : i32, i32, i32
  }
  func.func @transform_2(%arg0: i32) -> (i32, i32) {
    %c0_i32 = arith.constant 0 : i32
    %c0_i32_0 = arith.constant 0 : i32
    %c0_i32_1 = arith.constant 0 : i32
    return %c0_i32, %c0_i32_0 : i32, i32
  }
  func.func @transform_3(%arg0: i32) -> (i32, i32) {
    %c0_i32 = arith.constant 0 : i32
    %c0_i32_0 = arith.constant 0 : i32
    %c0_i32_1 = arith.constant 0 : i32
    return %c0_i32, %c0_i32_0 : i32, i32
  }
  func.func @transform_4(%arg0: i32) -> i32 {
    %c0_i32 = arith.constant 0 : i32
    %c0_i32_0 = arith.constant 0 : i32
    return %c0_i32 : i32
  }
  func.func @transform_5(%arg0: i32) -> i32 {
    %c0_i32 = arith.constant 0 : i32
    %c0_i32_0 = arith.constant 0 : i32
    return %c0_i32 : i32
  }
  func.func @transform_6(%arg0: i32) -> (i32, i32, i32) {
    %c0_i32 = arith.constant 0 : i32
    %c0_i32_0 = arith.constant 0 : i32
    %c0_i32_1 = arith.constant 0 : i32
    return %arg0, %c0_i32, %c0_i32_0 : i32, i32, i32
  }
}

</mosaic_0001>

<llo_original>
// kernel: tpu_custom_call.1
$region0: #{tpu_custom_call.1}
  #allocation0 [shape = 'u32[]', space=smem, size = 0x4, offset = 0x4, fixed_abs, tag = 'smem constant byte address 0x4 - core index']
  #allocation1 [shape = 'u32[72,128]{1,0:T(1,128)}', space=vmem, size = 0x9000, scoped, tag = 'internal scratch']
  %s0 = inlined_call_operand.hbm [shape: f32[2,2,64], index: 0, kind: input, shape index: {}]
  %s1 = inlined_call_operand.hbm [shape: f32[2,2,256], index: 1, kind: input, shape index: {}]
  %s2 = inlined_call_operand.hbm [shape: f32[64,256], index: 2, kind: input, shape index: {}]
  %s3 = inlined_call_operand.hbm [shape: f32[9,256], index: 3, kind: input, shape index: {}]
  %s4 = inlined_call_operand.vmem [shape: f32[144], index: 4, kind: input, shape index: {}]
  %s5 = inlined_call_operand.vmem [shape: f32[144], index: 5, kind: input, shape index: {}]
  %s6 = inlined_call_operand.hbm [shape: f32[2,4,256], index: 6, kind: output, shape index: {}]
  %s7 = sld [smem:[#allocation0]]
  $region81: #{tpu_custom_call.1} parent=0
    _
  %s9 = ssub.s32 1, %s7
  %s10 = scalar_select 0, %s9, %s7
  $region1: #{tpu_custom_call.1} parent=0
    #allocation2 [shape = 'u8[2048]{0}', space=vmem, size = 0x800, scoped, tag = 'input window, operand 0']
    #allocation3 [shape = 's32[2]{0}', space=sflag, size = 0x8, scoped, tag = 'scoped memory for tpu_custom_call.1']
    #allocation4 [shape = 's32[2]{0}', space=sflag, size = 0x8, scoped, tag = 'scoped memory for tpu_custom_call.1']
    #allocation5 [shape = 's32[2]{0}', space=sflag, size = 0x8, scoped, tag = 'scoped memory for tpu_custom_call.1']
    #allocation6 [shape = 'u8[4096]{0}', space=vmem, size = 0x1000, scoped, tag = 'input window, operand 1']
    #allocation7 [shape = 's32[2]{0}', space=sflag, size = 0x8, scoped, tag = 'scoped memory for tpu_custom_call.1']
    #allocation8 [shape = 'u8[65536]{0}', space=vmem, size = 0x10000, scoped, tag = 'input window, operand 2, single buffered']
    #allocation9 [shape = 'u8[16384]{0}', space=vmem, size = 0x4000, scoped, tag = 'input window, operand 3, single buffered']
    #allocation10 [shape = 's32[1]{0}', space=sflag, size = 0x4, scoped, tag = 'scoped memory for tpu_custom_call.1']
    #allocation11 [shape = 'u8[1024]{0}', space=smem, size = 0x400, scoped, tag = 'input window, operand 4, single buffered']
    #allocation12 [shape = 'u8[1024]{0}', space=smem, size = 0x400, scoped, tag = 'input window, operand 5, single buffered']
    #allocation13 [shape = 's32[1]{0}', space=sflag, size = 0x4, scoped, tag = 'scoped memory for tpu_custom_call.1']
    #allocation14 [shape = 'u8[8192]{0}', space=vmem, size = 0x2000, scoped, tag = 'output window, operand 0']
    %11 = vsyncpa [#allocation3], 0
    %s12 = scalar_lea.sflag [#allocation3], 1
    %13 = vsyncpa %s12, 0
    %14 = vsyncpa [#allocation7], 0
    %s15 = scalar_lea.sflag [#allocation7], 1
    %16 = vsyncpa %s15, 0
    %17 = vsyncpa [#allocation10], 0
    %18 = vsyncpa [#allocation5], 0
    %19 = vsyncpa [#allocation13], 0
    %20 = vsyncpa [#allocation4], 0
    %s21 = scalar_lea.sflag [#allocation4], 1
    %22 = vsyncpa %s21, 0
    loop: start=0, step=1, limit=4
    $region2: #{tpu_custom_call.1} parent=1 // loop_pre_header
      _
    $region3: #{tpu_custom_call.1} parent=1 // loop_header
      %s24 = sphi 0, %s28
      %p25 = scmp.ge.s32.totalorder %s24, 4
      %s34 = sphi 0, %s36
      %s37 = sphi 0, %s34
      %s38 = sphi 0, %s37
      %s54 = sphi 0, %s38
      %s60 = sphi 0, %s62
      %s63 = sphi 0, %s60
      %s64 = sphi 0, %s63
      %s80 = sphi 0, %s64
      %s84 = sphi 0, %s84
      %s86 = sphi 0, %s84
      %s87 = sphi 0, %s86
      %s101 = sphi 0, %s87
      %s105 = sphi 0, %s105
      %s107 = sphi 0, %s105
      %s108 = sphi 0, %s107
      %s122 = sphi 0, %s108
      %s126 = sphi 0, %s126
      %s128 = sphi 0, %s126
      %s129 = sphi 0, %s128
      %s143 = sphi 0, %s129
      %s147 = sphi 0, %s147
      %s149 = sphi 0, %s147
      %s150 = sphi 0, %s149
      %s164 = sphi 0, %s150
      %s170 = sphi 0, %s172
      %s173 = sphi 0, %s170
      %s174 = sphi 0, %s173
      %s190 = sphi 0, %s174
    $region4: #{tpu_custom_call.1} parent=1 // loop_header_branch
      %27 = sbr.rel (%p25) target = $region8
    $region5: #{tpu_custom_call.1} parent=1 // loop_body
      %s29 = ssub.s32 %s24, 1
      %s30 = ssub.s32 %s24, 2
      %s31 = sadd.s32 %s24, 1
      %s32 = ssub.s32 %s24, %s31
      %p33 = scmp.eq.s32.totalorder %s32, 0
      %s35 = sadd.s32 %s34, 1
      %s36 = scalar_select %p33, %s34, %s35
      %p39 = pneg %p33
      %p40 = scmp.eq.s32.totalorder %s24, 1
      %p41 = por %p39, %p40
      %p42 = scmp.ne.s32.totalorder %s34, %s37
      %p43 = scmp.eq.s32.totalorder %s24, 0
      %p44 = por %p42, %p43
      %p45 = scmp.ne.s32.totalorder %s34, %s37
      %p46 = scmp.eq.s32.totalorder %s29, 1
      %p47 = por %p45, %p46
      %p48 = scmp.ne.s32.totalorder %s37, %s38
      %p49 = scmp.eq.s32.totalorder %s29, 0
      %p50 = por %p48, %p49
      %p51 = scmp.ne.s32.totalorder %s37, %s38
      %p52 = scmp.eq.s32.totalorder %s30, 1
      %p53 = por %p51, %p52
      %p55 = scmp.ne.s32.totalorder %s38, %s54
      %p56 = scmp.eq.s32.totalorder %s30, 0
      %p57 = por %p55, %p56
      %s58 = ssub.s32 %s24, %s31
      %p59 = scmp.eq.s32.totalorder %s58, 0
      %s61 = sadd.s32 %s60, 1
      %s62 = scalar_select %p59, %s60, %s61
      %p65 = pneg %p59
      %p66 = scmp.eq.s32.totalorder %s24, 1
      %p67 = por %p65, %p66
      %p68 = scmp.ne.s32.totalorder %s60, %s63
      %p69 = scmp.eq.s32.totalorder %s24, 0
      %p70 = por %p68, %p69
      %p71 = scmp.ne.s32.totalorder %s60, %s63
      %p72 = scmp.eq.s32.totalorder %s29, 1
      %p73 = por %p71, %p72
      %p74 = scmp.ne.s32.totalorder %s63, %s64
      %p75 = scmp.eq.s32.totalorder %s29, 0
      %p76 = por %p74, %p75
      %p77 = scmp.ne.s32.totalorder %s63, %s64
      %p78 = scmp.eq.s32.totalorder %s30, 1
      %p79 = por %p77, %p78
      %p81 = scmp.ne.s32.totalorder %s64, %s80
      %p82 = scmp.eq.s32.totalorder %s30, 0
      %p83 = por %p81, %p82
      %s85 = sadd.s32 %s84, 1
      %p88 = scmp.eq.s32.totalorder %s24, 1
      %p89 = scmp.ne.s32.totalorder %s84, %s86
      %p90 = scmp.eq.s32.totalorder %s24, 0
      %p91 = por %p89, %p90
      %p92 = scmp.ne.s32.totalorder %s84, %s86
      %p93 = scmp.eq.s32.totalorder %s29, 1
      %p94 = por %p92, %p93
      %p95 = scmp.ne.s32.totalorder %s86, %s87
      %p96 = scmp.eq.s32.totalorder %s29, 0
      %p97 = por %p95, %p96
      %p98 = scmp.ne.s32.totalorder %s86, %s87
      %p99 = scmp.eq.s32.totalorder %s30, 1
      %p100 = por %p98, %p99
      %p102 = scmp.ne.s32.totalorder %s87, %s101
      %p103 = scmp.eq.s32.totalorder %s30, 0
      %p104 = por %p102, %p103
      %s106 = sadd.s32 %s105, 1
      %p109 = scmp.eq.s32.totalorder %s24, 1
      %p110 = scmp.ne.s32.totalorder %s105, %s107
      %p111 = scmp.eq.s32.totalorder %s24, 0
      %p112 = por %p110, %p111
      %p113 = scmp.ne.s32.totalorder %s105, %s107
      %p114 = scmp.eq.s32.totalorder %s29, 1
      %p115 = por %p113, %p114
      %p116 = scmp.ne.s32.totalorder %s107, %s108
      %p117 = scmp.eq.s32.totalorder %s29, 0
      %p118 = por %p116, %p117
      %p119 = scmp.ne.s32.totalorder %s107, %s108
      %p120 = scmp.eq.s32.totalorder %s30, 1
      %p121 = por %p119, %p120
      %p123 = scmp.ne.s32.totalorder %s108, %s122
      %p124 = scmp.eq.s32.totalorder %s30, 0
      %p125 = por %p123, %p124
      %s127 = sadd.s32 %s126, 1
      %p130 = scmp.eq.s32.totalorder %s24, 1
      %p131 = scmp.ne.s32.totalorder %s126, %s128
      %p132 = scmp.eq.s32.totalorder %s24, 0
      %p133 = por %p131, %p132
      %p134 = scmp.ne.s32.totalorder %s126, %s128
      %p135 = scmp.eq.s32.totalorder %s29, 1
      %p136 = por %p134, %p135
      %p137 = scmp.ne.s32.totalorder %s128, %s129
      %p138 = scmp.eq.s32.totalorder %s29, 0
      %p139 = por %p137, %p138
      %p140 = scmp.ne.s32.totalorder %s128, %s129
      %p141 = scmp.eq.s32.totalorder %s30, 1
      %p142 = por %p140, %p141
      %p144 = scmp.ne.s32.totalorder %s129, %s143
      %p145 = scmp.eq.s32.totalorder %s30, 0
      %p146 = por %p144, %p145
      %s148 = sadd.s32 %s147, 1
      %p151 = scmp.eq.s32.totalorder %s24, 1
      %p152 = scmp.ne.s32.totalorder %s147, %s149
      %p153 = scmp.eq.s32.totalorder %s24, 0
      %p154 = por %p152, %p153
      %p155 = scmp.ne.s32.totalorder %s147, %s149
      %p156 = scmp.eq.s32.totalorder %s29, 1
      %p157 = por %p155, %p156
      %p158 = scmp.ne.s32.totalorder %s149, %s150
      %p159 = scmp.eq.s32.totalorder %s29, 0
      %p160 = por %p158, %p159
      %p161 = scmp.ne.s32.totalorder %s149, %s150
      %p162 = scmp.eq.s32.totalorder %s30, 1
      %p163 = por %p161, %p162
      %p165 = scmp.ne.s32.totalorder %s150, %s164
      %p166 = scmp.eq.s32.totalorder %s30, 0
      %p167 = por %p165, %p166
      %s168 = ssub.s32 %s24, %s31
      %p169 = scmp.eq.s32.totalorder %s168, 0
      %s171 = sadd.s32 %s170, 1
      %s172 = scalar_select %p169, %s170, %s171
      %p175 = pneg %p169
      %p176 = scmp.eq.s32.totalorder %s24, 1
      %p177 = por %p175, %p176
      %p178 = scmp.ne.s32.totalorder %s170, %s173
      %p179 = scmp.eq.s32.totalorder %s24, 0
      %p180 = por %p178, %p179
      %p181 = scmp.ne.s32.totalorder %s170, %s173
      %p182 = scmp.eq.s32.totalorder %s29, 1
      %p183 = por %p181, %p182
      %p184 = scmp.ne.s32.totalorder %s173, %s174
      %p185 = scmp.eq.s32.totalorder %s29, 0
      %p186 = por %p184, %p185
      %p187 = scmp.ne.s32.totalorder %s173, %s174
      %p188 = scmp.eq.s32.totalorder %s30, 1
      %p189 = por %p187, %p188
      %p191 = scmp.ne.s32.totalorder %s174, %s190
      %p192 = scmp.eq.s32.totalorder %s30, 0
      %p193 = por %p191, %p192
      %p194 = scmp.le.s32.totalorder 1, %s24
      %p195 = scmp.lt.s32.totalorder %s24, 3
      %p196 = pnand %p194, %p195
      %p197 = pneg %p196
      // Predicated region
      $region9: #{tpu_custom_call.1} parent=5 // pred_check
        _
      $region10: #{tpu_custom_call.1} parent=5 // pred_check_branch
        %199 = sbr.rel (%p196) target = $region12
      $region11: #{tpu_custom_call.1} parent=5 // pred_region
        %s200 = ssub.s32 %s24, 1
        // Predicated region
        $region13: #{tpu_custom_call.1} parent=11 // pred_check
          %p201 = pneg %p97
        $region14: #{tpu_custom_call.1} parent=11 // pred_check_branch
          %203 = sbr.rel (%p201) target = $region16
        $region15: #{tpu_custom_call.1} parent=11 // pred_region
          %205 = vsyncadd [#allocation7], 0
          %s206 = sshll.u32 %s2, 4
          %s207 = int_to_ptr.hbm [resolvable:$true] %s206
          %s208 = sshll.u32 [#allocation8], 4
          %s209 = int_to_ptr.vmem [resolvable:$true] %s208
          %214 = dma.hbm_to_vmem [thread:$0]  %s207, 2048, %s209, [#allocation7], 256, 256, 16
        $region16: #{tpu_custom_call.1} parent=11 // pred_fallthru
          _
        // Predicated region
        $region17: #{tpu_custom_call.1} parent=11 // pred_check
          %p215 = pneg %p118
        $region18: #{tpu_custom_call.1} parent=11 // pred_check_branch
          %217 = sbr.rel (%p215) target = $region20
        $region19: #{tpu_custom_call.1} parent=11 // pred_region
          %219 = vsyncadd [#allocation10], 0
          %s220 = sshll.u32 %s3, 4
          %s221 = int_to_ptr.hbm [resolvable:$true] %s220
          %s222 = sshll.u32 [#allocation9], 4
          %s223 = int_to_ptr.vmem [resolvable:$true] %s222
          %228 = dma.hbm_to_vmem [thread:$0]  %s221, 512, %s223, [#allocation10], 256, 256, 16
        $region20: #{tpu_custom_call.1} parent=11 // pred_fallthru
          _
        // Predicated region
        $region21: #{tpu_custom_call.1} parent=11 // pred_check
          %p229 = pneg %p139
        $region22: #{tpu_custom_call.1} parent=11 // pred_check_branch
          %231 = sbr.rel (%p229) target = $region24
        $region23: #{tpu_custom_call.1} parent=11 // pred_region
          %233 = vsyncadd [#allocation5], 0
          %s235 = sshll.u32 %s4, 4
          %s236 = int_to_ptr.vmem [resolvable:$true] %s235
          %238 = dma.vmem_to_smem %s236, 32, [#allocation11], [#allocation5]
        $region24: #{tpu_custom_call.1} parent=11 // pred_fallthru
          _
        // Predicated region
        $region25: #{tpu_custom_call.1} parent=11 // pred_check
          %p239 = pneg %p160
        $region26: #{tpu_custom_call.1} parent=11 // pred_check_branch
          %241 = sbr.rel (%p239) target = $region28
        $region27: #{tpu_custom_call.1} parent=11 // pred_region
          %243 = vsyncadd [#allocation13], 0
          %s245 = sshll.u32 %s5, 4
          %s246 = int_to_ptr.vmem [resolvable:$true] %s245
          %248 = dma.vmem_to_smem %s246, 32, [#allocation12], [#allocation13]
        $region28: #{tpu_custom_call.1} parent=11 // pred_fallthru
          _
      $region12: #{tpu_custom_call.1} parent=5 // pred_fallthru
        _
      %p249 = scmp.lt.s32.totalorder %s24, 2
      // Predicated region
      $region29: #{tpu_custom_call.1} parent=5 // pred_check
        %p250 = pneg %p249
      $region30: #{tpu_custom_call.1} parent=5 // pred_check_branch
        %252 = sbr.rel (%p250) target = $region32
      $region31: #{tpu_custom_call.1} parent=5 // pred_region
        // Predicated region
        $region33: #{tpu_custom_call.1} parent=31 // pred_check
          %p253 = pneg %p44
        $region34: #{tpu_custom_call.1} parent=31 // pred_check_branch
          %255 = sbr.rel (%p253) target = $region36
        $region35: #{tpu_custom_call.1} parent=31 // pred_region
          %s256 = sand.u32 %s34, 1
          %s257 = scalar_lea.sflag [#allocation3], %s256
          %s258 = sand.u32 %s34, 1
          %s259 = smul.addr %s258, 2
          %s260 = scalar_lea.vmem [#allocation2], %s259
          %262 = vsyncadd %s257, 0
          %s263 = smul.addr %s24, 2
          %s264 = scalar_lea.hbm %s0, %s263
          %s266 = sshll.u32 %s264, 4
          %s267 = int_to_ptr.hbm [resolvable:$true] %s266
          %s268 = sshll.u32 %s260, 4
          %s269 = int_to_ptr.vmem [resolvable:$true] %s268
          %271 = dma.hbm_to_vmem [thread:$0]  %s267, 32, %s269, %s257
        $region36: #{tpu_custom_call.1} parent=31 // pred_fallthru
          _
        // Predicated region
        $region37: #{tpu_custom_call.1} parent=31 // pred_check
          %p272 = pneg %p70
        $region38: #{tpu_custom_call.1} parent=31 // pred_check_branch
          %274 = sbr.rel (%p272) target = $region40
        $region39: #{tpu_custom_call.1} parent=31 // pred_region
          %s275 = sand.u32 %s24, 1
          %s276 = scalar_lea.sflag [#allocation7], %s275
          %s277 = sand.u32 %s60, 1
          %s278 = smul.addr %s277, 4
          %s279 = scalar_lea.vmem [#allocation6], %s278
          %281 = vsyncadd %s276, 0
          %s282 = smul.addr %s24, 2
          %s283 = smul.addr %s282, 2
          %s284 = scalar_lea.hbm %s1, %s283
          %s286 = sshll.u32 %s284, 4
          %s287 = int_to_ptr.hbm [resolvable:$true] %s286
          %s288 = sshll.u32 %s279, 4
          %s289 = int_to_ptr.vmem [resolvable:$true] %s288
          %291 = dma.hbm_to_vmem [thread:$0]  %s287, 64, %s289, %s276
        $region40: #{tpu_custom_call.1} parent=31 // pred_fallthru
          _
      $region32: #{tpu_custom_call.1} parent=5 // pred_fallthru
        _
      %p292 = scmp.le.s32.totalorder 1, %s24
      %p293 = scmp.lt.s32.totalorder %s24, 3
      %p294 = pnand %p292, %p293
      %p295 = pneg %p294
      // Predicated region
      $region41: #{tpu_custom_call.1} parent=5 // pred_check
        _
      $region42: #{tpu_custom_call.1} parent=5 // pred_check_branch
        %297 = sbr.rel (%p294) target = $region44
      $region43: #{tpu_custom_call.1} parent=5 // pred_region
        %s298 = ssub.s32 %s24, 1
        %s299 = sand.u32 %s37, 1
        %s300 = scalar_lea.sflag [#allocation3], %s299
        %s301 = sand.u32 %s37, 1
        %s302 = smul.addr %s301, 2
        %s303 = scalar_lea.vmem [#allocation2], %s302
        // Predicated region
        $region45: #{tpu_custom_call.1} parent=43 // pred_check
          %p304 = pneg %p50
        $region46: #{tpu_custom_call.1} parent=43 // pred_check_branch
          %306 = sbr.rel (%p304) target = $region48
        $region47: #{tpu_custom_call.1} parent=43 // pred_region
          %308 = dma.done %s300, 32
        $region48: #{tpu_custom_call.1} parent=43 // pred_fallthru
          _
        %s309 = sand.u32 %s29, 1
        %s310 = scalar_lea.sflag [#allocation7], %s309
        %s311 = sand.u32 %s63, 1
        %s312 = smul.addr %s311, 4
        %s313 = scalar_lea.vmem [#allocation6], %s312
        // Predicated region
        $region49: #{tpu_custom_call.1} parent=43 // pred_check
          %p314 = pneg %p76
        $region50: #{tpu_custom_call.1} parent=43 // pred_check_branch
          %316 = sbr.rel (%p314) target = $region52
        $region51: #{tpu_custom_call.1} parent=43 // pred_region
          %318 = dma.done %s310, 64
        $region52: #{tpu_custom_call.1} parent=43 // pred_fallthru
          _
        // Predicated region
        $region53: #{tpu_custom_call.1} parent=43 // pred_check
          %p319 = pneg %p97
        $region54: #{tpu_custom_call.1} parent=43 // pred_check_branch
          %321 = sbr.rel (%p319) target = $region56
        $region55: #{tpu_custom_call.1} parent=43 // pred_region
          %323 = dma.done [#allocation7], 2048
        $region56: #{tpu_custom_call.1} parent=43 // pred_fallthru
          _
        // Predicated region
        $region57: #{tpu_custom_call.1} parent=43 // pred_check
          %p324 = pneg %p118
        $region58: #{tpu_custom_call.1} parent=43 // pred_check_branch
          %326 = sbr.rel (%p324) target = $region60
        $region59: #{tpu_custom_call.1} parent=43 // pred_region
          %328 = dma.done [#allocation10], 512
        $region60: #{tpu_custom_call.1} parent=43 // pred_fallthru
          _
        // Predicated region
        $region61: #{tpu_custom_call.1} parent=43 // pred_check
          %p329 = pneg %p139
        $region62: #{tpu_custom_call.1} parent=43 // pred_check_branch
          %331 = sbr.rel (%p329) target = $region64
        $region63: #{tpu_custom_call.1} parent=43 // pred_region
          %333 = dma.done [#allocation5], 32
        $region64: #{tpu_custom_call.1} parent=43 // pred_fallthru
          _
        // Predicated region
        $region65: #{tpu_custom_call.1} parent=43 // pred_check
          %p334 = pneg %p160
        $region66: #{tpu_custom_call.1} parent=43 // pred_check_branch
          %336 = sbr.rel (%p334) target = $region68
        $region67: #{tpu_custom_call.1} parent=43 // pred_region
          %338 = dma.done [#allocation13], 32
        $region68: #{tpu_custom_call.1} parent=43 // pred_fallthru
          _
        %339 = sfence
        %s340 = sand.u32 %s37, 1
        %s341 = scalar_lea.sflag [#allocation3], %s340
        %s342 = sand.u32 %s37, 1
        %s343 = smul.addr %s342, 2
        %s344 = scalar_lea.vmem [#allocation2], %s343
        %p345 = pneg %p50
        %p346 = pneg %p47
        %s347 = sand.u32 %s29, 1
        %s348 = scalar_lea.sflag [#allocation7], %s347
        %s349 = sand.u32 %s63, 1
        %s350 = smul.addr %s349, 4
        %s351 = scalar_lea.vmem [#allocation6], %s350
        %p352 = pneg %p76
        %p353 = pneg %p73
        %p354 = pneg %p97
        %p355 = pneg %p94
        %p356 = pneg %p118
        %p357 = pneg %p115
        %p358 = pneg %p139
        %p359 = pneg %p136
        %p360 = pneg %p160
        %p361 = pneg %p157
        %p362 = pneg %p186
        %p363 = pneg %p183
        %s364 = sand.u32 %s173, 1
        %s365 = scalar_lea.sflag [#allocation4], %s364
        %s366 = sand.u32 %s173, 1
        %s367 = smul.addr %s366, 8
        %s368 = scalar_lea.vmem [#allocation14], %s367
        %v369 = vld [vmem:[#allocation8] sm:$0xff]
        %v370 = vld [vmem:[#allocation8 + $0x8] sm:$0xff]
        %v371 = vld [vmem:[#allocation8 + $0x10] sm:$0xff]
        %v372 = vld [vmem:[#allocation8 + $0x18] sm:$0xff]
        %v373 = vld [vmem:[#allocation8 + $0x20] sm:$0xff]
        %v374 = vld [vmem:[#allocation8 + $0x28] sm:$0xff]
        %v375 = vld [vmem:[#allocation8 + $0x30] sm:$0xff]
        %v376 = vld [vmem:[#allocation8 + $0x38] sm:$0xff]
        %v377 = vld [vmem:[#allocation8 + $0x40] sm:$0xff]
        %v378 = vld [vmem:[#allocation8 + $0x48] sm:$0xff]
        %v379 = vld [vmem:[#allocation8 + $0x50] sm:$0xff]
        %v380 = vld [vmem:[#allocation8 + $0x58] sm:$0xff]
        %v381 = vld [vmem:[#allocation8 + $0x60] sm:$0xff]
        %v382 = vld [vmem:[#allocation8 + $0x68] sm:$0xff]
        %v383 = vld [vmem:[#allocation8 + $0x70] sm:$0xff]
        %v384 = vld [vmem:[#allocation8 + $0x78] sm:$0xff]
        %v385 = vld [vmem:[%s303] sm:$0x3]
        %vm386 = vcmask 523264
        %v388 = vsel %vm386, %v385, 0
        %390 = vmatpush.msra.mxu0 0.0
        %391 = vmatpush.msra.mxu0 0.0
        %392 = vmatpush.msra.mxu0 0.0
        %393 = vmatpush.msra.mxu0 0.0
        %394 = vmatpush.msra.mxu0 0.0
        %395 = vmatpush.msra.mxu0 0.0
        %396 = vmatpush.msra.mxu0 0.0
        %397 = vmatpush.msra.mxu0 0.0
        %398 = vmatpush.msra.mxu0 %v383
        %399 = vmatpush.msra.mxu0 %v381
        %400 = vmatpush.msra.mxu0 %v379
        %401 = vmatpush.msra.mxu0 %v377
        %402 = vmatpush.msra.mxu0 %v375
        %403 = vmatpush.msra.mxu0 %v373
        %404 = vmatpush.msra.mxu0 %v371
        %405 = vmatpush.msra.mxu0 %v369
        %406 = vmatmul.f32.gmra.mxu0 %v388
        %v407 = vpop.f32.mrf.mxu0
        %v408 = vadd.f32 0.0, %v407
        %409 = vdwg.mxu0
        %410 = vmatpush.msra.mxu0 0.0
        %411 = vmatpush.msra.mxu0 0.0
        %412 = vmatpush.msra.mxu0 0.0
        %413 = vmatpush.msra.mxu0 0.0
        %414 = vmatpush.msra.mxu0 0.0
        %415 = vmatpush.msra.mxu0 0.0
        %416 = vmatpush.msra.mxu0 0.0
        %417 = vmatpush.msra.mxu0 0.0
        %418 = vmatpush.msra.mxu0 %v384
        %419 = vmatpush.msra.mxu0 %v382
        %420 = vmatpush.msra.mxu0 %v380
        %421 = vmatpush.msra.mxu0 %v378
        %422 = vmatpush.msra.mxu0 %v376
        %423 = vmatpush.msra.mxu0 %v374
        %424 = vmatpush.msra.mxu0 %v372
        %425 = vmatpush.msra.mxu0 %v370
        %426 = vmatmul.f32.gmra.mxu0 %v388
        %v427 = vpop.f32.mrf.mxu0
        %v428 = vadd.f32 0.0, %v427
        %429 = vdwg.mxu0
        %v430 = vld [vmem:[%s313] ss:$2 sm:$0x3]
        %s431 = scalar_lea.vmem %s313, 1 [#allocation6]
        %v432 = vld [vmem:[%s431] ss:$2 sm:$0x3]
        %v434 = vperm.slane %v430, 0
        %v435 = vperm.slane %v430, 1
        %438 = vrot.lane.b32.xlu0 %v434, 17
        %v439 = vpop.permute.xlu0 %438
        %440 = vrot.lane.b32.xlu0 %v435, 17
        %v441 = vpop.permute.xlu0 %440
        %v442 = vlaneseq
        %v443 = vand.u32 %v442, 127
        %vm444 = vcmp.lt.s32.totalorder %v443, 17
        %v445 = vsel %vm444, %v439, %v441
        %v446 = vsel %vm444, %v441, %v439
        %v447 = vld [vmem:[#allocation9] ss:$8 sm:$0x3]
        %v449 = vperm.slane %v447, 0
        %v450 = vperm.slane %v447, 1
        %v453 = vmul.f32 %v446, %v449
        %v454 = vmul.f32 %v445, %v450
        %s455 = sld [smem:[#allocation11]]
        %v456 = vstv %s455
        %v457 = vmul.f32 %v456, %v453
        %v458 = vmul.f32 %v456, %v454
        %v459 = vadd.f32 %v457, 0.0
        %v460 = vadd.f32 %v458, 0.0
        %s461 = sld [smem:[#allocation11 + $0x24]]
        %v462 = vstv %s461
        %v463 = vmul.f32 %v462, %v453
        %v464 = vmul.f32 %v462, %v454
        %v465 = vadd.f32 %v463, 0.0
        %v466 = vadd.f32 %v464, 0.0
        %s467 = sld [smem:[#allocation11 + $0x48]]
        %v468 = vstv %s467
        %v469 = vmul.f32 %v468, %v453
        %v470 = vmul.f32 %v468, %v454
        %v471 = vadd.f32 %v469, 0.0
        %v472 = vadd.f32 %v470, 0.0
        %s473 = sld [smem:[#allocation11 + $0x6c]]
        %v474 = vstv %s473
        %v475 = vmul.f32 %v474, %v453
        %v476 = vmul.f32 %v474, %v454
        %v477 = vadd.f32 %v475, 0.0
        %v478 = vadd.f32 %v476, 0.0
        %v480 = vperm.slane %v432, 0
        %v481 = vperm.slane %v432, 1
        %484 = vrot.lane.b32.xlu0 %v480, 17
        %v485 = vpop.permute.xlu0 %484
        %486 = vrot.lane.b32.xlu0 %v481, 17
        %v487 = vpop.permute.xlu0 %486
        %v488 = vsel %vm444, %v485, %v487
        %v489 = vsel %vm444, %v487, %v485
        %v490 = vmul.f32 %v489, %v449
        %v491 = vmul.f32 %v488, %v450
        %s492 = sld [smem:[#allocation11 + $0x9]]
        %v493 = vstv %s492
        %v494 = vmul.f32 %v493, %v490
        %v495 = vmul.f32 %v493, %v491
        %v496 = vadd.f32 %v459, %v494
        %v497 = vadd.f32 %v460, %v495
        %s498 = sld [smem:[#allocation11 + $0x2d]]
        %v499 = vstv %s498
        %v500 = vmul.f32 %v499, %v490
        %v501 = vmul.f32 %v499, %v491
        %v502 = vadd.f32 %v465, %v500
        %v503 = vadd.f32 %v466, %v501
        %s504 = sld [smem:[#allocation11 + $0x51]]
        %v505 = vstv %s504
        %v506 = vmul.f32 %v505, %v490
        %v507 = vmul.f32 %v505, %v491
        %v508 = vadd.f32 %v471, %v506
        %v509 = vadd.f32 %v472, %v507
        %s510 = sld [smem:[#allocation11 + $0x75]]
        %v511 = vstv %s510
        %v512 = vmul.f32 %v511, %v490
        %v513 = vmul.f32 %v511, %v491
        %v514 = vadd.f32 %v477, %v512
        %v515 = vadd.f32 %v478, %v513
        %516 = vrot.lane.b32.xlu0 %v408, 17
        %v517 = vpop.permute.xlu0 %516
        %518 = vrot.lane.b32.xlu0 %v428, 17
        %v519 = vpop.permute.xlu0 %518
        %v520 = vsel %vm444, %v517, %v519
        %v521 = vsel %vm444, %v519, %v517
        %v522 = vmul.f32 %v521, %v449
        %v523 = vmul.f32 %v520, %v450
        %s524 = sld [smem:[#allocation11 + $0x12]]
        %v525 = vstv %s524
        %v526 = vmul.f32 %v525, %v522
        %v527 = vmul.f32 %v525, %v523
        %v528 = vadd.f32 %v496, %v526
        %v529 = vadd.f32 %v497, %v527
        %s530 = sld [smem:[#allocation11 + $0x36]]
        %v531 = vstv %s530
        %v532 = vmul.f32 %v531, %v522
        %v533 = vmul.f32 %v531, %v523
        %v534 = vadd.f32 %v502, %v532
        %v535 = vadd.f32 %v503, %v533
        %s536 = sld [smem:[#allocation11 + $0x5a]]
        %v537 = vstv %s536
        %v538 = vmul.f32 %v537, %v522
        %v539 = vmul.f32 %v537, %v523
        %v540 = vadd.f32 %v508, %v538
        %v541 = vadd.f32 %v509, %v539
        %s542 = sld [smem:[#allocation11 + $0x7e]]
        %v543 = vstv %s542
        %v544 = vmul.f32 %v543, %v522
        %v545 = vmul.f32 %v543, %v523
        %v546 = vadd.f32 %v514, %v544
        %v547 = vadd.f32 %v515, %v545
        %v550 = vrot.slane %v408, 1
        %v551 = vrot.slane %v428, 1
        %554 = vrot.lane.b32.xlu0 %v550, 17
        %v555 = vpop.permute.xlu0 %554
        %556 = vrot.lane.b32.xlu0 %v551, 17
        %v557 = vpop.permute.xlu0 %556
        %v558 = vsel %vm444, %v555, %v557
        %v559 = vsel %vm444, %v557, %v555
        %v560 = vmul.f32 %v559, %v449
        %v561 = vmul.f32 %v558, %v450
        %s562 = sld [smem:[#allocation11 + $0x1b]]
        %v563 = vstv %s562
        %v564 = vmul.f32 %v563, %v560
        %v565 = vmul.f32 %v563, %v561
        %v566 = vadd.f32 %v528, %v564
        %v567 = vadd.f32 %v529, %v565
        %s568 = sld [smem:[#allocation11 + $0x3f]]
        %v569 = vstv %s568
        %v570 = vmul.f32 %v569, %v560
        %v571 = vmul.f32 %v569, %v561
        %v572 = vadd.f32 %v534, %v570
        %v573 = vadd.f32 %v535, %v571
        %s574 = sld [smem:[#allocation11 + $0x63]]
        %v575 = vstv %s574
        %v576 = vmul.f32 %v575, %v560
        %v577 = vmul.f32 %v575, %v561
        %v578 = vadd.f32 %v540, %v576
        %v579 = vadd.f32 %v541, %v577
        %s580 = sld [smem:[#allocation11 + $0x87]]
        %v581 = vstv %s580
        %v582 = vmul.f32 %v581, %v560
        %v583 = vmul.f32 %v581, %v561
        %v584 = vadd.f32 %v546, %v582
        %v585 = vadd.f32 %v547, %v583
        %586 = vrot.lane.b32.xlu0 %v434, 16
        %v587 = vpop.permute.xlu0 %586
        %588 = vrot.lane.b32.xlu0 %v435, 16
        %v589 = vpop.permute.xlu0 %588
        %vm590 = vcmp.lt.s32.totalorder %v443, 16
        %v591 = vsel %vm590, %v587, %v589
        %v592 = vsel %vm590, %v589, %v587
        %s593 = scalar_lea.vmem [#allocation9], 1
        %v594 = vld [vmem:[%s593] ss:$8 sm:$0x3]
        %v596 = vperm.slane %v594, 0
        %v597 = vperm.slane %v594, 1
        %v600 = vmul.f32 %v592, %v596
        %v601 = vmul.f32 %v591, %v597
        %s602 = sld [smem:[#allocation11 + $0x1]]
        %v603 = vstv %s602
        %v604 = vmul.f32 %v603, %v600
        %v605 = vmul.f32 %v603, %v601
        %v606 = vadd.f32 %v566, %v604
        %v607 = vadd.f32 %v567, %v605
        %s608 = sld [smem:[#allocation11 + $0x25]]
        %v609 = vstv %s608
        %v610 = vmul.f32 %v609, %v600
        %v611 = vmul.f32 %v609, %v601
        %v612 = vadd.f32 %v572, %v610
        %v613 = vadd.f32 %v573, %v611
        %s614 = sld [smem:[#allocation11 + $0x49]]
        %v615 = vstv %s614
        %v616 = vmul.f32 %v615, %v600
        %v617 = vmul.f32 %v615, %v601
        %v618 = vadd.f32 %v578, %v616
        %v619 = vadd.f32 %v579, %v617
        %s620 = sld [smem:[#allocation11 + $0x6d]]
        %v621 = vstv %s620
        %v622 = vmul.f32 %v621, %v600
        %v623 = vmul.f32 %v621, %v601
        %v624 = vadd.f32 %v584, %v622
        %v625 = vadd.f32 %v585, %v623
        %626 = vrot.lane.b32.xlu0 %v480, 16
        %v627 = vpop.permute.xlu0 %626
        %628 = vrot.lane.b32.xlu0 %v481, 16
        %v629 = vpop.permute.xlu0 %628
        %v630 = vsel %vm590, %v627, %v629
        %v631 = vsel %vm590, %v629, %v627
        %v632 = vmul.f32 %v631, %v596
        %v633 = vmul.f32 %v630, %v597
        %s634 = sld [smem:[#allocation11 + $0xa]]
        %v635 = vstv %s634
        %v636 = vmul.f32 %v635, %v632
        %v637 = vmul.f32 %v635, %v633
        %v638 = vadd.f32 %v606, %v636
        %v639 = vadd.f32 %v607, %v637
        %s640 = sld [smem:[#allocation11 + $0x2e]]
        %v641 = vstv %s640
        %v642 = vmul.f32 %v641, %v632
        %v643 = vmul.f32 %v641, %v633
        %v644 = vadd.f32 %v612, %v642
        %v645 = vadd.f32 %v613, %v643
        %s646 = sld [smem:[#allocation11 + $0x52]]
        %v647 = vstv %s646
        %v648 = vmul.f32 %v647, %v632
        %v649 = vmul.f32 %v647, %v633
        %v650 = vadd.f32 %v618, %v648
        %v651 = vadd.f32 %v619, %v649
        %s652 = sld [smem:[#allocation11 + $0x76]]
        %v653 = vstv %s652
        %v654 = vmul.f32 %v653, %v632
        %v655 = vmul.f32 %v653, %v633
        %v656 = vadd.f32 %v624, %v654
        %v657 = vadd.f32 %v625, %v655
        %658 = vrot.lane.b32.xlu0 %v408, 16
        %v659 = vpop.permute.xlu0 %658
        %660 = vrot.lane.b32.xlu0 %v428, 16
        %v661 = vpop.permute.xlu0 %660
        %v662 = vsel %vm590, %v659, %v661
        %v663 = vsel %vm590, %v661, %v659
        %v664 = vmul.f32 %v663, %v596
        %v665 = vmul.f32 %v662, %v597
        %s666 = sld [smem:[#allocation11 + $0x13]]
        %v667 = vstv %s666
        %v668 = vmul.f32 %v667, %v664
        %v669 = vmul.f32 %v667, %v665
        %v670 = vadd.f32 %v638, %v668
        %v671 = vadd.f32 %v639, %v669
        %s672 = sld [smem:[#allocation11 + $0x37]]
        %v673 = vstv %s672
        %v674 = vmul.f32 %v673, %v664
        %v675 = vmul.f32 %v673, %v665
        %v676 = vadd.f32 %v644, %v674
        %v677 = vadd.f32 %v645, %v675
        %s678 = sld [smem:[#allocation11 + $0x5b]]
        %v679 = vstv %s678
        %v680 = vmul.f32 %v679, %v664
        %v681 = vmul.f32 %v679, %v665
        %v682 = vadd.f32 %v650, %v680
        %v683 = vadd.f32 %v651, %v681
        %s684 = sld [smem:[#allocation11 + $0x7f]]
        %v685 = vstv %s684
        %v686 = vmul.f32 %v685, %v664
        %v687 = vmul.f32 %v685, %v665
        %v688 = vadd.f32 %v656, %v686
        %v689 = vadd.f32 %v657, %v687
        %690 = vrot.lane.b32.xlu0 %v550, 16
        %v691 = vpop.permute.xlu0 %690
        %692 = vrot.lane.b32.xlu0 %v551, 16
        %v693 = vpop.permute.xlu0 %692
        %v694 = vsel %vm590, %v691, %v693
        %v695 = vsel %vm590, %v693, %v691
        %v696 = vmul.f32 %v695, %v596
        %v697 = vmul.f32 %v694, %v597
        %s698 = sld [smem:[#allocation11 + $0x1c]]
        %v699 = vstv %s698
        %v700 = vmul.f32 %v699, %v696
        %v701 = vmul.f32 %v699, %v697
        %v702 = vadd.f32 %v670, %v700
        %v703 = vadd.f32 %v671, %v701
        %s704 = sld [smem:[#allocation11 + $0x40]]
        %v705 = vstv %s704
        %v706 = vmul.f32 %v705, %v696
        %v707 = vmul.f32 %v705, %v697
        %v708 = vadd.f32 %v676, %v706
        %v709 = vadd.f32 %v677, %v707
        %s710 = sld [smem:[#allocation11 + $0x64]]
        %v711 = vstv %s710
        %v712 = vmul.f32 %v711, %v696
        %v713 = vmul.f32 %v711, %v697
        %v714 = vadd.f32 %v682, %v712
        %v715 = vadd.f32 %v683, %v713
        %s716 = sld [smem:[#allocation11 + $0x88]]
        %v717 = vstv %s716
        %v718 = vmul.f32 %v717, %v696
        %v719 = vmul.f32 %v717, %v697
        %v720 = vadd.f32 %v688, %v718
        %v721 = vadd.f32 %v689, %v719
        %722 = vrot.lane.b32.xlu0 %v434, 15
        %v723 = vpop.permute.xlu0 %722
        %724 = vrot.lane.b32.xlu0 %v435, 15
        %v725 = vpop.permute.xlu0 %724
        %vm726 = vcmp.lt.s32.totalorder %v443, 15
        %v727 = vsel %vm726, %v723, %v725
        %v728 = vsel %vm726, %v725, %v723
        %s729 = scalar_lea.vmem [#allocation9], 2
        %v730 = vld [vmem:[%s729] ss:$8 sm:$0x3]
        %v732 = vperm.slane %v730, 0
        %v733 = vperm.slane %v730, 1
        %v736 = vmul.f32 %v728, %v732
        %v737 = vmul.f32 %v727, %v733
        %s738 = sld [smem:[#allocation11 + $0x2]]
        %v739 = vstv %s738
        %v740 = vmul.f32 %v739, %v736
        %v741 = vmul.f32 %v739, %v737
        %v742 = vadd.f32 %v702, %v740
        %v743 = vadd.f32 %v703, %v741
        %s744 = sld [smem:[#allocation11 + $0x26]]
        %v745 = vstv %s744
        %v746 = vmul.f32 %v745, %v736
        %v747 = vmul.f32 %v745, %v737
        %v748 = vadd.f32 %v708, %v746
        %v749 = vadd.f32 %v709, %v747
        %s750 = sld [smem:[#allocation11 + $0x4a]]
        %v751 = vstv %s750
        %v752 = vmul.f32 %v751, %v736
        %v753 = vmul.f32 %v751, %v737
        %v754 = vadd.f32 %v714, %v752
        %v755 = vadd.f32 %v715, %v753
        %s756 = sld [smem:[#allocation11 + $0x6e]]
        %v757 = vstv %s756
        %v758 = vmul.f32 %v757, %v736
        %v759 = vmul.f32 %v757, %v737
        %v760 = vadd.f32 %v720, %v758
        %v761 = vadd.f32 %v721, %v759
        %762 = vrot.lane.b32.xlu0 %v480, 15
        %v763 = vpop.permute.xlu0 %762
        %764 = vrot.lane.b32.xlu0 %v481, 15
        %v765 = vpop.permute.xlu0 %764
        %v766 = vsel %vm726, %v763, %v765
        %v767 = vsel %vm726, %v765, %v763
        %v768 = vmul.f32 %v767, %v732
        %v769 = vmul.f32 %v766, %v733
        %s770 = sld [smem:[#allocation11 + $0xb]]
        %v771 = vstv %s770
        %v772 = vmul.f32 %v771, %v768
        %v773 = vmul.f32 %v771, %v769
        %v774 = vadd.f32 %v742, %v772
        %v775 = vadd.f32 %v743, %v773
        %s776 = sld [smem:[#allocation11 + $0x2f]]
        %v777 = vstv %s776
        %v778 = vmul.f32 %v777, %v768
        %v779 = vmul.f32 %v777, %v769
        %v780 = vadd.f32 %v748, %v778
        %v781 = vadd.f32 %v749, %v779
        %s782 = sld [smem:[#allocation11 + $0x53]]
        %v783 = vstv %s782
        %v784 = vmul.f32 %v783, %v768
        %v785 = vmul.f32 %v783, %v769
        %v786 = vadd.f32 %v754, %v784
        %v787 = vadd.f32 %v755, %v785
        %s788 = sld [smem:[#allocation11 + $0x77]]
        %v789 = vstv %s788
        %v790 = vmul.f32 %v789, %v768
        %v791 = vmul.f32 %v789, %v769
        %v792 = vadd.f32 %v760, %v790
        %v793 = vadd.f32 %v761, %v791
        %794 = vrot.lane.b32.xlu0 %v408, 15
        %v795 = vpop.permute.xlu0 %794
        %796 = vrot.lane.b32.xlu0 %v428, 15
        %v797 = vpop.permute.xlu0 %796
        %v798 = vsel %vm726, %v795, %v797
        %v799 = vsel %vm726, %v797, %v795
        %v800 = vmul.f32 %v799, %v732
        %v801 = vmul.f32 %v798, %v733
        %s802 = sld [smem:[#allocation11 + $0x14]]
        %v803 = vstv %s802
        %v804 = vmul.f32 %v803, %v800
        %v805 = vmul.f32 %v803, %v801
        %v806 = vadd.f32 %v774, %v804
        %v807 = vadd.f32 %v775, %v805
        %s808 = sld [smem:[#allocation11 + $0x38]]
        %v809 = vstv %s808
        %v810 = vmul.f32 %v809, %v800
        %v811 = vmul.f32 %v809, %v801
        %v812 = vadd.f32 %v780, %v810
        %v813 = vadd.f32 %v781, %v811
        %s814 = sld [smem:[#allocation11 + $0x5c]]
        %v815 = vstv %s814
        %v816 = vmul.f32 %v815, %v800
        %v817 = vmul.f32 %v815, %v801
        %v818 = vadd.f32 %v786, %v816
        %v819 = vadd.f32 %v787, %v817
        %s820 = sld [smem:[#allocation11 + $0x80]]
        %v821 = vstv %s820
        %v822 = vmul.f32 %v821, %v800
        %v823 = vmul.f32 %v821, %v801
        %v824 = vadd.f32 %v792, %v822
        %v825 = vadd.f32 %v793, %v823
        %826 = vrot.lane.b32.xlu0 %v550, 15
        %v827 = vpop.permute.xlu0 %826
        %828 = vrot.lane.b32.xlu0 %v551, 15
        %v829 = vpop.permute.xlu0 %828
        %v830 = vsel %vm726, %v827, %v829
        %v831 = vsel %vm726, %v829, %v827
        %v832 = vmul.f32 %v831, %v732
        %v833 = vmul.f32 %v830, %v733
        %s834 = sld [smem:[#allocation11 + $0x1d]]
        %v835 = vstv %s834
        %v836 = vmul.f32 %v835, %v832
        %v837 = vmul.f32 %v835, %v833
        %v838 = vadd.f32 %v806, %v836
        %v839 = vadd.f32 %v807, %v837
        %s840 = sld [smem:[#allocation11 + $0x41]]
        %v841 = vstv %s840
        %v842 = vmul.f32 %v841, %v832
        %v843 = vmul.f32 %v841, %v833
        %v844 = vadd.f32 %v812, %v842
        %v845 = vadd.f32 %v813, %v843
        %s846 = sld [smem:[#allocation11 + $0x65]]
        %v847 = vstv %s846
        %v848 = vmul.f32 %v847, %v832
        %v849 = vmul.f32 %v847, %v833
        %v850 = vadd.f32 %v818, %v848
        %v851 = vadd.f32 %v819, %v849
        %s852 = sld [smem:[#allocation11 + $0x89]]
        %v853 = vstv %s852
        %v854 = vmul.f32 %v853, %v832
        %v855 = vmul.f32 %v853, %v833
        %v856 = vadd.f32 %v824, %v854
        %v857 = vadd.f32 %v825, %v855
        %858 = vrot.lane.b32.xlu0 %v434, 1
        %v859 = vpop.permute.xlu0 %858
        %860 = vrot.lane.b32.xlu0 %v435, 1
        %v861 = vpop.permute.xlu0 %860
        %vm862 = vcmp.lt.s32.totalorder %v443, 1
        %v863 = vsel %vm862, %v859, %v861
        %v864 = vsel %vm862, %v861, %v859
        %s865 = scalar_lea.vmem [#allocation9], 3
        %v866 = vld [vmem:[%s865] ss:$8 sm:$0x3]
        %v868 = vperm.slane %v866, 0
        %v869 = vperm.slane %v866, 1
        %v872 = vmul.f32 %v864, %v868
        %v873 = vmul.f32 %v863, %v869
        %s874 = sld [smem:[#allocation11 + $0x3]]
        %v875 = vstv %s874
        %v876 = vmul.f32 %v875, %v872
        %v877 = vmul.f32 %v875, %v873
        %v878 = vadd.f32 %v838, %v876
        %v879 = vadd.f32 %v839, %v877
        %s880 = sld [smem:[#allocation11 + $0x27]]
        %v881 = vstv %s880
        %v882 = vmul.f32 %v881, %v872
        %v883 = vmul.f32 %v881, %v873
        %v884 = vadd.f32 %v844, %v882
        %v885 = vadd.f32 %v845, %v883
        %s886 = sld [smem:[#allocation11 + $0x4b]]
        %v887 = vstv %s886
        %v888 = vmul.f32 %v887, %v872
        %v889 = vmul.f32 %v887, %v873
        %v890 = vadd.f32 %v850, %v888
        %v891 = vadd.f32 %v851, %v889
        %s892 = sld [smem:[#allocation11 + $0x6f]]
        %v893 = vstv %s892
        %v894 = vmul.f32 %v893, %v872
        %v895 = vmul.f32 %v893, %v873
        %v896 = vadd.f32 %v856, %v894
        %v897 = vadd.f32 %v857, %v895
        %898 = vrot.lane.b32.xlu0 %v480, 1
        %v899 = vpop.permute.xlu0 %898
        %900 = vrot.lane.b32.xlu0 %v481, 1
        %v901 = vpop.permute.xlu0 %900
        %v902 = vsel %vm862, %v899, %v901
        %v903 = vsel %vm862, %v901, %v899
        %v904 = vmul.f32 %v903, %v868
        %v905 = vmul.f32 %v902, %v869
        %s906 = sld [smem:[#allocation11 + $0xc]]
        %v907 = vstv %s906
        %v908 = vmul.f32 %v907, %v904
        %v909 = vmul.f32 %v907, %v905
        %v910 = vadd.f32 %v878, %v908
        %v911 = vadd.f32 %v879, %v909
        %s912 = sld [smem:[#allocation11 + $0x30]]
        %v913 = vstv %s912
        %v914 = vmul.f32 %v913, %v904
        %v915 = vmul.f32 %v913, %v905
        %v916 = vadd.f32 %v884, %v914
        %v917 = vadd.f32 %v885, %v915
        %s918 = sld [smem:[#allocation11 + $0x54]]
        %v919 = vstv %s918
        %v920 = vmul.f32 %v919, %v904
        %v921 = vmul.f32 %v919, %v905
        %v922 = vadd.f32 %v890, %v920
        %v923 = vadd.f32 %v891, %v921
        %s924 = sld [smem:[#allocation11 + $0x78]]
        %v925 = vstv %s924
        %v926 = vmul.f32 %v925, %v904
        %v927 = vmul.f32 %v925, %v905
        %v928 = vadd.f32 %v896, %v926
        %v929 = vadd.f32 %v897, %v927
        %930 = vrot.lane.b32.xlu0 %v408, 1
        %v931 = vpop.permute.xlu0 %930
        %932 = vrot.lane.b32.xlu0 %v428, 1
        %v933 = vpop.permute.xlu0 %932
        %v934 = vsel %vm862, %v931, %v933
        %v935 = vsel %vm862, %v933, %v931
        %v936 = vmul.f32 %v935, %v868
        %v937 = vmul.f32 %v934, %v869
        %s938 = sld [smem:[#allocation11 + $0x15]]
        %v939 = vstv %s938
        %v940 = vmul.f32 %v939, %v936
        %v941 = vmul.f32 %v939, %v937
        %v942 = vadd.f32 %v910, %v940
        %v943 = vadd.f32 %v911, %v941
        %s944 = sld [smem:[#allocation11 + $0x39]]
        %v945 = vstv %s944
        %v946 = vmul.f32 %v945, %v936
        %v947 = vmul.f32 %v945, %v937
        %v948 = vadd.f32 %v916, %v946
        %v949 = vadd.f32 %v917, %v947
        %s950 = sld [smem:[#allocation11 + $0x5d]]
        %v951 = vstv %s950
        %v952 = vmul.f32 %v951, %v936
        %v953 = vmul.f32 %v951, %v937
        %v954 = vadd.f32 %v922, %v952
        %v955 = vadd.f32 %v923, %v953
        %s956 = sld [smem:[#allocation11 + $0x81]]
        %v957 = vstv %s956
        %v958 = vmul.f32 %v957, %v936
        %v959 = vmul.f32 %v957, %v937
        %v960 = vadd.f32 %v928, %v958
        %v961 = vadd.f32 %v929, %v959
        %962 = vrot.lane.b32.xlu0 %v550, 1
        %v963 = vpop.permute.xlu0 %962
        %964 = vrot.lane.b32.xlu0 %v551, 1
        %v965 = vpop.permute.xlu0 %964
        %v966 = vsel %vm862, %v963, %v965
        %v967 = vsel %vm862, %v965, %v963
        %v968 = vmul.f32 %v967, %v868
        %v969 = vmul.f32 %v966, %v869
        %s970 = sld [smem:[#allocation11 + $0x1e]]
        %v971 = vstv %s970
        %v972 = vmul.f32 %v971, %v968
        %v973 = vmul.f32 %v971, %v969
        %v974 = vadd.f32 %v942, %v972
        %v975 = vadd.f32 %v943, %v973
        %s976 = sld [smem:[#allocation11 + $0x42]]
        %v977 = vstv %s976
        %v978 = vmul.f32 %v977, %v968
        %v979 = vmul.f32 %v977, %v969
        %v980 = vadd.f32 %v948, %v978
        %v981 = vadd.f32 %v949, %v979
        %s982 = sld [smem:[#allocation11 + $0x66]]
        %v983 = vstv %s982
        %v984 = vmul.f32 %v983, %v968
        %v985 = vmul.f32 %v983, %v969
        %v986 = vadd.f32 %v954, %v984
        %v987 = vadd.f32 %v955, %v985
        %s988 = sld [smem:[#allocation11 + $0x8a]]
        %v989 = vstv %s988
        %v990 = vmul.f32 %v989, %v968
        %v991 = vmul.f32 %v989, %v969
        %v992 = vadd.f32 %v960, %v990
        %v993 = vadd.f32 %v961, %v991
        %s994 = sld [smem:[#allocation11 + $0x4]]
        %v995 = vstv %s994
        %v996 = vmul.f32 %v995, %v430
        %v998 = vperm.slane %v996, 0
        %v999 = vperm.slane %v996, 1
        %v1002 = vadd.f32 %v974, %v998
        %v1003 = vadd.f32 %v975, %v999
        %s1004 = sld [smem:[#allocation11 + $0x28]]
        %v1005 = vstv %s1004
        %v1006 = vmul.f32 %v1005, %v430
        %v1008 = vperm.slane %v1006, 0
        %v1009 = vperm.slane %v1006, 1
        %v1012 = vadd.f32 %v980, %v1008
        %v1013 = vadd.f32 %v981, %v1009
        %s1014 = sld [smem:[#allocation11 + $0x4c]]
        %v1015 = vstv %s1014
        %v1016 = vmul.f32 %v1015, %v430
        %v1018 = vperm.slane %v1016, 0
        %v1019 = vperm.slane %v1016, 1
        %v1022 = vadd.f32 %v986, %v1018
        %v1023 = vadd.f32 %v987, %v1019
        %s1024 = sld [smem:[#allocation11 + $0x70]]
        %v1025 = vstv %s1024
        %v1026 = vmul.f32 %v1025, %v430
        %v1028 = vperm.slane %v1026, 0
        %v1029 = vperm.slane %v1026, 1
        %v1032 = vadd.f32 %v992, %v1028
        %v1033 = vadd.f32 %v993, %v1029
        %s1034 = sld [smem:[#allocation11 + $0xd]]
        %v1035 = vstv %s1034
        %v1036 = vmul.f32 %v1035, %v432
        %v1038 = vperm.slane %v1036, 0
        %v1039 = vperm.slane %v1036, 1
        %v1042 = vadd.f32 %v1002, %v1038
        %v1043 = vadd.f32 %v1003, %v1039
        %s1044 = sld [smem:[#allocation11 + $0x31]]
        %v1045 = vstv %s1044
        %v1046 = vmul.f32 %v1045, %v432
        %v1048 = vperm.slane %v1046, 0
        %v1049 = vperm.slane %v1046, 1
        %v1052 = vadd.f32 %v1012, %v1048
        %v1053 = vadd.f32 %v1013, %v1049
        %s1054 = sld [smem:[#allocation11 + $0x55]]
        %v1055 = vstv %s1054
        %v1056 = vmul.f32 %v1055, %v432
        %v1058 = vperm.slane %v1056, 0
        %v1059 = vperm.slane %v1056, 1
        %v1062 = vadd.f32 %v1022, %v1058
        %v1063 = vadd.f32 %v1023, %v1059
        %s1064 = sld [smem:[#allocation11 + $0x79]]
        %v1065 = vstv %s1064
        %v1066 = vmul.f32 %v1065, %v432
        %v1068 = vperm.slane %v1066, 0
        %v1069 = vperm.slane %v1066, 1
        %v1072 = vadd.f32 %v1032, %v1068
        %v1073 = vadd.f32 %v1033, %v1069
        %s1074 = sld [smem:[#allocation11 + $0x16]]
        %v1075 = vstv %s1074
        %v1076 = vmul.f32 %v1075, %v408
        %v1077 = vmul.f32 %v1075, %v428
        %v1078 = vadd.f32 %v1042, %v1076
        %v1079 = vadd.f32 %v1043, %v1077
        %s1080 = sld [smem:[#allocation11 + $0x3a]]
        %v1081 = vstv %s1080
        %v1082 = vmul.f32 %v1081, %v408
        %v1083 = vmul.f32 %v1081, %v428
        %v1084 = vadd.f32 %v1052, %v1082
        %v1085 = vadd.f32 %v1053, %v1083
        %s1086 = sld [smem:[#allocation11 + $0x5e]]
        %v1087 = vstv %s1086
        %v1088 = vmul.f32 %v1087, %v408
        %v1089 = vmul.f32 %v1087, %v428
        %v1090 = vadd.f32 %v1062, %v1088
        %v1091 = vadd.f32 %v1063, %v1089
        %s1092 = sld [smem:[#allocation11 + $0x82]]
        %v1093 = vstv %s1092
        %v1094 = vmul.f32 %v1093, %v408
        %v1095 = vmul.f32 %v1093, %v428
        %v1096 = vadd.f32 %v1072, %v1094
        %v1097 = vadd.f32 %v1073, %v1095
        %s1098 = sld [smem:[#allocation11 + $0x1f]]
        %v1099 = vstv %s1098
        %v1100 = vmul.f32 %v1099, %v408
        %v1101 = vmul.f32 %v1099, %v428
        %v1104 = vrot.slane %v1100, 1
        %v1105 = vrot.slane %v1101, 1
        %v1108 = vadd.f32 %v1078, %v1104
        %v1109 = vadd.f32 %v1079, %v1105
        %s1110 = sld [smem:[#allocation11 + $0x43]]
        %v1111 = vstv %s1110
        %v1112 = vmul.f32 %v1111, %v408
        %v1113 = vmul.f32 %v1111, %v428
        %v1116 = vrot.slane %v1112, 1
        %v1117 = vrot.slane %v1113, 1
        %v1120 = vadd.f32 %v1084, %v1116
        %v1121 = vadd.f32 %v1085, %v1117
        %s1122 = sld [smem:[#allocation11 + $0x67]]
        %v1123 = vstv %s1122
        %v1124 = vmul.f32 %v1123, %v408
        %v1125 = vmul.f32 %v1123, %v428
        %v1128 = vrot.slane %v1124, 1
        %v1129 = vrot.slane %v1125, 1
        %v1132 = vadd.f32 %v1090, %v1128
        %v1133 = vadd.f32 %v1091, %v1129
        %s1134 = sld [smem:[#allocation11 + $0x8b]]
        %v1135 = vstv %s1134
        %v1136 = vmul.f32 %v1135, %v408
        %v1137 = vmul.f32 %v1135, %v428
        %v1140 = vrot.slane %v1136, 1
        %v1141 = vrot.slane %v1137, 1
        %v1144 = vadd.f32 %v1096, %v1140
        %v1145 = vadd.f32 %v1097, %v1141
        %1146 = vrot.lane.b32.xlu0 %v434, 127
        %v1147 = vpop.permute.xlu0 %1146
        %1148 = vrot.lane.b32.xlu0 %v435, 127
        %v1149 = vpop.permute.xlu0 %1148
        %vm1150 = vcmp.lt.s32.totalorder %v443, 127
        %v1151 = vsel %vm1150, %v1147, %v1149
        %v1152 = vsel %vm1150, %v1149, %v1147
        %s1153 = scalar_lea.vmem [#allocation9], 5
        %v1154 = vld [vmem:[%s1153] ss:$8 sm:$0x3]
        %v1156 = vperm.slane %v1154, 0
        %v1157 = vperm.slane %v1154, 1
        %v1160 = vmul.f32 %v1151, %v1156
        %v1161 = vmul.f32 %v1152, %v1157
        %s1162 = sld [smem:[#allocation11 + $0x5]]
        %v1163 = vstv %s1162
        %v1164 = vmul.f32 %v1163, %v1160
        %v1165 = vmul.f32 %v1163, %v1161
        %v1166 = vadd.f32 %v1108, %v1164
        %v1167 = vadd.f32 %v1109, %v1165
        %s1168 = sld [smem:[#allocation11 + $0x29]]
        %v1169 = vstv %s1168
        %v1170 = vmul.f32 %v1169, %v1160
        %v1171 = vmul.f32 %v1169, %v1161
        %v1172 = vadd.f32 %v1120, %v1170
        %v1173 = vadd.f32 %v1121, %v1171
        %s1174 = sld [smem:[#allocation11 + $0x4d]]
        %v1175 = vstv %s1174
        %v1176 = vmul.f32 %v1175, %v1160
        %v1177 = vmul.f32 %v1175, %v1161
        %v1178 = vadd.f32 %v1132, %v1176
        %v1179 = vadd.f32 %v1133, %v1177
        %s1180 = sld [smem:[#allocation11 + $0x71]]
        %v1181 = vstv %s1180
        %v1182 = vmul.f32 %v1181, %v1160
        %v1183 = vmul.f32 %v1181, %v1161
        %v1184 = vadd.f32 %v1144, %v1182
        %v1185 = vadd.f32 %v1145, %v1183
        %1186 = vrot.lane.b32.xlu0 %v480, 127
        %v1187 = vpop.permute.xlu0 %1186
        %1188 = vrot.lane.b32.xlu0 %v481, 127
        %v1189 = vpop.permute.xlu0 %1188
        %v1190 = vsel %vm1150, %v1187, %v1189
        %v1191 = vsel %vm1150, %v1189, %v1187
        %v1192 = vmul.f32 %v1190, %v1156
        %v1193 = vmul.f32 %v1191, %v1157
        %s1194 = sld [smem:[#allocation11 + $0xe]]
        %v1195 = vstv %s1194
        %v1196 = vmul.f32 %v1195, %v1192
        %v1197 = vmul.f32 %v1195, %v1193
        %v1198 = vadd.f32 %v1166, %v1196
        %v1199 = vadd.f32 %v1167, %v1197
        %s1200 = sld [smem:[#allocation11 + $0x32]]
        %v1201 = vstv %s1200
        %v1202 = vmul.f32 %v1201, %v1192
        %v1203 = vmul.f32 %v1201, %v1193
        %v1204 = vadd.f32 %v1172, %v1202
        %v1205 = vadd.f32 %v1173, %v1203
        %s1206 = sld [smem:[#allocation11 + $0x56]]
        %v1207 = vstv %s1206
        %v1208 = vmul.f32 %v1207, %v1192
        %v1209 = vmul.f32 %v1207, %v1193
        %v1210 = vadd.f32 %v1178, %v1208
        %v1211 = vadd.f32 %v1179, %v1209
        %s1212 = sld [smem:[#allocation11 + $0x7a]]
        %v1213 = vstv %s1212
        %v1214 = vmul.f32 %v1213, %v1192
        %v1215 = vmul.f32 %v1213, %v1193
        %v1216 = vadd.f32 %v1184, %v1214
        %v1217 = vadd.f32 %v1185, %v1215
        %1218 = vrot.lane.b32.xlu0 %v408, 127
        %v1219 = vpop.permute.xlu0 %1218
        %1220 = vrot.lane.b32.xlu0 %v428, 127
        %v1221 = vpop.permute.xlu0 %1220
        %v1222 = vsel %vm1150, %v1219, %v1221
        %v1223 = vsel %vm1150, %v1221, %v1219
        %v1224 = vmul.f32 %v1222, %v1156
        %v1225 = vmul.f32 %v1223, %v1157
        %s1226 = sld [smem:[#allocation11 + $0x17]]
        %v1227 = vstv %s1226
        %v1228 = vmul.f32 %v1227, %v1224
        %v1229 = vmul.f32 %v1227, %v1225
        %v1230 = vadd.f32 %v1198, %v1228
        %v1231 = vadd.f32 %v1199, %v1229
        %s1232 = sld [smem:[#allocation11 + $0x3b]]
        %v1233 = vstv %s1232
        %v1234 = vmul.f32 %v1233, %v1224
        %v1235 = vmul.f32 %v1233, %v1225
        %v1236 = vadd.f32 %v1204, %v1234
        %v1237 = vadd.f32 %v1205, %v1235
        %s1238 = sld [smem:[#allocation11 + $0x5f]]
        %v1239 = vstv %s1238
        %v1240 = vmul.f32 %v1239, %v1224
        %v1241 = vmul.f32 %v1239, %v1225
        %v1242 = vadd.f32 %v1210, %v1240
        %v1243 = vadd.f32 %v1211, %v1241
        %s1244 = sld [smem:[#allocation11 + $0x83]]
        %v1245 = vstv %s1244
        %v1246 = vmul.f32 %v1245, %v1224
        %v1247 = vmul.f32 %v1245, %v1225
        %v1248 = vadd.f32 %v1216, %v1246
        %v1249 = vadd.f32 %v1217, %v1247
        %1250 = vrot.lane.b32.xlu0 %v550, 127
        %v1251 = vpop.permute.xlu0 %1250
        %1252 = vrot.lane.b32.xlu0 %v551, 127
        %v1253 = vpop.permute.xlu0 %1252
        %v1254 = vsel %vm1150, %v1251, %v1253
        %v1255 = vsel %vm1150, %v1253, %v1251
        %v1256 = vmul.f32 %v1254, %v1156
        %v1257 = vmul.f32 %v1255, %v1157
        %s1258 = sld [smem:[#allocation11 + $0x20]]
        %v1259 = vstv %s1258
        %v1260 = vmul.f32 %v1259, %v1256
        %v1261 = vmul.f32 %v1259, %v1257
        %v1262 = vadd.f32 %v1230, %v1260
        %v1263 = vadd.f32 %v1231, %v1261
        %s1264 = sld [smem:[#allocation11 + $0x44]]
        %v1265 = vstv %s1264
        %v1266 = vmul.f32 %v1265, %v1256
        %v1267 = vmul.f32 %v1265, %v1257
        %v1268 = vadd.f32 %v1236, %v1266
        %v1269 = vadd.f32 %v1237, %v1267
        %s1270 = sld [smem:[#allocation11 + $0x68]]
        %v1271 = vstv %s1270
        %v1272 = vmul.f32 %v1271, %v1256
        %v1273 = vmul.f32 %v1271, %v1257
        %v1274 = vadd.f32 %v1242, %v1272
        %v1275 = vadd.f32 %v1243, %v1273
        %s1276 = sld [smem:[#allocation11 + $0x8c]]
        %v1277 = vstv %s1276
        %v1278 = vmul.f32 %v1277, %v1256
        %v1279 = vmul.f32 %v1277, %v1257
        %v1280 = vadd.f32 %v1248, %v1278
        %v1281 = vadd.f32 %v1249, %v1279
        %1282 = vrot.lane.b32.xlu0 %v434, 113
        %v1283 = vpop.permute.xlu0 %1282
        %1284 = vrot.lane.b32.xlu0 %v435, 113
        %v1285 = vpop.permute.xlu0 %1284
        %vm1286 = vcmp.lt.s32.totalorder %v443, 113
        %v1287 = vsel %vm1286, %v1283, %v1285
        %v1288 = vsel %vm1286, %v1285, %v1283
        %s1289 = scalar_lea.vmem [#allocation9], 6
        %v1290 = vld [vmem:[%s1289] ss:$8 sm:$0x3]
        %v1292 = vperm.slane %v1290, 0
        %v1293 = vperm.slane %v1290, 1
        %v1296 = vmul.f32 %v1287, %v1292
        %v1297 = vmul.f32 %v1288, %v1293
        %s1298 = sld [smem:[#allocation11 + $0x6]]
        %v1299 = vstv %s1298
        %v1300 = vmul.f32 %v1299, %v1296
        %v1301 = vmul.f32 %v1299, %v1297
        %v1302 = vadd.f32 %v1262, %v1300
        %v1303 = vadd.f32 %v1263, %v1301
        %s1304 = sld [smem:[#allocation11 + $0x2a]]
        %v1305 = vstv %s1304
        %v1306 = vmul.f32 %v1305, %v1296
        %v1307 = vmul.f32 %v1305, %v1297
        %v1308 = vadd.f32 %v1268, %v1306
        %v1309 = vadd.f32 %v1269, %v1307
        %s1310 = sld [smem:[#allocation11 + $0x4e]]
        %v1311 = vstv %s1310
        %v1312 = vmul.f32 %v1311, %v1296
        %v1313 = vmul.f32 %v1311, %v1297
        %v1314 = vadd.f32 %v1274, %v1312
        %v1315 = vadd.f32 %v1275, %v1313
        %s1316 = sld [smem:[#allocation11 + $0x72]]
        %v1317 = vstv %s1316
        %v1318 = vmul.f32 %v1317, %v1296
        %v1319 = vmul.f32 %v1317, %v1297
        %v1320 = vadd.f32 %v1280, %v1318
        %v1321 = vadd.f32 %v1281, %v1319
        %1322 = vrot.lane.b32.xlu0 %v480, 113
        %v1323 = vpop.permute.xlu0 %1322
        %1324 = vrot.lane.b32.xlu0 %v481, 113
        %v1325 = vpop.permute.xlu0 %1324
        %v1326 = vsel %vm1286, %v1323, %v1325
        %v1327 = vsel %vm1286, %v1325, %v1323
        %v1328 = vmul.f32 %v1326, %v1292
        %v1329 = vmul.f32 %v1327, %v1293
        %s1330 = sld [smem:[#allocation11 + $0xf]]
        %v1331 = vstv %s1330
        %v1332 = vmul.f32 %v1331, %v1328
        %v1333 = vmul.f32 %v1331, %v1329
        %v1334 = vadd.f32 %v1302, %v1332
        %v1335 = vadd.f32 %v1303, %v1333
        %s1336 = sld [smem:[#allocation11 + $0x33]]
        %v1337 = vstv %s1336
        %v1338 = vmul.f32 %v1337, %v1328
        %v1339 = vmul.f32 %v1337, %v1329
        %v1340 = vadd.f32 %v1308, %v1338
        %v1341 = vadd.f32 %v1309, %v1339
        %s1342 = sld [smem:[#allocation11 + $0x57]]
        %v1343 = vstv %s1342
        %v1344 = vmul.f32 %v1343, %v1328
        %v1345 = vmul.f32 %v1343, %v1329
        %v1346 = vadd.f32 %v1314, %v1344
        %v1347 = vadd.f32 %v1315, %v1345
        %s1348 = sld [smem:[#allocation11 + $0x7b]]
        %v1349 = vstv %s1348
        %v1350 = vmul.f32 %v1349, %v1328
        %v1351 = vmul.f32 %v1349, %v1329
        %v1352 = vadd.f32 %v1320, %v1350
        %v1353 = vadd.f32 %v1321, %v1351
        %1354 = vrot.lane.b32.xlu0 %v408, 113
        %v1355 = vpop.permute.xlu0 %1354
        %1356 = vrot.lane.b32.xlu0 %v428, 113
        %v1357 = vpop.permute.xlu0 %1356
        %v1358 = vsel %vm1286, %v1355, %v1357
        %v1359 = vsel %vm1286, %v1357, %v1355
        %v1360 = vmul.f32 %v1358, %v1292
        %v1361 = vmul.f32 %v1359, %v1293
        %s1362 = sld [smem:[#allocation11 + $0x18]]
        %v1363 = vstv %s1362
        %v1364 = vmul.f32 %v1363, %v1360
        %v1365 = vmul.f32 %v1363, %v1361
        %v1366 = vadd.f32 %v1334, %v1364
        %v1367 = vadd.f32 %v1335, %v1365
        %s1368 = sld [smem:[#allocation11 + $0x3c]]
        %v1369 = vstv %s1368
        %v1370 = vmul.f32 %v1369, %v1360
        %v1371 = vmul.f32 %v1369, %v1361
        %v1372 = vadd.f32 %v1340, %v1370
        %v1373 = vadd.f32 %v1341, %v1371
        %s1374 = sld [smem:[#allocation11 + $0x60]]
        %v1375 = vstv %s1374
        %v1376 = vmul.f32 %v1375, %v1360
        %v1377 = vmul.f32 %v1375, %v1361
        %v1378 = vadd.f32 %v1346, %v1376
        %v1379 = vadd.f32 %v1347, %v1377
        %s1380 = sld [smem:[#allocation11 + $0x84]]
        %v1381 = vstv %s1380
        %v1382 = vmul.f32 %v1381, %v1360
        %v1383 = vmul.f32 %v1381, %v1361
        %v1384 = vadd.f32 %v1352, %v1382
        %v1385 = vadd.f32 %v1353, %v1383
        %1386 = vrot.lane.b32.xlu0 %v550, 113
        %v1387 = vpop.permute.xlu0 %1386
        %1388 = vrot.lane.b32.xlu0 %v551, 113
        %v1389 = vpop.permute.xlu0 %1388
        %v1390 = vsel %vm1286, %v1387, %v1389
        %v1391 = vsel %vm1286, %v1389, %v1387
        %v1392 = vmul.f32 %v1390, %v1292
        %v1393 = vmul.f32 %v1391, %v1293
        %s1394 = sld [smem:[#allocation11 + $0x21]]
        %v1395 = vstv %s1394
        %v1396 = vmul.f32 %v1395, %v1392
        %v1397 = vmul.f32 %v1395, %v1393
        %v1398 = vadd.f32 %v1366, %v1396
        %v1399 = vadd.f32 %v1367, %v1397
        %s1400 = sld [smem:[#allocation11 + $0x45]]
        %v1401 = vstv %s1400
        %v1402 = vmul.f32 %v1401, %v1392
        %v1403 = vmul.f32 %v1401, %v1393
        %v1404 = vadd.f32 %v1372, %v1402
        %v1405 = vadd.f32 %v1373, %v1403
        %s1406 = sld [smem:[#allocation11 + $0x69]]
        %v1407 = vstv %s1406
        %v1408 = vmul.f32 %v1407, %v1392
        %v1409 = vmul.f32 %v1407, %v1393
        %v1410 = vadd.f32 %v1378, %v1408
        %v1411 = vadd.f32 %v1379, %v1409
        %s1412 = sld [smem:[#allocation11 + $0x8d]]
        %v1413 = vstv %s1412
        %v1414 = vmul.f32 %v1413, %v1392
        %v1415 = vmul.f32 %v1413, %v1393
        %v1416 = vadd.f32 %v1384, %v1414
        %v1417 = vadd.f32 %v1385, %v1415
        %1418 = vrot.lane.b32.xlu0 %v434, 112
        %v1419 = vpop.permute.xlu0 %1418
        %1420 = vrot.lane.b32.xlu0 %v435, 112
        %v1421 = vpop.permute.xlu0 %1420
        %vm1422 = vcmp.lt.s32.totalorder %v443, 112
        %v1423 = vsel %vm1422, %v1419, %v1421
        %v1424 = vsel %vm1422, %v1421, %v1419
        %s1425 = scalar_lea.vmem [#allocation9], 7
        %v1426 = vld [vmem:[%s1425] ss:$8 sm:$0x3]
        %v1428 = vperm.slane %v1426, 0
        %v1429 = vperm.slane %v1426, 1
        %v1432 = vmul.f32 %v1423, %v1428
        %v1433 = vmul.f32 %v1424, %v1429
        %s1434 = sld [smem:[#allocation11 + $0x7]]
        %v1435 = vstv %s1434
        %v1436 = vmul.f32 %v1435, %v1432
        %v1437 = vmul.f32 %v1435, %v1433
        %v1438 = vadd.f32 %v1398, %v1436
        %v1439 = vadd.f32 %v1399, %v1437
        %s1440 = sld [smem:[#allocation11 + $0x2b]]
        %v1441 = vstv %s1440
        %v1442 = vmul.f32 %v1441, %v1432
        %v1443 = vmul.f32 %v1441, %v1433
        %v1444 = vadd.f32 %v1404, %v1442
        %v1445 = vadd.f32 %v1405, %v1443
        %s1446 = sld [smem:[#allocation11 + $0x4f]]
        %v1447 = vstv %s1446
        %v1448 = vmul.f32 %v1447, %v1432
        %v1449 = vmul.f32 %v1447, %v1433
        %v1450 = vadd.f32 %v1410, %v1448
        %v1451 = vadd.f32 %v1411, %v1449
        %s1452 = sld [smem:[#allocation11 + $0x73]]
        %v1453 = vstv %s1452
        %v1454 = vmul.f32 %v1453, %v1432
        %v1455 = vmul.f32 %v1453, %v1433
        %v1456 = vadd.f32 %v1416, %v1454
        %v1457 = vadd.f32 %v1417, %v1455
        %1458 = vrot.lane.b32.xlu0 %v480, 112
        %v1459 = vpop.permute.xlu0 %1458
        %1460 = vrot.lane.b32.xlu0 %v481, 112
        %v1461 = vpop.permute.xlu0 %1460
        %v1462 = vsel %vm1422, %v1459, %v1461
        %v1463 = vsel %vm1422, %v1461, %v1459
        %v1464 = vmul.f32 %v1462, %v1428
        %v1465 = vmul.f32 %v1463, %v1429
        %s1466 = sld [smem:[#allocation11 + $0x10]]
        %v1467 = vstv %s1466
        %v1468 = vmul.f32 %v1467, %v1464
        %v1469 = vmul.f32 %v1467, %v1465
        %v1470 = vadd.f32 %v1438, %v1468
        %v1471 = vadd.f32 %v1439, %v1469
        %s1472 = sld [smem:[#allocation11 + $0x34]]
        %v1473 = vstv %s1472
        %v1474 = vmul.f32 %v1473, %v1464
        %v1475 = vmul.f32 %v1473, %v1465
        %v1476 = vadd.f32 %v1444, %v1474
        %v1477 = vadd.f32 %v1445, %v1475
        %s1478 = sld [smem:[#allocation11 + $0x58]]
        %v1479 = vstv %s1478
        %v1480 = vmul.f32 %v1479, %v1464
        %v1481 = vmul.f32 %v1479, %v1465
        %v1482 = vadd.f32 %v1450, %v1480
        %v1483 = vadd.f32 %v1451, %v1481
        %s1484 = sld [smem:[#allocation11 + $0x7c]]
        %v1485 = vstv %s1484
        %v1486 = vmul.f32 %v1485, %v1464
        %v1487 = vmul.f32 %v1485, %v1465
        %v1488 = vadd.f32 %v1456, %v1486
        %v1489 = vadd.f32 %v1457, %v1487
        %1490 = vrot.lane.b32.xlu0 %v408, 112
        %v1491 = vpop.permute.xlu0 %1490
        %1492 = vrot.lane.b32.xlu0 %v428, 112
        %v1493 = vpop.permute.xlu0 %1492
        %v1494 = vsel %vm1422, %v1491, %v1493
        %v1495 = vsel %vm1422, %v1493, %v1491
        %v1496 = vmul.f32 %v1494, %v1428
        %v1497 = vmul.f32 %v1495, %v1429
        %s1498 = sld [smem:[#allocation11 + $0x19]]
        %v1499 = vstv %s1498
        %v1500 = vmul.f32 %v1499, %v1496
        %v1501 = vmul.f32 %v1499, %v1497
        %v1502 = vadd.f32 %v1470, %v1500
        %v1503 = vadd.f32 %v1471, %v1501
        %s1504 = sld [smem:[#allocation11 + $0x3d]]
        %v1505 = vstv %s1504
        %v1506 = vmul.f32 %v1505, %v1496
        %v1507 = vmul.f32 %v1505, %v1497
        %v1508 = vadd.f32 %v1476, %v1506
        %v1509 = vadd.f32 %v1477, %v1507
        %s1510 = sld [smem:[#allocation11 + $0x61]]
        %v1511 = vstv %s1510
        %v1512 = vmul.f32 %v1511, %v1496
        %v1513 = vmul.f32 %v1511, %v1497
        %v1514 = vadd.f32 %v1482, %v1512
        %v1515 = vadd.f32 %v1483, %v1513
        %s1516 = sld [smem:[#allocation11 + $0x85]]
        %v1517 = vstv %s1516
        %v1518 = vmul.f32 %v1517, %v1496
        %v1519 = vmul.f32 %v1517, %v1497
        %v1520 = vadd.f32 %v1488, %v1518
        %v1521 = vadd.f32 %v1489, %v1519
        %1522 = vrot.lane.b32.xlu0 %v550, 112
        %v1523 = vpop.permute.xlu0 %1522
        %1524 = vrot.lane.b32.xlu0 %v551, 112
        %v1525 = vpop.permute.xlu0 %1524
        %v1526 = vsel %vm1422, %v1523, %v1525
        %v1527 = vsel %vm1422, %v1525, %v1523
        %v1528 = vmul.f32 %v1526, %v1428
        %v1529 = vmul.f32 %v1527, %v1429
        %s1530 = sld [smem:[#allocation11 + $0x22]]
        %v1531 = vstv %s1530
        %v1532 = vmul.f32 %v1531, %v1528
        %v1533 = vmul.f32 %v1531, %v1529
        %v1534 = vadd.f32 %v1502, %v1532
        %v1535 = vadd.f32 %v1503, %v1533
        %s1536 = sld [smem:[#allocation11 + $0x46]]
        %v1537 = vstv %s1536
        %v1538 = vmul.f32 %v1537, %v1528
        %v1539 = vmul.f32 %v1537, %v1529
        %v1540 = vadd.f32 %v1508, %v1538
        %v1541 = vadd.f32 %v1509, %v1539
        %s1542 = sld [smem:[#allocation11 + $0x6a]]
        %v1543 = vstv %s1542
        %v1544 = vmul.f32 %v1543, %v1528
        %v1545 = vmul.f32 %v1543, %v1529
        %v1546 = vadd.f32 %v1514, %v1544
        %v1547 = vadd.f32 %v1515, %v1545
        %s1548 = sld [smem:[#allocation11 + $0x8e]]
        %v1549 = vstv %s1548
        %v1550 = vmul.f32 %v1549, %v1528
        %v1551 = vmul.f32 %v1549, %v1529
        %v1552 = vadd.f32 %v1520, %v1550
        %v1553 = vadd.f32 %v1521, %v1551
        %1554 = vrot.lane.b32.xlu0 %v434, 111
        %v1555 = vpop.permute.xlu0 %1554
        %1556 = vrot.lane.b32.xlu0 %v435, 111
        %v1557 = vpop.permute.xlu0 %1556
        %vm1558 = vcmp.lt.s32.totalorder %v443, 111
        %v1559 = vsel %vm1558, %v1555, %v1557
        %v1560 = vsel %vm1558, %v1557, %v1555
        %s1561 = scalar_lea.vmem [#allocation9], 16
        %v1562 = vld [vmem:[%s1561] ss:$8 sm:$0x3]
        %v1564 = vperm.slane %v1562, 0
        %v1565 = vperm.slane %v1562, 1
        %v1568 = vmul.f32 %v1559, %v1564
        %v1569 = vmul.f32 %v1560, %v1565
        %s1570 = sld [smem:[#allocation11 + $0x8]]
        %v1571 = vstv %s1570
        %v1572 = vmul.f32 %v1571, %v1568
        %v1573 = vmul.f32 %v1571, %v1569
        %v1574 = vadd.f32 %v1534, %v1572
        %v1575 = vadd.f32 %v1535, %v1573
        %s1576 = sld [smem:[#allocation11 + $0x2c]]
        %v1577 = vstv %s1576
        %v1578 = vmul.f32 %v1577, %v1568
        %v1579 = vmul.f32 %v1577, %v1569
        %v1580 = vadd.f32 %v1540, %v1578
        %v1581 = vadd.f32 %v1541, %v1579
        %s1582 = sld [smem:[#allocation11 + $0x50]]
        %v1583 = vstv %s1582
        %v1584 = vmul.f32 %v1583, %v1568
        %v1585 = vmul.f32 %v1583, %v1569
        %v1586 = vadd.f32 %v1546, %v1584
        %v1587 = vadd.f32 %v1547, %v1585
        %s1588 = sld [smem:[#allocation11 + $0x74]]
        %v1589 = vstv %s1588
        %v1590 = vmul.f32 %v1589, %v1568
        %v1591 = vmul.f32 %v1589, %v1569
        %v1592 = vadd.f32 %v1552, %v1590
        %v1593 = vadd.f32 %v1553, %v1591
        %1594 = vrot.lane.b32.xlu0 %v480, 111
        %v1595 = vpop.permute.xlu0 %1594
        %1596 = vrot.lane.b32.xlu0 %v481, 111
        %v1597 = vpop.permute.xlu0 %1596
        %v1598 = vsel %vm1558, %v1595, %v1597
        %v1599 = vsel %vm1558, %v1597, %v1595
        %v1600 = vmul.f32 %v1598, %v1564
        %v1601 = vmul.f32 %v1599, %v1565
        %s1602 = sld [smem:[#allocation11 + $0x11]]
        %v1603 = vstv %s1602
        %v1604 = vmul.f32 %v1603, %v1600
        %v1605 = vmul.f32 %v1603, %v1601
        %v1606 = vadd.f32 %v1574, %v1604
        %v1607 = vadd.f32 %v1575, %v1605
        %s1608 = sld [smem:[#allocation11 + $0x35]]
        %v1609 = vstv %s1608
        %v1610 = vmul.f32 %v1609, %v1600
        %v1611 = vmul.f32 %v1609, %v1601
        %v1612 = vadd.f32 %v1580, %v1610
        %v1613 = vadd.f32 %v1581, %v1611
        %s1614 = sld [smem:[#allocation11 + $0x59]]
        %v1615 = vstv %s1614
        %v1616 = vmul.f32 %v1615, %v1600
        %v1617 = vmul.f32 %v1615, %v1601
        %v1618 = vadd.f32 %v1586, %v1616
        %v1619 = vadd.f32 %v1587, %v1617
        %s1620 = sld [smem:[#allocation11 + $0x7d]]
        %v1621 = vstv %s1620
        %v1622 = vmul.f32 %v1621, %v1600
        %v1623 = vmul.f32 %v1621, %v1601
        %v1624 = vadd.f32 %v1592, %v1622
        %v1625 = vadd.f32 %v1593, %v1623
        %1626 = vrot.lane.b32.xlu0 %v408, 111
        %v1627 = vpop.permute.xlu0 %1626
        %1628 = vrot.lane.b32.xlu0 %v428, 111
        %v1629 = vpop.permute.xlu0 %1628
        %v1630 = vsel %vm1558, %v1627, %v1629
        %v1631 = vsel %vm1558, %v1629, %v1627
        %v1632 = vmul.f32 %v1630, %v1564
        %v1633 = vmul.f32 %v1631, %v1565
        %s1634 = sld [smem:[#allocation11 + $0x1a]]
        %v1635 = vstv %s1634
        %v1636 = vmul.f32 %v1635, %v1632
        %v1637 = vmul.f32 %v1635, %v1633
        %v1638 = vadd.f32 %v1606, %v1636
        %v1639 = vadd.f32 %v1607, %v1637
        %s1640 = sld [smem:[#allocation11 + $0x3e]]
        %v1641 = vstv %s1640
        %v1642 = vmul.f32 %v1641, %v1632
        %v1643 = vmul.f32 %v1641, %v1633
        %v1644 = vadd.f32 %v1612, %v1642
        %v1645 = vadd.f32 %v1613, %v1643
        %s1646 = sld [smem:[#allocation11 + $0x62]]
        %v1647 = vstv %s1646
        %v1648 = vmul.f32 %v1647, %v1632
        %v1649 = vmul.f32 %v1647, %v1633
        %v1650 = vadd.f32 %v1618, %v1648
        %v1651 = vadd.f32 %v1619, %v1649
        %s1652 = sld [smem:[#allocation11 + $0x86]]
        %v1653 = vstv %s1652
        %v1654 = vmul.f32 %v1653, %v1632
        %v1655 = vmul.f32 %v1653, %v1633
        %v1656 = vadd.f32 %v1624, %v1654
        %v1657 = vadd.f32 %v1625, %v1655
        %1658 = vrot.lane.b32.xlu0 %v550, 111
        %v1659 = vpop.permute.xlu0 %1658
        %1660 = vrot.lane.b32.xlu0 %v551, 111
        %v1661 = vpop.permute.xlu0 %1660
        %v1662 = vsel %vm1558, %v1659, %v1661
        %v1663 = vsel %vm1558, %v1661, %v1659
        %v1664 = vmul.f32 %v1662, %v1564
        %v1665 = vmul.f32 %v1663, %v1565
        %s1666 = sld [smem:[#allocation11 + $0x23]]
        %v1667 = vstv %s1666
        %v1668 = vmul.f32 %v1667, %v1664
        %v1669 = vmul.f32 %v1667, %v1665
        %v1670 = vadd.f32 %v1638, %v1668
        %v1671 = vadd.f32 %v1639, %v1669
        %s1672 = sld [smem:[#allocation11 + $0x47]]
        %v1673 = vstv %s1672
        %v1674 = vmul.f32 %v1673, %v1664
        %v1675 = vmul.f32 %v1673, %v1665
        %v1676 = vadd.f32 %v1644, %v1674
        %v1677 = vadd.f32 %v1645, %v1675
        %s1678 = sld [smem:[#allocation11 + $0x6b]]
        %v1679 = vstv %s1678
        %v1680 = vmul.f32 %v1679, %v1664
        %v1681 = vmul.f32 %v1679, %v1665
        %v1682 = vadd.f32 %v1650, %v1680
        %v1683 = vadd.f32 %v1651, %v1681
        %s1684 = sld [smem:[#allocation11 + $0x8f]]
        %v1685 = vstv %s1684
        %v1686 = vmul.f32 %v1685, %v1664
        %v1687 = vmul.f32 %v1685, %v1665
        %v1688 = vadd.f32 %v1656, %v1686
        %v1689 = vadd.f32 %v1657, %v1687
        %vm1690 = vcmask 1040384
        %v1691 = vsel %vm1690, %v1670, 0.0
        %v1692 = vsel %vm1690, %v1671, 0.0
        %v1693 = vadd.f32 %v1691, %v1692
        %1694 = vadd.xlane.f32.xlu0 %v1693
        %v1695 = vpop.xlane.xlu0 %1694
        %v1696 = vmul.f32 %v1695, 0.00390625
        %v1697 = vsub.f32 %v1670, %v1696
        %v1698 = vsub.f32 %v1671, %v1696
        %v1699 = vmul.f32 %v1697, %v1697
        %v1700 = vmul.f32 %v1698, %v1698
        %v1701 = vsel %vm1690, %v1699, 0.0
        %v1702 = vsel %vm1690, %v1700, 0.0
        %v1703 = vadd.f32 %v1701, %v1702
        %1704 = vadd.xlane.f32.xlu0 %v1703
        %v1705 = vpop.xlane.xlu0 %1704
        %v1706 = vmul.f32 %v1705, 0.00390625
        %v1707 = vadd.f32 %v1706, 1e-05
        %v1708 = vrsqrt.pop %v1707
        %v1709 = vmul.f32 %v1708, %v1707
        %v1710 = vmul.f32 %v1709, %v1708
        %v1711 = vmul.f32 0.5, %v1710
        %v1712 = vsub.f32 1.5, %v1711
        %v1713 = vmul.f32 %v1708, %v1712
        %vm1714 = vweird.f32 %v1707
        %vm1715 = vweird.f32 %v1708
        %vm1716 = vmor %vm1714, %vm1715
        %v1717 = vsel %vm1716, %v1708, %v1713
        %v1718 = vmul.f32 %v1697, %v1717
        %v1719 = vmul.f32 %v1698, %v1717
        %v1720 = vmax.f32 %v1718, 0.0
        %v1721 = vmax.f32 %v1719, 0.0
        %v1722 = vsel %vm1690, %v1676, 0.0
        %v1723 = vsel %vm1690, %v1677, 0.0
        %v1724 = vadd.f32 %v1722, %v1723
        %1725 = vadd.xlane.f32.xlu0 %v1724
        %v1726 = vpop.xlane.xlu0 %1725
        %v1727 = vmul.f32 %v1726, 0.00390625
        %v1728 = vsub.f32 %v1676, %v1727
        %v1729 = vsub.f32 %v1677, %v1727
        %v1730 = vmul.f32 %v1728, %v1728
        %v1731 = vmul.f32 %v1729, %v1729
        %v1732 = vsel %vm1690, %v1730, 0.0
        %v1733 = vsel %vm1690, %v1731, 0.0
        %v1734 = vadd.f32 %v1732, %v1733
        %1735 = vadd.xlane.f32.xlu0 %v1734
        %v1736 = vpop.xlane.xlu0 %1735
        %v1737 = vmul.f32 %v1736, 0.00390625
        %v1738 = vadd.f32 %v1737, 1e-05
        %v1739 = vrsqrt.pop %v1738
        %v1740 = vmul.f32 %v1739, %v1738
        %v1741 = vmul.f32 %v1740, %v1739
        %v1742 = vmul.f32 0.5, %v1741
        %v1743 = vsub.f32 1.5, %v1742
        %v1744 = vmul.f32 %v1739, %v1743
        %vm1745 = vweird.f32 %v1738
        %vm1746 = vweird.f32 %v1739
        %vm1747 = vmor %vm1745, %vm1746
        %v1748 = vsel %vm1747, %v1739, %v1744
        %v1749 = vmul.f32 %v1728, %v1748
        %v1750 = vmul.f32 %v1729, %v1748
        %v1751 = vmax.f32 %v1749, 0.0
        %v1752 = vmax.f32 %v1750, 0.0
        %v1753 = vsel %vm1690, %v1682, 0.0
        %v1754 = vsel %vm1690, %v1683, 0.0
        %v1755 = vadd.f32 %v1753, %v1754
        %1756 = vadd.xlane.f32.xlu0 %v1755
        %v1757 = vpop.xlane.xlu0 %1756
        %v1758 = vmul.f32 %v1757, 0.00390625
        %v1759 = vsub.f32 %v1682, %v1758
        %v1760 = vsub.f32 %v1683, %v1758
        %v1761 = vmul.f32 %v1759, %v1759
        %v1762 = vmul.f32 %v1760, %v1760
        %v1763 = vsel %vm1690, %v1761, 0.0
        %v1764 = vsel %vm1690, %v1762, 0.0
        %v1765 = vadd.f32 %v1763, %v1764
        %1766 = vadd.xlane.f32.xlu0 %v1765
        %v1767 = vpop.xlane.xlu0 %1766
        %v1768 = vmul.f32 %v1767, 0.00390625
        %v1769 = vadd.f32 %v1768, 1e-05
        %v1770 = vrsqrt.pop %v1769
        %v1771 = vmul.f32 %v1770, %v1769
        %v1772 = vmul.f32 %v1771, %v1770
        %v1773 = vmul.f32 0.5, %v1772
        %v1774 = vsub.f32 1.5, %v1773
        %v1775 = vmul.f32 %v1770, %v1774
        %vm1776 = vweird.f32 %v1769
        %vm1777 = vweird.f32 %v1770
        %vm1778 = vmor %vm1776, %vm1777
        %v1779 = vsel %vm1778, %v1770, %v1775
        %v1780 = vmul.f32 %v1759, %v1779
        %v1781 = vmul.f32 %v1760, %v1779
        %v1782 = vmax.f32 %v1780, 0.0
        %v1783 = vmax.f32 %v1781, 0.0
        %v1784 = vsel %vm1690, %v1688, 0.0
        %v1785 = vsel %vm1690, %v1689, 0.0
        %v1786 = vadd.f32 %v1784, %v1785
        %1787 = vadd.xlane.f32.xlu0 %v1786
        %v1788 = vpop.xlane.xlu0 %1787
        %v1789 = vmul.f32 %v1788, 0.00390625
        %v1790 = vsub.f32 %v1688, %v1789
        %v1791 = vsub.f32 %v1689, %v1789
        %v1792 = vmul.f32 %v1790, %v1790
        %v1793 = vmul.f32 %v1791, %v1791
        %v1794 = vsel %vm1690, %v1792, 0.0
        %v1795 = vsel %vm1690, %v1793, 0.0
        %v1796 = vadd.f32 %v1794, %v1795
        %1797 = vadd.xlane.f32.xlu0 %v1796
        %v1798 = vpop.xlane.xlu0 %1797
        %v1799 = vmul.f32 %v1798, 0.00390625
        %v1800 = vadd.f32 %v1799, 1e-05
        %v1801 = vrsqrt.pop %v1800
        %v1802 = vmul.f32 %v1801, %v1800
        %v1803 = vmul.f32 %v1802, %v1801
        %v1804 = vmul.f32 0.5, %v1803
        %v1805 = vsub.f32 1.5, %v1804
        %v1806 = vmul.f32 %v1801, %v1805
        %vm1807 = vweird.f32 %v1800
        %vm1808 = vweird.f32 %v1801
        %vm1809 = vmor %vm1807, %vm1808
        %v1810 = vsel %vm1809, %v1801, %v1806
        %v1811 = vmul.f32 %v1790, %v1810
        %v1812 = vmul.f32 %v1791, %v1810
        %v1813 = vmax.f32 %v1811, 0.0
        %v1814 = vmax.f32 %v1812, 0.0
        %1815 = vrot.lane.b32.xlu0 %v1720, 17
        %v1816 = vpop.permute.xlu0 %1815
        %1817 = vrot.lane.b32.xlu0 %v1721, 17
        %v1818 = vpop.permute.xlu0 %1817
        %v1819 = vsel %vm444, %v1816, %v1818
        %v1820 = vsel %vm444, %v1818, %v1816
        %v1821 = vmul.f32 %v1820, %v449
        %v1822 = vmul.f32 %v1819, %v450
        %s1823 = sld [smem:[#allocation12]]
        %v1824 = vstv %s1823
        %v1825 = vmul.f32 %v1824, %v1821
        %v1826 = vmul.f32 %v1824, %v1822
        %v1827 = vadd.f32 %v1825, 0.0
        %v1828 = vadd.f32 %v1826, 0.0
        %s1829 = sld [smem:[#allocation12 + $0x24]]
        %v1830 = vstv %s1829
        %v1831 = vmul.f32 %v1830, %v1821
        %v1832 = vmul.f32 %v1830, %v1822
        %v1833 = vadd.f32 %v1831, 0.0
        %v1834 = vadd.f32 %v1832, 0.0
        %s1835 = sld [smem:[#allocation12 + $0x48]]
        %v1836 = vstv %s1835
        %v1837 = vmul.f32 %v1836, %v1821
        %v1838 = vmul.f32 %v1836, %v1822
        %v1839 = vadd.f32 %v1837, 0.0
        %v1840 = vadd.f32 %v1838, 0.0
        %s1841 = sld [smem:[#allocation12 + $0x6c]]
        %v1842 = vstv %s1841
        %v1843 = vmul.f32 %v1842, %v1821
        %v1844 = vmul.f32 %v1842, %v1822
        %v1845 = vadd.f32 %v1843, 0.0
        %v1846 = vadd.f32 %v1844, 0.0
        %1847 = vrot.lane.b32.xlu0 %v1751, 17
        %v1848 = vpop.permute.xlu0 %1847
        %1849 = vrot.lane.b32.xlu0 %v1752, 17
        %v1850 = vpop.permute.xlu0 %1849
        %v1851 = vsel %vm444, %v1848, %v1850
        %v1852 = vsel %vm444, %v1850, %v1848
        %v1853 = vmul.f32 %v1852, %v449
        %v1854 = vmul.f32 %v1851, %v450
        %s1855 = sld [smem:[#allocation12 + $0x9]]
        %v1856 = vstv %s1855
        %v1857 = vmul.f32 %v1856, %v1853
        %v1858 = vmul.f32 %v1856, %v1854
        %v1859 = vadd.f32 %v1827, %v1857
        %v1860 = vadd.f32 %v1828, %v1858
        %s1861 = sld [smem:[#allocation12 + $0x2d]]
        %v1862 = vstv %s1861
        %v1863 = vmul.f32 %v1862, %v1853
        %v1864 = vmul.f32 %v1862, %v1854
        %v1865 = vadd.f32 %v1833, %v1863
        %v1866 = vadd.f32 %v1834, %v1864
        %s1867 = sld [smem:[#allocation12 + $0x51]]
        %v1868 = vstv %s1867
        %v1869 = vmul.f32 %v1868, %v1853
        %v1870 = vmul.f32 %v1868, %v1854
        %v1871 = vadd.f32 %v1839, %v1869
        %v1872 = vadd.f32 %v1840, %v1870
        %s1873 = sld [smem:[#allocation12 + $0x75]]
        %v1874 = vstv %s1873
        %v1875 = vmul.f32 %v1874, %v1853
        %v1876 = vmul.f32 %v1874, %v1854
        %v1877 = vadd.f32 %v1845, %v1875
        %v1878 = vadd.f32 %v1846, %v1876
        %1879 = vrot.lane.b32.xlu0 %v1782, 17
        %v1880 = vpop.permute.xlu0 %1879
        %1881 = vrot.lane.b32.xlu0 %v1783, 17
        %v1882 = vpop.permute.xlu0 %1881
        %v1883 = vsel %vm444, %v1880, %v1882
        %v1884 = vsel %vm444, %v1882, %v1880
        %v1885 = vmul.f32 %v1884, %v449
        %v1886 = vmul.f32 %v1883, %v450
        %s1887 = sld [smem:[#allocation12 + $0x12]]
        %v1888 = vstv %s1887
        %v1889 = vmul.f32 %v1888, %v1885
        %v1890 = vmul.f32 %v1888, %v1886
        %v1891 = vadd.f32 %v1859, %v1889
        %v1892 = vadd.f32 %v1860, %v1890
        %s1893 = sld [smem:[#allocation12 + $0x36]]
        %v1894 = vstv %s1893
        %v1895 = vmul.f32 %v1894, %v1885
        %v1896 = vmul.f32 %v1894, %v1886
        %v1897 = vadd.f32 %v1865, %v1895
        %v1898 = vadd.f32 %v1866, %v1896
        %s1899 = sld [smem:[#allocation12 + $0x5a]]
        %v1900 = vstv %s1899
        %v1901 = vmul.f32 %v1900, %v1885
        %v1902 = vmul.f32 %v1900, %v1886
        %v1903 = vadd.f32 %v1871, %v1901
        %v1904 = vadd.f32 %v1872, %v1902
        %s1905 = sld [smem:[#allocation12 + $0x7e]]
        %v1906 = vstv %s1905
        %v1907 = vmul.f32 %v1906, %v1885
        %v1908 = vmul.f32 %v1906, %v1886
        %v1909 = vadd.f32 %v1877, %v1907
        %v1910 = vadd.f32 %v1878, %v1908
        %1911 = vrot.lane.b32.xlu0 %v1813, 17
        %v1912 = vpop.permute.xlu0 %1911
        %1913 = vrot.lane.b32.xlu0 %v1814, 17
        %v1914 = vpop.permute.xlu0 %1913
        %v1915 = vsel %vm444, %v1912, %v1914
        %v1916 = vsel %vm444, %v1914, %v1912
        %v1917 = vmul.f32 %v1916, %v449
        %v1918 = vmul.f32 %v1915, %v450
        %s1919 = sld [smem:[#allocation12 + $0x1b]]
        %v1920 = vstv %s1919
        %v1921 = vmul.f32 %v1920, %v1917
        %v1922 = vmul.f32 %v1920, %v1918
        %v1923 = vadd.f32 %v1891, %v1921
        %v1924 = vadd.f32 %v1892, %v1922
        %s1925 = sld [smem:[#allocation12 + $0x3f]]
        %v1926 = vstv %s1925
        %v1927 = vmul.f32 %v1926, %v1917
        %v1928 = vmul.f32 %v1926, %v1918
        %v1929 = vadd.f32 %v1897, %v1927
        %v1930 = vadd.f32 %v1898, %v1928
        %s1931 = sld [smem:[#allocation12 + $0x63]]
        %v1932 = vstv %s1931
        %v1933 = vmul.f32 %v1932, %v1917
        %v1934 = vmul.f32 %v1932, %v1918
        %v1935 = vadd.f32 %v1903, %v1933
        %v1936 = vadd.f32 %v1904, %v1934
        %s1937 = sld [smem:[#allocation12 + $0x87]]
        %v1938 = vstv %s1937
        %v1939 = vmul.f32 %v1938, %v1917
        %v1940 = vmul.f32 %v1938, %v1918
        %v1941 = vadd.f32 %v1909, %v1939
        %v1942 = vadd.f32 %v1910, %v1940
        %1943 = vrot.lane.b32.xlu0 %v1720, 16
        %v1944 = vpop.permute.xlu0 %1943
        %1945 = vrot.lane.b32.xlu0 %v1721, 16
        %v1946 = vpop.permute.xlu0 %1945
        %v1947 = vsel %vm590, %v1944, %v1946
        %v1948 = vsel %vm590, %v1946, %v1944
        %v1949 = vmul.f32 %v1948, %v596
        %v1950 = vmul.f32 %v1947, %v597
        %s1951 = sld [smem:[#allocation12 + $0x1]]
        %v1952 = vstv %s1951
        %v1953 = vmul.f32 %v1952, %v1949
        %v1954 = vmul.f32 %v1952, %v1950
        %v1955 = vadd.f32 %v1923, %v1953
        %v1956 = vadd.f32 %v1924, %v1954
        %s1957 = sld [smem:[#allocation12 + $0x25]]
        %v1958 = vstv %s1957
        %v1959 = vmul.f32 %v1958, %v1949
        %v1960 = vmul.f32 %v1958, %v1950
        %v1961 = vadd.f32 %v1929, %v1959
        %v1962 = vadd.f32 %v1930, %v1960
        %s1963 = sld [smem:[#allocation12 + $0x49]]
        %v1964 = vstv %s1963
        %v1965 = vmul.f32 %v1964, %v1949
        %v1966 = vmul.f32 %v1964, %v1950
        %v1967 = vadd.f32 %v1935, %v1965
        %v1968 = vadd.f32 %v1936, %v1966
        %s1969 = sld [smem:[#allocation12 + $0x6d]]
        %v1970 = vstv %s1969
        %v1971 = vmul.f32 %v1970, %v1949
        %v1972 = vmul.f32 %v1970, %v1950
        %v1973 = vadd.f32 %v1941, %v1971
        %v1974 = vadd.f32 %v1942, %v1972
        %1975 = vrot.lane.b32.xlu0 %v1751, 16
        %v1976 = vpop.permute.xlu0 %1975
        %1977 = vrot.lane.b32.xlu0 %v1752, 16
        %v1978 = vpop.permute.xlu0 %1977
        %v1979 = vsel %vm590, %v1976, %v1978
        %v1980 = vsel %vm590, %v1978, %v1976
        %v1981 = vmul.f32 %v1980, %v596
        %v1982 = vmul.f32 %v1979, %v597
        %s1983 = sld [smem:[#allocation12 + $0xa]]
        %v1984 = vstv %s1983
        %v1985 = vmul.f32 %v1984, %v1981
        %v1986 = vmul.f32 %v1984, %v1982
        %v1987 = vadd.f32 %v1955, %v1985
        %v1988 = vadd.f32 %v1956, %v1986
        %s1989 = sld [smem:[#allocation12 + $0x2e]]
        %v1990 = vstv %s1989
        %v1991 = vmul.f32 %v1990, %v1981
        %v1992 = vmul.f32 %v1990, %v1982
        %v1993 = vadd.f32 %v1961, %v1991
        %v1994 = vadd.f32 %v1962, %v1992
        %s1995 = sld [smem:[#allocation12 + $0x52]]
        %v1996 = vstv %s1995
        %v1997 = vmul.f32 %v1996, %v1981
        %v1998 = vmul.f32 %v1996, %v1982
        %v1999 = vadd.f32 %v1967, %v1997
        %v2000 = vadd.f32 %v1968, %v1998
        %s2001 = sld [smem:[#allocation12 + $0x76]]
        %v2002 = vstv %s2001
        %v2003 = vmul.f32 %v2002, %v1981
        %v2004 = vmul.f32 %v2002, %v1982
        %v2005 = vadd.f32 %v1973, %v2003
        %v2006 = vadd.f32 %v1974, %v2004
        %2007 = vrot.lane.b32.xlu0 %v1782, 16
        %v2008 = vpop.permute.xlu0 %2007
        %2009 = vrot.lane.b32.xlu0 %v1783, 16
        %v2010 = vpop.permute.xlu0 %2009
        %v2011 = vsel %vm590, %v2008, %v2010
        %v2012 = vsel %vm590, %v2010, %v2008
        %v2013 = vmul.f32 %v2012, %v596
        %v2014 = vmul.f32 %v2011, %v597
        %s2015 = sld [smem:[#allocation12 + $0x13]]
        %v2016 = vstv %s2015
        %v2017 = vmul.f32 %v2016, %v2013
        %v2018 = vmul.f32 %v2016, %v2014
        %v2019 = vadd.f32 %v1987, %v2017
        %v2020 = vadd.f32 %v1988, %v2018
        %s2021 = sld [smem:[#allocation12 + $0x37]]
        %v2022 = vstv %s2021
        %v2023 = vmul.f32 %v2022, %v2013
        %v2024 = vmul.f32 %v2022, %v2014
        %v2025 = vadd.f32 %v1993, %v2023
        %v2026 = vadd.f32 %v1994, %v2024
        %s2027 = sld [smem:[#allocation12 + $0x5b]]
        %v2028 = vstv %s2027
        %v2029 = vmul.f32 %v2028, %v2013
        %v2030 = vmul.f32 %v2028, %v2014
        %v2031 = vadd.f32 %v1999, %v2029
        %v2032 = vadd.f32 %v2000, %v2030
        %s2033 = sld [smem:[#allocation12 + $0x7f]]
        %v2034 = vstv %s2033
        %v2035 = vmul.f32 %v2034, %v2013
        %v2036 = vmul.f32 %v2034, %v2014
        %v2037 = vadd.f32 %v2005, %v2035
        %v2038 = vadd.f32 %v2006, %v2036
        %2039 = vrot.lane.b32.xlu0 %v1813, 16
        %v2040 = vpop.permute.xlu0 %2039
        %2041 = vrot.lane.b32.xlu0 %v1814, 16
        %v2042 = vpop.permute.xlu0 %2041
        %v2043 = vsel %vm590, %v2040, %v2042
        %v2044 = vsel %vm590, %v2042, %v2040
        %v2045 = vmul.f32 %v2044, %v596
        %v2046 = vmul.f32 %v2043, %v597
        %s2047 = sld [smem:[#allocation12 + $0x1c]]
        %v2048 = vstv %s2047
        %v2049 = vmul.f32 %v2048, %v2045
        %v2050 = vmul.f32 %v2048, %v2046
        %v2051 = vadd.f32 %v2019, %v2049
        %v2052 = vadd.f32 %v2020, %v2050
        %s2053 = sld [smem:[#allocation12 + $0x40]]
        %v2054 = vstv %s2053
        %v2055 = vmul.f32 %v2054, %v2045
        %v2056 = vmul.f32 %v2054, %v2046
        %v2057 = vadd.f32 %v2025, %v2055
        %v2058 = vadd.f32 %v2026, %v2056
        %s2059 = sld [smem:[#allocation12 + $0x64]]
        %v2060 = vstv %s2059
        %v2061 = vmul.f32 %v2060, %v2045
        %v2062 = vmul.f32 %v2060, %v2046
        %v2063 = vadd.f32 %v2031, %v2061
        %v2064 = vadd.f32 %v2032, %v2062
        %s2065 = sld [smem:[#allocation12 + $0x88]]
        %v2066 = vstv %s2065
        %v2067 = vmul.f32 %v2066, %v2045
        %v2068 = vmul.f32 %v2066, %v2046
        %v2069 = vadd.f32 %v2037, %v2067
        %v2070 = vadd.f32 %v2038, %v2068
        %2071 = vrot.lane.b32.xlu0 %v1720, 15
        %v2072 = vpop.permute.xlu0 %2071
        %2073 = vrot.lane.b32.xlu0 %v1721, 15
        %v2074 = vpop.permute.xlu0 %2073
        %v2075 = vsel %vm726, %v2072, %v2074
        %v2076 = vsel %vm726, %v2074, %v2072
        %v2077 = vmul.f32 %v2076, %v732
        %v2078 = vmul.f32 %v2075, %v733
        %s2079 = sld [smem:[#allocation12 + $0x2]]
        %v2080 = vstv %s2079
        %v2081 = vmul.f32 %v2080, %v2077
        %v2082 = vmul.f32 %v2080, %v2078
        %v2083 = vadd.f32 %v2051, %v2081
        %v2084 = vadd.f32 %v2052, %v2082
        %s2085 = sld [smem:[#allocation12 + $0x26]]
        %v2086 = vstv %s2085
        %v2087 = vmul.f32 %v2086, %v2077
        %v2088 = vmul.f32 %v2086, %v2078
        %v2089 = vadd.f32 %v2057, %v2087
        %v2090 = vadd.f32 %v2058, %v2088
        %s2091 = sld [smem:[#allocation12 + $0x4a]]
        %v2092 = vstv %s2091
        %v2093 = vmul.f32 %v2092, %v2077
        %v2094 = vmul.f32 %v2092, %v2078
        %v2095 = vadd.f32 %v2063, %v2093
        %v2096 = vadd.f32 %v2064, %v2094
        %s2097 = sld [smem:[#allocation12 + $0x6e]]
        %v2098 = vstv %s2097
        %v2099 = vmul.f32 %v2098, %v2077
        %v2100 = vmul.f32 %v2098, %v2078
        %v2101 = vadd.f32 %v2069, %v2099
        %v2102 = vadd.f32 %v2070, %v2100
        %2103 = vrot.lane.b32.xlu0 %v1751, 15
        %v2104 = vpop.permute.xlu0 %2103
        %2105 = vrot.lane.b32.xlu0 %v1752, 15
        %v2106 = vpop.permute.xlu0 %2105
        %v2107 = vsel %vm726, %v2104, %v2106
        %v2108 = vsel %vm726, %v2106, %v2104
        %v2109 = vmul.f32 %v2108, %v732
        %v2110 = vmul.f32 %v2107, %v733
        %s2111 = sld [smem:[#allocation12 + $0xb]]
        %v2112 = vstv %s2111
        %v2113 = vmul.f32 %v2112, %v2109
        %v2114 = vmul.f32 %v2112, %v2110
        %v2115 = vadd.f32 %v2083, %v2113
        %v2116 = vadd.f32 %v2084, %v2114
        %s2117 = sld [smem:[#allocation12 + $0x2f]]
        %v2118 = vstv %s2117
        %v2119 = vmul.f32 %v2118, %v2109
        %v2120 = vmul.f32 %v2118, %v2110
        %v2121 = vadd.f32 %v2089, %v2119
        %v2122 = vadd.f32 %v2090, %v2120
        %s2123 = sld [smem:[#allocation12 + $0x53]]
        %v2124 = vstv %s2123
        %v2125 = vmul.f32 %v2124, %v2109
        %v2126 = vmul.f32 %v2124, %v2110
        %v2127 = vadd.f32 %v2095, %v2125
        %v2128 = vadd.f32 %v2096, %v2126
        %s2129 = sld [smem:[#allocation12 + $0x77]]
        %v2130 = vstv %s2129
        %v2131 = vmul.f32 %v2130, %v2109
        %v2132 = vmul.f32 %v2130, %v2110
        %v2133 = vadd.f32 %v2101, %v2131
        %v2134 = vadd.f32 %v2102, %v2132
        %2135 = vrot.lane.b32.xlu0 %v1782, 15
        %v2136 = vpop.permute.xlu0 %2135
        %2137 = vrot.lane.b32.xlu0 %v1783, 15
        %v2138 = vpop.permute.xlu0 %2137
        %v2139 = vsel %vm726, %v2136, %v2138
        %v2140 = vsel %vm726, %v2138, %v2136
        %v2141 = vmul.f32 %v2140, %v732
        %v2142 = vmul.f32 %v2139, %v733
        %s2143 = sld [smem:[#allocation12 + $0x14]]
        %v2144 = vstv %s2143
        %v2145 = vmul.f32 %v2144, %v2141
        %v2146 = vmul.f32 %v2144, %v2142
        %v2147 = vadd.f32 %v2115, %v2145
        %v2148 = vadd.f32 %v2116, %v2146
        %s2149 = sld [smem:[#allocation12 + $0x38]]
        %v2150 = vstv %s2149
        %v2151 = vmul.f32 %v2150, %v2141
        %v2152 = vmul.f32 %v2150, %v2142
        %v2153 = vadd.f32 %v2121, %v2151
        %v2154 = vadd.f32 %v2122, %v2152
        %s2155 = sld [smem:[#allocation12 + $0x5c]]
        %v2156 = vstv %s2155
        %v2157 = vmul.f32 %v2156, %v2141
        %v2158 = vmul.f32 %v2156, %v2142
        %v2159 = vadd.f32 %v2127, %v2157
        %v2160 = vadd.f32 %v2128, %v2158
        %s2161 = sld [smem:[#allocation12 + $0x80]]
        %v2162 = vstv %s2161
        %v2163 = vmul.f32 %v2162, %v2141
        %v2164 = vmul.f32 %v2162, %v2142
        %v2165 = vadd.f32 %v2133, %v2163
        %v2166 = vadd.f32 %v2134, %v2164
        %2167 = vrot.lane.b32.xlu0 %v1813, 15
        %v2168 = vpop.permute.xlu0 %2167
        %2169 = vrot.lane.b32.xlu0 %v1814, 15
        %v2170 = vpop.permute.xlu0 %2169
        %v2171 = vsel %vm726, %v2168, %v2170
        %v2172 = vsel %vm726, %v2170, %v2168
        %v2173 = vmul.f32 %v2172, %v732
        %v2174 = vmul.f32 %v2171, %v733
        %s2175 = sld [smem:[#allocation12 + $0x1d]]
        %v2176 = vstv %s2175
        %v2177 = vmul.f32 %v2176, %v2173
        %v2178 = vmul.f32 %v2176, %v2174
        %v2179 = vadd.f32 %v2147, %v2177
        %v2180 = vadd.f32 %v2148, %v2178
        %s2181 = sld [smem:[#allocation12 + $0x41]]
        %v2182 = vstv %s2181
        %v2183 = vmul.f32 %v2182, %v2173
        %v2184 = vmul.f32 %v2182, %v2174
        %v2185 = vadd.f32 %v2153, %v2183
        %v2186 = vadd.f32 %v2154, %v2184
        %s2187 = sld [smem:[#allocation12 + $0x65]]
        %v2188 = vstv %s2187
        %v2189 = vmul.f32 %v2188, %v2173
        %v2190 = vmul.f32 %v2188, %v2174
        %v2191 = vadd.f32 %v2159, %v2189
        %v2192 = vadd.f32 %v2160, %v2190
        %s2193 = sld [smem:[#allocation12 + $0x89]]
        %v2194 = vstv %s2193
        %v2195 = vmul.f32 %v2194, %v2173
        %v2196 = vmul.f32 %v2194, %v2174
        %v2197 = vadd.f32 %v2165, %v2195
        %v2198 = vadd.f32 %v2166, %v2196
        %2199 = vrot.lane.b32.xlu0 %v1720, 1
        %v2200 = vpop.permute.xlu0 %2199
        %2201 = vrot.lane.b32.xlu0 %v1721, 1
        %v2202 = vpop.permute.xlu0 %2201
        %v2203 = vsel %vm862, %v2200, %v2202
        %v2204 = vsel %vm862, %v2202, %v2200
        %v2205 = vmul.f32 %v2204, %v868
        %v2206 = vmul.f32 %v2203, %v869
        %s2207 = sld [smem:[#allocation12 + $0x3]]
        %v2208 = vstv %s2207
        %v2209 = vmul.f32 %v2208, %v2205
        %v2210 = vmul.f32 %v2208, %v2206
        %v2211 = vadd.f32 %v2179, %v2209
        %v2212 = vadd.f32 %v2180, %v2210
        %s2213 = sld [smem:[#allocation12 + $0x27]]
        %v2214 = vstv %s2213
        %v2215 = vmul.f32 %v2214, %v2205
        %v2216 = vmul.f32 %v2214, %v2206
        %v2217 = vadd.f32 %v2185, %v2215
        %v2218 = vadd.f32 %v2186, %v2216
        %s2219 = sld [smem:[#allocation12 + $0x4b]]
        %v2220 = vstv %s2219
        %v2221 = vmul.f32 %v2220, %v2205
        %v2222 = vmul.f32 %v2220, %v2206
        %v2223 = vadd.f32 %v2191, %v2221
        %v2224 = vadd.f32 %v2192, %v2222
        %s2225 = sld [smem:[#allocation12 + $0x6f]]
        %v2226 = vstv %s2225
        %v2227 = vmul.f32 %v2226, %v2205
        %v2228 = vmul.f32 %v2226, %v2206
        %v2229 = vadd.f32 %v2197, %v2227
        %v2230 = vadd.f32 %v2198, %v2228
        %2231 = vrot.lane.b32.xlu0 %v1751, 1
        %v2232 = vpop.permute.xlu0 %2231
        %2233 = vrot.lane.b32.xlu0 %v1752, 1
        %v2234 = vpop.permute.xlu0 %2233
        %v2235 = vsel %vm862, %v2232, %v2234
        %v2236 = vsel %vm862, %v2234, %v2232
        %v2237 = vmul.f32 %v2236, %v868
        %v2238 = vmul.f32 %v2235, %v869
        %s2239 = sld [smem:[#allocation12 + $0xc]]
        %v2240 = vstv %s2239
        %v2241 = vmul.f32 %v2240, %v2237
        %v2242 = vmul.f32 %v2240, %v2238
        %v2243 = vadd.f32 %v2211, %v2241
        %v2244 = vadd.f32 %v2212, %v2242
        %s2245 = sld [smem:[#allocation12 + $0x30]]
        %v2246 = vstv %s2245
        %v2247 = vmul.f32 %v2246, %v2237
        %v2248 = vmul.f32 %v2246, %v2238
        %v2249 = vadd.f32 %v2217, %v2247
        %v2250 = vadd.f32 %v2218, %v2248
        %s2251 = sld [smem:[#allocation12 + $0x54]]
        %v2252 = vstv %s2251
        %v2253 = vmul.f32 %v2252, %v2237
        %v2254 = vmul.f32 %v2252, %v2238
        %v2255 = vadd.f32 %v2223, %v2253
        %v2256 = vadd.f32 %v2224, %v2254
        %s2257 = sld [smem:[#allocation12 + $0x78]]
        %v2258 = vstv %s2257
        %v2259 = vmul.f32 %v2258, %v2237
        %v2260 = vmul.f32 %v2258, %v2238
        %v2261 = vadd.f32 %v2229, %v2259
        %v2262 = vadd.f32 %v2230, %v2260
        %2263 = vrot.lane.b32.xlu0 %v1782, 1
        %v2264 = vpop.permute.xlu0 %2263
        %2265 = vrot.lane.b32.xlu0 %v1783, 1
        %v2266 = vpop.permute.xlu0 %2265
        %v2267 = vsel %vm862, %v2264, %v2266
        %v2268 = vsel %vm862, %v2266, %v2264
        %v2269 = vmul.f32 %v2268, %v868
        %v2270 = vmul.f32 %v2267, %v869
        %s2271 = sld [smem:[#allocation12 + $0x15]]
        %v2272 = vstv %s2271
        %v2273 = vmul.f32 %v2272, %v2269
        %v2274 = vmul.f32 %v2272, %v2270
        %v2275 = vadd.f32 %v2243, %v2273
        %v2276 = vadd.f32 %v2244, %v2274
        %s2277 = sld [smem:[#allocation12 + $0x39]]
        %v2278 = vstv %s2277
        %v2279 = vmul.f32 %v2278, %v2269
        %v2280 = vmul.f32 %v2278, %v2270
        %v2281 = vadd.f32 %v2249, %v2279
        %v2282 = vadd.f32 %v2250, %v2280
        %s2283 = sld [smem:[#allocation12 + $0x5d]]
        %v2284 = vstv %s2283
        %v2285 = vmul.f32 %v2284, %v2269
        %v2286 = vmul.f32 %v2284, %v2270
        %v2287 = vadd.f32 %v2255, %v2285
        %v2288 = vadd.f32 %v2256, %v2286
        %s2289 = sld [smem:[#allocation12 + $0x81]]
        %v2290 = vstv %s2289
        %v2291 = vmul.f32 %v2290, %v2269
        %v2292 = vmul.f32 %v2290, %v2270
        %v2293 = vadd.f32 %v2261, %v2291
        %v2294 = vadd.f32 %v2262, %v2292
        %2295 = vrot.lane.b32.xlu0 %v1813, 1
        %v2296 = vpop.permute.xlu0 %2295
        %2297 = vrot.lane.b32.xlu0 %v1814, 1
        %v2298 = vpop.permute.xlu0 %2297
        %v2299 = vsel %vm862, %v2296, %v2298
        %v2300 = vsel %vm862, %v2298, %v2296
        %v2301 = vmul.f32 %v2300, %v868
        %v2302 = vmul.f32 %v2299, %v869
        %s2303 = sld [smem:[#allocation12 + $0x1e]]
        %v2304 = vstv %s2303
        %v2305 = vmul.f32 %v2304, %v2301
        %v2306 = vmul.f32 %v2304, %v2302
        %v2307 = vadd.f32 %v2275, %v2305
        %v2308 = vadd.f32 %v2276, %v2306
        %s2309 = sld [smem:[#allocation12 + $0x42]]
        %v2310 = vstv %s2309
        %v2311 = vmul.f32 %v2310, %v2301
        %v2312 = vmul.f32 %v2310, %v2302
        %v2313 = vadd.f32 %v2281, %v2311
        %v2314 = vadd.f32 %v2282, %v2312
        %s2315 = sld [smem:[#allocation12 + $0x66]]
        %v2316 = vstv %s2315
        %v2317 = vmul.f32 %v2316, %v2301
        %v2318 = vmul.f32 %v2316, %v2302
        %v2319 = vadd.f32 %v2287, %v2317
        %v2320 = vadd.f32 %v2288, %v2318
        %s2321 = sld [smem:[#allocation12 + $0x8a]]
        %v2322 = vstv %s2321
        %v2323 = vmul.f32 %v2322, %v2301
        %v2324 = vmul.f32 %v2322, %v2302
        %v2325 = vadd.f32 %v2293, %v2323
        %v2326 = vadd.f32 %v2294, %v2324
        %s2327 = sld [smem:[#allocation12 + $0x4]]
        %v2328 = vstv %s2327
        %v2329 = vmul.f32 %v2328, %v1720
        %v2330 = vmul.f32 %v2328, %v1721
        %v2331 = vadd.f32 %v2307, %v2329
        %v2332 = vadd.f32 %v2308, %v2330
        %s2333 = sld [smem:[#allocation12 + $0x28]]
        %v2334 = vstv %s2333
        %v2335 = vmul.f32 %v2334, %v1720
        %v2336 = vmul.f32 %v2334, %v1721
        %v2337 = vadd.f32 %v2313, %v2335
        %v2338 = vadd.f32 %v2314, %v2336
        %s2339 = sld [smem:[#allocation12 + $0x4c]]
        %v2340 = vstv %s2339
        %v2341 = vmul.f32 %v2340, %v1720
        %v2342 = vmul.f32 %v2340, %v1721
        %v2343 = vadd.f32 %v2319, %v2341
        %v2344 = vadd.f32 %v2320, %v2342
        %s2345 = sld [smem:[#allocation12 + $0x70]]
        %v2346 = vstv %s2345
        %v2347 = vmul.f32 %v2346, %v1720
        %v2348 = vmul.f32 %v2346, %v1721
        %v2349 = vadd.f32 %v2325, %v2347
        %v2350 = vadd.f32 %v2326, %v2348
        %s2351 = sld [smem:[#allocation12 + $0xd]]
        %v2352 = vstv %s2351
        %v2353 = vmul.f32 %v2352, %v1751
        %v2354 = vmul.f32 %v2352, %v1752
        %v2355 = vadd.f32 %v2331, %v2353
        %v2356 = vadd.f32 %v2332, %v2354
        %s2357 = sld [smem:[#allocation12 + $0x31]]
        %v2358 = vstv %s2357
        %v2359 = vmul.f32 %v2358, %v1751
        %v2360 = vmul.f32 %v2358, %v1752
        %v2361 = vadd.f32 %v2337, %v2359
        %v2362 = vadd.f32 %v2338, %v2360
        %s2363 = sld [smem:[#allocation12 + $0x55]]
        %v2364 = vstv %s2363
        %v2365 = vmul.f32 %v2364, %v1751
        %v2366 = vmul.f32 %v2364, %v1752
        %v2367 = vadd.f32 %v2343, %v2365
        %v2368 = vadd.f32 %v2344, %v2366
        %s2369 = sld [smem:[#allocation12 + $0x79]]
        %v2370 = vstv %s2369
        %v2371 = vmul.f32 %v2370, %v1751
        %v2372 = vmul.f32 %v2370, %v1752
        %v2373 = vadd.f32 %v2349, %v2371
        %v2374 = vadd.f32 %v2350, %v2372
        %s2375 = sld [smem:[#allocation12 + $0x16]]
        %v2376 = vstv %s2375
        %v2377 = vmul.f32 %v2376, %v1782
        %v2378 = vmul.f32 %v2376, %v1783
        %v2379 = vadd.f32 %v2355, %v2377
        %v2380 = vadd.f32 %v2356, %v2378
        %s2381 = sld [smem:[#allocation12 + $0x3a]]
        %v2382 = vstv %s2381
        %v2383 = vmul.f32 %v2382, %v1782
        %v2384 = vmul.f32 %v2382, %v1783
        %v2385 = vadd.f32 %v2361, %v2383
        %v2386 = vadd.f32 %v2362, %v2384
        %s2387 = sld [smem:[#allocation12 + $0x5e]]
        %v2388 = vstv %s2387
        %v2389 = vmul.f32 %v2388, %v1782
        %v2390 = vmul.f32 %v2388, %v1783
        %v2391 = vadd.f32 %v2367, %v2389
        %v2392 = vadd.f32 %v2368, %v2390
        %s2393 = sld [smem:[#allocation12 + $0x82]]
        %v2394 = vstv %s2393
        %v2395 = vmul.f32 %v2394, %v1782
        %v2396 = vmul.f32 %v2394, %v1783
        %v2397 = vadd.f32 %v2373, %v2395
        %v2398 = vadd.f32 %v2374, %v2396
        %s2399 = sld [smem:[#allocation12 + $0x1f]]
        %v2400 = vstv %s2399
        %v2401 = vmul.f32 %v2400, %v1813
        %v2402 = vmul.f32 %v2400, %v1814
        %v2403 = vadd.f32 %v2379, %v2401
        %v2404 = vadd.f32 %v2380, %v2402
        %s2405 = sld [smem:[#allocation12 + $0x43]]
        %v2406 = vstv %s2405
        %v2407 = vmul.f32 %v2406, %v1813
        %v2408 = vmul.f32 %v2406, %v1814
        %v2409 = vadd.f32 %v2385, %v2407
        %v2410 = vadd.f32 %v2386, %v2408
        %s2411 = sld [smem:[#allocation12 + $0x67]]
        %v2412 = vstv %s2411
        %v2413 = vmul.f32 %v2412, %v1813
        %v2414 = vmul.f32 %v2412, %v1814
        %v2415 = vadd.f32 %v2391, %v2413
        %v2416 = vadd.f32 %v2392, %v2414
        %s2417 = sld [smem:[#allocation12 + $0x8b]]
        %v2418 = vstv %s2417
        %v2419 = vmul.f32 %v2418, %v1813
        %v2420 = vmul.f32 %v2418, %v1814
        %v2421 = vadd.f32 %v2397, %v2419
        %v2422 = vadd.f32 %v2398, %v2420
        %2423 = vrot.lane.b32.xlu0 %v1720, 127
        %v2424 = vpop.permute.xlu0 %2423
        %2425 = vrot.lane.b32.xlu0 %v1721, 127
        %v2426 = vpop.permute.xlu0 %2425
        %v2427 = vsel %vm1150, %v2424, %v2426
        %v2428 = vsel %vm1150, %v2426, %v2424
        %v2429 = vmul.f32 %v2427, %v1156
        %v2430 = vmul.f32 %v2428, %v1157
        %s2431 = sld [smem:[#allocation12 + $0x5]]
        %v2432 = vstv %s2431
        %v2433 = vmul.f32 %v2432, %v2429
        %v2434 = vmul.f32 %v2432, %v2430
        %v2435 = vadd.f32 %v2403, %v2433
        %v2436 = vadd.f32 %v2404, %v2434
        %s2437 = sld [smem:[#allocation12 + $0x29]]
        %v2438 = vstv %s2437
        %v2439 = vmul.f32 %v2438, %v2429
        %v2440 = vmul.f32 %v2438, %v2430
        %v2441 = vadd.f32 %v2409, %v2439
        %v2442 = vadd.f32 %v2410, %v2440
        %s2443 = sld [smem:[#allocation12 + $0x4d]]
        %v2444 = vstv %s2443
        %v2445 = vmul.f32 %v2444, %v2429
        %v2446 = vmul.f32 %v2444, %v2430
        %v2447 = vadd.f32 %v2415, %v2445
        %v2448 = vadd.f32 %v2416, %v2446
        %s2449 = sld [smem:[#allocation12 + $0x71]]
        %v2450 = vstv %s2449
        %v2451 = vmul.f32 %v2450, %v2429
        %v2452 = vmul.f32 %v2450, %v2430
        %v2453 = vadd.f32 %v2421, %v2451
        %v2454 = vadd.f32 %v2422, %v2452
        %2455 = vrot.lane.b32.xlu0 %v1751, 127
        %v2456 = vpop.permute.xlu0 %2455
        %2457 = vrot.lane.b32.xlu0 %v1752, 127
        %v2458 = vpop.permute.xlu0 %2457
        %v2459 = vsel %vm1150, %v2456, %v2458
        %v2460 = vsel %vm1150, %v2458, %v2456
        %v2461 = vmul.f32 %v2459, %v1156
        %v2462 = vmul.f32 %v2460, %v1157
        %s2463 = sld [smem:[#allocation12 + $0xe]]
        %v2464 = vstv %s2463
        %v2465 = vmul.f32 %v2464, %v2461
        %v2466 = vmul.f32 %v2464, %v2462
        %v2467 = vadd.f32 %v2435, %v2465
        %v2468 = vadd.f32 %v2436, %v2466
        %s2469 = sld [smem:[#allocation12 + $0x32]]
        %v2470 = vstv %s2469
        %v2471 = vmul.f32 %v2470, %v2461
        %v2472 = vmul.f32 %v2470, %v2462
        %v2473 = vadd.f32 %v2441, %v2471
        %v2474 = vadd.f32 %v2442, %v2472
        %s2475 = sld [smem:[#allocation12 + $0x56]]
        %v2476 = vstv %s2475
        %v2477 = vmul.f32 %v2476, %v2461
        %v2478 = vmul.f32 %v2476, %v2462
        %v2479 = vadd.f32 %v2447, %v2477
        %v2480 = vadd.f32 %v2448, %v2478
        %s2481 = sld [smem:[#allocation12 + $0x7a]]
        %v2482 = vstv %s2481
        %v2483 = vmul.f32 %v2482, %v2461
        %v2484 = vmul.f32 %v2482, %v2462
        %v2485 = vadd.f32 %v2453, %v2483
        %v2486 = vadd.f32 %v2454, %v2484
        %2487 = vrot.lane.b32.xlu0 %v1782, 127
        %v2488 = vpop.permute.xlu0 %2487
        %2489 = vrot.lane.b32.xlu0 %v1783, 127
        %v2490 = vpop.permute.xlu0 %2489
        %v2491 = vsel %vm1150, %v2488, %v2490
        %v2492 = vsel %vm1150, %v2490, %v2488
        %v2493 = vmul.f32 %v2491, %v1156
        %v2494 = vmul.f32 %v2492, %v1157
        %s2495 = sld [smem:[#allocation12 + $0x17]]
        %v2496 = vstv %s2495
        %v2497 = vmul.f32 %v2496, %v2493
        %v2498 = vmul.f32 %v2496, %v2494
        %v2499 = vadd.f32 %v2467, %v2497
        %v2500 = vadd.f32 %v2468, %v2498
        %s2501 = sld [smem:[#allocation12 + $0x3b]]
        %v2502 = vstv %s2501
        %v2503 = vmul.f32 %v2502, %v2493
        %v2504 = vmul.f32 %v2502, %v2494
        %v2505 = vadd.f32 %v2473, %v2503
        %v2506 = vadd.f32 %v2474, %v2504
        %s2507 = sld [smem:[#allocation12 + $0x5f]]
        %v2508 = vstv %s2507
        %v2509 = vmul.f32 %v2508, %v2493
        %v2510 = vmul.f32 %v2508, %v2494
        %v2511 = vadd.f32 %v2479, %v2509
        %v2512 = vadd.f32 %v2480, %v2510
        %s2513 = sld [smem:[#allocation12 + $0x83]]
        %v2514 = vstv %s2513
        %v2515 = vmul.f32 %v2514, %v2493
        %v2516 = vmul.f32 %v2514, %v2494
        %v2517 = vadd.f32 %v2485, %v2515
        %v2518 = vadd.f32 %v2486, %v2516
        %2519 = vrot.lane.b32.xlu0 %v1813, 127
        %v2520 = vpop.permute.xlu0 %2519
        %2521 = vrot.lane.b32.xlu0 %v1814, 127
        %v2522 = vpop.permute.xlu0 %2521
        %v2523 = vsel %vm1150, %v2520, %v2522
        %v2524 = vsel %vm1150, %v2522, %v2520
        %v2525 = vmul.f32 %v2523, %v1156
        %v2526 = vmul.f32 %v2524, %v1157
        %s2527 = sld [smem:[#allocation12 + $0x20]]
        %v2528 = vstv %s2527
        %v2529 = vmul.f32 %v2528, %v2525
        %v2530 = vmul.f32 %v2528, %v2526
        %v2531 = vadd.f32 %v2499, %v2529
        %v2532 = vadd.f32 %v2500, %v2530
        %s2533 = sld [smem:[#allocation12 + $0x44]]
        %v2534 = vstv %s2533
        %v2535 = vmul.f32 %v2534, %v2525
        %v2536 = vmul.f32 %v2534, %v2526
        %v2537 = vadd.f32 %v2505, %v2535
        %v2538 = vadd.f32 %v2506, %v2536
        %s2539 = sld [smem:[#allocation12 + $0x68]]
        %v2540 = vstv %s2539
        %v2541 = vmul.f32 %v2540, %v2525
        %v2542 = vmul.f32 %v2540, %v2526
        %v2543 = vadd.f32 %v2511, %v2541
        %v2544 = vadd.f32 %v2512, %v2542
        %s2545 = sld [smem:[#allocation12 + $0x8c]]
        %v2546 = vstv %s2545
        %v2547 = vmul.f32 %v2546, %v2525
        %v2548 = vmul.f32 %v2546, %v2526
        %v2549 = vadd.f32 %v2517, %v2547
        %v2550 = vadd.f32 %v2518, %v2548
        %2551 = vrot.lane.b32.xlu0 %v1720, 113
        %v2552 = vpop.permute.xlu0 %2551
        %2553 = vrot.lane.b32.xlu0 %v1721, 113
        %v2554 = vpop.permute.xlu0 %2553
        %v2555 = vsel %vm1286, %v2552, %v2554
        %v2556 = vsel %vm1286, %v2554, %v2552
        %v2557 = vmul.f32 %v2555, %v1292
        %v2558 = vmul.f32 %v2556, %v1293
        %s2559 = sld [smem:[#allocation12 + $0x6]]
        %v2560 = vstv %s2559
        %v2561 = vmul.f32 %v2560, %v2557
        %v2562 = vmul.f32 %v2560, %v2558
        %v2563 = vadd.f32 %v2531, %v2561
        %v2564 = vadd.f32 %v2532, %v2562
        %s2565 = sld [smem:[#allocation12 + $0x2a]]
        %v2566 = vstv %s2565
        %v2567 = vmul.f32 %v2566, %v2557
        %v2568 = vmul.f32 %v2566, %v2558
        %v2569 = vadd.f32 %v2537, %v2567
        %v2570 = vadd.f32 %v2538, %v2568
        %s2571 = sld [smem:[#allocation12 + $0x4e]]
        %v2572 = vstv %s2571
        %v2573 = vmul.f32 %v2572, %v2557
        %v2574 = vmul.f32 %v2572, %v2558
        %v2575 = vadd.f32 %v2543, %v2573
        %v2576 = vadd.f32 %v2544, %v2574
        %s2577 = sld [smem:[#allocation12 + $0x72]]
        %v2578 = vstv %s2577
        %v2579 = vmul.f32 %v2578, %v2557
        %v2580 = vmul.f32 %v2578, %v2558
        %v2581 = vadd.f32 %v2549, %v2579
        %v2582 = vadd.f32 %v2550, %v2580
        %2583 = vrot.lane.b32.xlu0 %v1751, 113
        %v2584 = vpop.permute.xlu0 %2583
        %2585 = vrot.lane.b32.xlu0 %v1752, 113
        %v2586 = vpop.permute.xlu0 %2585
        %v2587 = vsel %vm1286, %v2584, %v2586
        %v2588 = vsel %vm1286, %v2586, %v2584
        %v2589 = vmul.f32 %v2587, %v1292
        %v2590 = vmul.f32 %v2588, %v1293
        %s2591 = sld [smem:[#allocation12 + $0xf]]
        %v2592 = vstv %s2591
        %v2593 = vmul.f32 %v2592, %v2589
        %v2594 = vmul.f32 %v2592, %v2590
        %v2595 = vadd.f32 %v2563, %v2593
        %v2596 = vadd.f32 %v2564, %v2594
        %s2597 = sld [smem:[#allocation12 + $0x33]]
        %v2598 = vstv %s2597
        %v2599 = vmul.f32 %v2598, %v2589
        %v2600 = vmul.f32 %v2598, %v2590
        %v2601 = vadd.f32 %v2569, %v2599
        %v2602 = vadd.f32 %v2570, %v2600
        %s2603 = sld [smem:[#allocation12 + $0x57]]
        %v2604 = vstv %s2603
        %v2605 = vmul.f32 %v2604, %v2589
        %v2606 = vmul.f32 %v2604, %v2590
        %v2607 = vadd.f32 %v2575, %v2605
        %v2608 = vadd.f32 %v2576, %v2606
        %s2609 = sld [smem:[#allocation12 + $0x7b]]
        %v2610 = vstv %s2609
        %v2611 = vmul.f32 %v2610, %v2589
        %v2612 = vmul.f32 %v2610, %v2590
        %v2613 = vadd.f32 %v2581, %v2611
        %v2614 = vadd.f32 %v2582, %v2612
        %2615 = vrot.lane.b32.xlu0 %v1782, 113
        %v2616 = vpop.permute.xlu0 %2615
        %2617 = vrot.lane.b32.xlu0 %v1783, 113
        %v2618 = vpop.permute.xlu0 %2617
        %v2619 = vsel %vm1286, %v2616, %v2618
        %v2620 = vsel %vm1286, %v2618, %v2616
        %v2621 = vmul.f32 %v2619, %v1292
        %v2622 = vmul.f32 %v2620, %v1293
        %s2623 = sld [smem:[#allocation12 + $0x18]]
        %v2624 = vstv %s2623
        %v2625 = vmul.f32 %v2624, %v2621
        %v2626 = vmul.f32 %v2624, %v2622
        %v2627 = vadd.f32 %v2595, %v2625
        %v2628 = vadd.f32 %v2596, %v2626
        %s2629 = sld [smem:[#allocation12 + $0x3c]]
        %v2630 = vstv %s2629
        %v2631 = vmul.f32 %v2630, %v2621
        %v2632 = vmul.f32 %v2630, %v2622
        %v2633 = vadd.f32 %v2601, %v2631
        %v2634 = vadd.f32 %v2602, %v2632
        %s2635 = sld [smem:[#allocation12 + $0x60]]
        %v2636 = vstv %s2635
        %v2637 = vmul.f32 %v2636, %v2621
        %v2638 = vmul.f32 %v2636, %v2622
        %v2639 = vadd.f32 %v2607, %v2637
        %v2640 = vadd.f32 %v2608, %v2638
        %s2641 = sld [smem:[#allocation12 + $0x84]]
        %v2642 = vstv %s2641
        %v2643 = vmul.f32 %v2642, %v2621
        %v2644 = vmul.f32 %v2642, %v2622
        %v2645 = vadd.f32 %v2613, %v2643
        %v2646 = vadd.f32 %v2614, %v2644
        %2647 = vrot.lane.b32.xlu0 %v1813, 113
        %v2648 = vpop.permute.xlu0 %2647
        %2649 = vrot.lane.b32.xlu0 %v1814, 113
        %v2650 = vpop.permute.xlu0 %2649
        %v2651 = vsel %vm1286, %v2648, %v2650
        %v2652 = vsel %vm1286, %v2650, %v2648
        %v2653 = vmul.f32 %v2651, %v1292
        %v2654 = vmul.f32 %v2652, %v1293
        %s2655 = sld [smem:[#allocation12 + $0x21]]
        %v2656 = vstv %s2655
        %v2657 = vmul.f32 %v2656, %v2653
        %v2658 = vmul.f32 %v2656, %v2654
        %v2659 = vadd.f32 %v2627, %v2657
        %v2660 = vadd.f32 %v2628, %v2658
        %s2661 = sld [smem:[#allocation12 + $0x45]]
        %v2662 = vstv %s2661
        %v2663 = vmul.f32 %v2662, %v2653
        %v2664 = vmul.f32 %v2662, %v2654
        %v2665 = vadd.f32 %v2633, %v2663
        %v2666 = vadd.f32 %v2634, %v2664
        %s2667 = sld [smem:[#allocation12 + $0x69]]
        %v2668 = vstv %s2667
        %v2669 = vmul.f32 %v2668, %v2653
        %v2670 = vmul.f32 %v2668, %v2654
        %v2671 = vadd.f32 %v2639, %v2669
        %v2672 = vadd.f32 %v2640, %v2670
        %s2673 = sld [smem:[#allocation12 + $0x8d]]
        %v2674 = vstv %s2673
        %v2675 = vmul.f32 %v2674, %v2653
        %v2676 = vmul.f32 %v2674, %v2654
        %v2677 = vadd.f32 %v2645, %v2675
        %v2678 = vadd.f32 %v2646, %v2676
        %2679 = vrot.lane.b32.xlu0 %v1720, 112
        %v2680 = vpop.permute.xlu0 %2679
        %2681 = vrot.lane.b32.xlu0 %v1721, 112
        %v2682 = vpop.permute.xlu0 %2681
        %v2683 = vsel %vm1422, %v2680, %v2682
        %v2684 = vsel %vm1422, %v2682, %v2680
        %v2685 = vmul.f32 %v2683, %v1428
        %v2686 = vmul.f32 %v2684, %v1429
        %s2687 = sld [smem:[#allocation12 + $0x7]]
        %v2688 = vstv %s2687
        %v2689 = vmul.f32 %v2688, %v2685
        %v2690 = vmul.f32 %v2688, %v2686
        %v2691 = vadd.f32 %v2659, %v2689
        %v2692 = vadd.f32 %v2660, %v2690
        %s2693 = sld [smem:[#allocation12 + $0x2b]]
        %v2694 = vstv %s2693
        %v2695 = vmul.f32 %v2694, %v2685
        %v2696 = vmul.f32 %v2694, %v2686
        %v2697 = vadd.f32 %v2665, %v2695
        %v2698 = vadd.f32 %v2666, %v2696
        %s2699 = sld [smem:[#allocation12 + $0x4f]]
        %v2700 = vstv %s2699
        %v2701 = vmul.f32 %v2700, %v2685
        %v2702 = vmul.f32 %v2700, %v2686
        %v2703 = vadd.f32 %v2671, %v2701
        %v2704 = vadd.f32 %v2672, %v2702
        %s2705 = sld [smem:[#allocation12 + $0x73]]
        %v2706 = vstv %s2705
        %v2707 = vmul.f32 %v2706, %v2685
        %v2708 = vmul.f32 %v2706, %v2686
        %v2709 = vadd.f32 %v2677, %v2707
        %v2710 = vadd.f32 %v2678, %v2708
        %2711 = vrot.lane.b32.xlu0 %v1751, 112
        %v2712 = vpop.permute.xlu0 %2711
        %2713 = vrot.lane.b32.xlu0 %v1752, 112
        %v2714 = vpop.permute.xlu0 %2713
        %v2715 = vsel %vm1422, %v2712, %v2714
        %v2716 = vsel %vm1422, %v2714, %v2712
        %v2717 = vmul.f32 %v2715, %v1428
        %v2718 = vmul.f32 %v2716, %v1429
        %s2719 = sld [smem:[#allocation12 + $0x10]]
        %v2720 = vstv %s2719
        %v2721 = vmul.f32 %v2720, %v2717
        %v2722 = vmul.f32 %v2720, %v2718
        %v2723 = vadd.f32 %v2691, %v2721
        %v2724 = vadd.f32 %v2692, %v2722
        %s2725 = sld [smem:[#allocation12 + $0x34]]
        %v2726 = vstv %s2725
        %v2727 = vmul.f32 %v2726, %v2717
        %v2728 = vmul.f32 %v2726, %v2718
        %v2729 = vadd.f32 %v2697, %v2727
        %v2730 = vadd.f32 %v2698, %v2728
        %s2731 = sld [smem:[#allocation12 + $0x58]]
        %v2732 = vstv %s2731
        %v2733 = vmul.f32 %v2732, %v2717
        %v2734 = vmul.f32 %v2732, %v2718
        %v2735 = vadd.f32 %v2703, %v2733
        %v2736 = vadd.f32 %v2704, %v2734
        %s2737 = sld [smem:[#allocation12 + $0x7c]]
        %v2738 = vstv %s2737
        %v2739 = vmul.f32 %v2738, %v2717
        %v2740 = vmul.f32 %v2738, %v2718
        %v2741 = vadd.f32 %v2709, %v2739
        %v2742 = vadd.f32 %v2710, %v2740
        %2743 = vrot.lane.b32.xlu0 %v1782, 112
        %v2744 = vpop.permute.xlu0 %2743
        %2745 = vrot.lane.b32.xlu0 %v1783, 112
        %v2746 = vpop.permute.xlu0 %2745
        %v2747 = vsel %vm1422, %v2744, %v2746
        %v2748 = vsel %vm1422, %v2746, %v2744
        %v2749 = vmul.f32 %v2747, %v1428
        %v2750 = vmul.f32 %v2748, %v1429
        %s2751 = sld [smem:[#allocation12 + $0x19]]
        %v2752 = vstv %s2751
        %v2753 = vmul.f32 %v2752, %v2749
        %v2754 = vmul.f32 %v2752, %v2750
        %v2755 = vadd.f32 %v2723, %v2753
        %v2756 = vadd.f32 %v2724, %v2754
        %s2757 = sld [smem:[#allocation12 + $0x3d]]
        %v2758 = vstv %s2757
        %v2759 = vmul.f32 %v2758, %v2749
        %v2760 = vmul.f32 %v2758, %v2750
        %v2761 = vadd.f32 %v2729, %v2759
        %v2762 = vadd.f32 %v2730, %v2760
        %s2763 = sld [smem:[#allocation12 + $0x61]]
        %v2764 = vstv %s2763
        %v2765 = vmul.f32 %v2764, %v2749
        %v2766 = vmul.f32 %v2764, %v2750
        %v2767 = vadd.f32 %v2735, %v2765
        %v2768 = vadd.f32 %v2736, %v2766
        %s2769 = sld [smem:[#allocation12 + $0x85]]
        %v2770 = vstv %s2769
        %v2771 = vmul.f32 %v2770, %v2749
        %v2772 = vmul.f32 %v2770, %v2750
        %v2773 = vadd.f32 %v2741, %v2771
        %v2774 = vadd.f32 %v2742, %v2772
        %2775 = vrot.lane.b32.xlu0 %v1813, 112
        %v2776 = vpop.permute.xlu0 %2775
        %2777 = vrot.lane.b32.xlu0 %v1814, 112
        %v2778 = vpop.permute.xlu0 %2777
        %v2779 = vsel %vm1422, %v2776, %v2778
        %v2780 = vsel %vm1422, %v2778, %v2776
        %v2781 = vmul.f32 %v2779, %v1428
        %v2782 = vmul.f32 %v2780, %v1429
        %s2783 = sld [smem:[#allocation12 + $0x22]]
        %v2784 = vstv %s2783
        %v2785 = vmul.f32 %v2784, %v2781
        %v2786 = vmul.f32 %v2784, %v2782
        %v2787 = vadd.f32 %v2755, %v2785
        %v2788 = vadd.f32 %v2756, %v2786
        %s2789 = sld [smem:[#allocation12 + $0x46]]
        %v2790 = vstv %s2789
        %v2791 = vmul.f32 %v2790, %v2781
        %v2792 = vmul.f32 %v2790, %v2782
        %v2793 = vadd.f32 %v2761, %v2791
        %v2794 = vadd.f32 %v2762, %v2792
        %s2795 = sld [smem:[#allocation12 + $0x6a]]
        %v2796 = vstv %s2795
        %v2797 = vmul.f32 %v2796, %v2781
        %v2798 = vmul.f32 %v2796, %v2782
        %v2799 = vadd.f32 %v2767, %v2797
        %v2800 = vadd.f32 %v2768, %v2798
        %s2801 = sld [smem:[#allocation12 + $0x8e]]
        %v2802 = vstv %s2801
        %v2803 = vmul.f32 %v2802, %v2781
        %v2804 = vmul.f32 %v2802, %v2782
        %v2805 = vadd.f32 %v2773, %v2803
        %v2806 = vadd.f32 %v2774, %v2804
        %2807 = vrot.lane.b32.xlu0 %v1720, 111
        %v2808 = vpop.permute.xlu0 %2807
        %2809 = vrot.lane.b32.xlu0 %v1721, 111
        %v2810 = vpop.permute.xlu0 %2809
        %v2811 = vsel %vm1558, %v2808, %v2810
        %v2812 = vsel %vm1558, %v2810, %v2808
        %v2813 = vmul.f32 %v2811, %v1564
        %v2814 = vmul.f32 %v2812, %v1565
        %s2815 = sld [smem:[#allocation12 + $0x8]]
        %v2816 = vstv %s2815
        %v2817 = vmul.f32 %v2816, %v2813
        %v2818 = vmul.f32 %v2816, %v2814
        %v2819 = vadd.f32 %v2787, %v2817
        %v2820 = vadd.f32 %v2788, %v2818
        %s2821 = sld [smem:[#allocation12 + $0x2c]]
        %v2822 = vstv %s2821
        %v2823 = vmul.f32 %v2822, %v2813
        %v2824 = vmul.f32 %v2822, %v2814
        %v2825 = vadd.f32 %v2793, %v2823
        %v2826 = vadd.f32 %v2794, %v2824
        %s2827 = sld [smem:[#allocation12 + $0x50]]
        %v2828 = vstv %s2827
        %v2829 = vmul.f32 %v2828, %v2813
        %v2830 = vmul.f32 %v2828, %v2814
        %v2831 = vadd.f32 %v2799, %v2829
        %v2832 = vadd.f32 %v2800, %v2830
        %s2833 = sld [smem:[#allocation12 + $0x74]]
        %v2834 = vstv %s2833
        %v2835 = vmul.f32 %v2834, %v2813
        %v2836 = vmul.f32 %v2834, %v2814
        %v2837 = vadd.f32 %v2805, %v2835
        %v2838 = vadd.f32 %v2806, %v2836
        %2839 = vrot.lane.b32.xlu0 %v1751, 111
        %v2840 = vpop.permute.xlu0 %2839
        %2841 = vrot.lane.b32.xlu0 %v1752, 111
        %v2842 = vpop.permute.xlu0 %2841
        %v2843 = vsel %vm1558, %v2840, %v2842
        %v2844 = vsel %vm1558, %v2842, %v2840
        %v2845 = vmul.f32 %v2843, %v1564
        %v2846 = vmul.f32 %v2844, %v1565
        %s2847 = sld [smem:[#allocation12 + $0x11]]
        %v2848 = vstv %s2847
        %v2849 = vmul.f32 %v2848, %v2845
        %v2850 = vmul.f32 %v2848, %v2846
        %v2851 = vadd.f32 %v2819, %v2849
        %v2852 = vadd.f32 %v2820, %v2850
        %s2853 = sld [smem:[#allocation12 + $0x35]]
        %v2854 = vstv %s2853
        %v2855 = vmul.f32 %v2854, %v2845
        %v2856 = vmul.f32 %v2854, %v2846
        %v2857 = vadd.f32 %v2825, %v2855
        %v2858 = vadd.f32 %v2826, %v2856
        %s2859 = sld [smem:[#allocation12 + $0x59]]
        %v2860 = vstv %s2859
        %v2861 = vmul.f32 %v2860, %v2845
        %v2862 = vmul.f32 %v2860, %v2846
        %v2863 = vadd.f32 %v2831, %v2861
        %v2864 = vadd.f32 %v2832, %v2862
        %s2865 = sld [smem:[#allocation12 + $0x7d]]
        %v2866 = vstv %s2865
        %v2867 = vmul.f32 %v2866, %v2845
        %v2868 = vmul.f32 %v2866, %v2846
        %v2869 = vadd.f32 %v2837, %v2867
        %v2870 = vadd.f32 %v2838, %v2868
        %2871 = vrot.lane.b32.xlu0 %v1782, 111
        %v2872 = vpop.permute.xlu0 %2871
        %2873 = vrot.lane.b32.xlu0 %v1783, 111
        %v2874 = vpop.permute.xlu0 %2873
        %v2875 = vsel %vm1558, %v2872, %v2874
        %v2876 = vsel %vm1558, %v2874, %v2872
        %v2877 = vmul.f32 %v2875, %v1564
        %v2878 = vmul.f32 %v2876, %v1565
        %s2879 = sld [smem:[#allocation12 + $0x1a]]
        %v2880 = vstv %s2879
        %v2881 = vmul.f32 %v2880, %v2877
        %v2882 = vmul.f32 %v2880, %v2878
        %v2883 = vadd.f32 %v2851, %v2881
        %v2884 = vadd.f32 %v2852, %v2882
        %s2885 = sld [smem:[#allocation12 + $0x3e]]
        %v2886 = vstv %s2885
        %v2887 = vmul.f32 %v2886, %v2877
        %v2888 = vmul.f32 %v2886, %v2878
        %v2889 = vadd.f32 %v2857, %v2887
        %v2890 = vadd.f32 %v2858, %v2888
        %s2891 = sld [smem:[#allocation12 + $0x62]]
        %v2892 = vstv %s2891
        %v2893 = vmul.f32 %v2892, %v2877
        %v2894 = vmul.f32 %v2892, %v2878
        %v2895 = vadd.f32 %v2863, %v2893
        %v2896 = vadd.f32 %v2864, %v2894
        %s2897 = sld [smem:[#allocation12 + $0x86]]
        %v2898 = vstv %s2897
        %v2899 = vmul.f32 %v2898, %v2877
        %v2900 = vmul.f32 %v2898, %v2878
        %v2901 = vadd.f32 %v2869, %v2899
        %v2902 = vadd.f32 %v2870, %v2900
        %2903 = vrot.lane.b32.xlu0 %v1813, 111
        %v2904 = vpop.permute.xlu0 %2903
        %2905 = vrot.lane.b32.xlu0 %v1814, 111
        %v2906 = vpop.permute.xlu0 %2905
        %v2907 = vsel %vm1558, %v2904, %v2906
        %v2908 = vsel %vm1558, %v2906, %v2904
        %v2909 = vmul.f32 %v2907, %v1564
        %v2910 = vmul.f32 %v2908, %v1565
        %s2911 = sld [smem:[#allocation12 + $0x23]]
        %v2912 = vstv %s2911
        %v2913 = vmul.f32 %v2912, %v2909
        %v2914 = vmul.f32 %v2912, %v2910
        %v2915 = vadd.f32 %v2883, %v2913
        %v2916 = vadd.f32 %v2884, %v2914
        %s2917 = sld [smem:[#allocation12 + $0x47]]
        %v2918 = vstv %s2917
        %v2919 = vmul.f32 %v2918, %v2909
        %v2920 = vmul.f32 %v2918, %v2910
        %v2921 = vadd.f32 %v2889, %v2919
        %v2922 = vadd.f32 %v2890, %v2920
        %s2923 = sld [smem:[#allocation12 + $0x6b]]
        %v2924 = vstv %s2923
        %v2925 = vmul.f32 %v2924, %v2909
        %v2926 = vmul.f32 %v2924, %v2910
        %v2927 = vadd.f32 %v2895, %v2925
        %v2928 = vadd.f32 %v2896, %v2926
        %s2929 = sld [smem:[#allocation12 + $0x8f]]
        %v2930 = vstv %s2929
        %v2931 = vmul.f32 %v2930, %v2909
        %v2932 = vmul.f32 %v2930, %v2910
        %v2933 = vadd.f32 %v2901, %v2931
        %v2934 = vadd.f32 %v2902, %v2932
        %v2935 = vsel %vm1690, %v2915, 0.0
        %v2936 = vsel %vm1690, %v2916, 0.0
        %v2937 = vadd.f32 %v2935, %v2936
        %2938 = vadd.xlane.f32.xlu0 %v2937
        %v2939 = vpop.xlane.xlu0 %2938
        %v2940 = vmul.f32 %v2939, 0.00390625
        %v2941 = vsub.f32 %v2915, %v2940
        %v2942 = vsub.f32 %v2916, %v2940
        %v2943 = vmul.f32 %v2941, %v2941
        %v2944 = vmul.f32 %v2942, %v2942
        %v2945 = vsel %vm1690, %v2943, 0.0
        %v2946 = vsel %vm1690, %v2944, 0.0
        %v2947 = vadd.f32 %v2945, %v2946
        %2948 = vadd.xlane.f32.xlu0 %v2947
        %v2949 = vpop.xlane.xlu0 %2948
        %v2950 = vmul.f32 %v2949, 0.00390625
        %v2951 = vadd.f32 %v2950, 1e-05
        %v2952 = vrsqrt.pop %v2951
        %v2953 = vmul.f32 %v2952, %v2951
        %v2954 = vmul.f32 %v2953, %v2952
        %v2955 = vmul.f32 0.5, %v2954
        %v2956 = vsub.f32 1.5, %v2955
        %v2957 = vmul.f32 %v2952, %v2956
        %vm2958 = vweird.f32 %v2951
        %vm2959 = vweird.f32 %v2952
        %vm2960 = vmor %vm2958, %vm2959
        %v2961 = vsel %vm2960, %v2952, %v2957
        %v2962 = vmul.f32 %v2941, %v2961
        %v2963 = vmul.f32 %v2942, %v2961
        %v2964 = vmax.f32 %v2962, 0.0
        %v2965 = vmax.f32 %v2963, 0.0
        %v2966 = vsel %vm1690, %v2921, 0.0
        %v2967 = vsel %vm1690, %v2922, 0.0
        %v2968 = vadd.f32 %v2966, %v2967
        %2969 = vadd.xlane.f32.xlu0 %v2968
        %v2970 = vpop.xlane.xlu0 %2969
        %v2971 = vmul.f32 %v2970, 0.00390625
        %v2972 = vsub.f32 %v2921, %v2971
        %v2973 = vsub.f32 %v2922, %v2971
        %v2974 = vmul.f32 %v2972, %v2972
        %v2975 = vmul.f32 %v2973, %v2973
        %v2976 = vsel %vm1690, %v2974, 0.0
        %v2977 = vsel %vm1690, %v2975, 0.0
        %v2978 = vadd.f32 %v2976, %v2977
        %2979 = vadd.xlane.f32.xlu0 %v2978
        %v2980 = vpop.xlane.xlu0 %2979
        %v2981 = vmul.f32 %v2980, 0.00390625
        %v2982 = vadd.f32 %v2981, 1e-05
        %v2983 = vrsqrt.pop %v2982
        %v2984 = vmul.f32 %v2983, %v2982
        %v2985 = vmul.f32 %v2984, %v2983
        %v2986 = vmul.f32 0.5, %v2985
        %v2987 = vsub.f32 1.5, %v2986
        %v2988 = vmul.f32 %v2983, %v2987
        %vm2989 = vweird.f32 %v2982
        %vm2990 = vweird.f32 %v2983
        %vm2991 = vmor %vm2989, %vm2990
        %v2992 = vsel %vm2991, %v2983, %v2988
        %v2993 = vmul.f32 %v2972, %v2992
        %v2994 = vmul.f32 %v2973, %v2992
        %v2995 = vmax.f32 %v2993, 0.0
        %v2996 = vmax.f32 %v2994, 0.0
        %v2997 = vsel %vm1690, %v2927, 0.0
        %v2998 = vsel %vm1690, %v2928, 0.0
        %v2999 = vadd.f32 %v2997, %v2998
        %3000 = vadd.xlane.f32.xlu0 %v2999
        %v3001 = vpop.xlane.xlu0 %3000
        %v3002 = vmul.f32 %v3001, 0.00390625
        %v3003 = vsub.f32 %v2927, %v3002
        %v3004 = vsub.f32 %v2928, %v3002
        %v3005 = vmul.f32 %v3003, %v3003
        %v3006 = vmul.f32 %v3004, %v3004
        %v3007 = vsel %vm1690, %v3005, 0.0
        %v3008 = vsel %vm1690, %v3006, 0.0
        %v3009 = vadd.f32 %v3007, %v3008
        %3010 = vadd.xlane.f32.xlu0 %v3009
        %v3011 = vpop.xlane.xlu0 %3010
        %v3012 = vmul.f32 %v3011, 0.00390625
        %v3013 = vadd.f32 %v3012, 1e-05
        %v3014 = vrsqrt.pop %v3013
        %v3015 = vmul.f32 %v3014, %v3013
        %v3016 = vmul.f32 %v3015, %v3014
        %v3017 = vmul.f32 0.5, %v3016
        %v3018 = vsub.f32 1.5, %v3017
        %v3019 = vmul.f32 %v3014, %v3018
        %vm3020 = vweird.f32 %v3013
        %vm3021 = vweird.f32 %v3014
        %vm3022 = vmor %vm3020, %vm3021
        %v3023 = vsel %vm3022, %v3014, %v3019
        %v3024 = vmul.f32 %v3003, %v3023
        %v3025 = vmul.f32 %v3004, %v3023
        %v3026 = vmax.f32 %v3024, 0.0
        %v3027 = vmax.f32 %v3025, 0.0
        %v3028 = vsel %vm1690, %v2933, 0.0
        %v3029 = vsel %vm1690, %v2934, 0.0
        %v3030 = vadd.f32 %v3028, %v3029
        %3031 = vadd.xlane.f32.xlu0 %v3030
        %v3032 = vpop.xlane.xlu0 %3031
        %v3033 = vmul.f32 %v3032, 0.00390625
        %v3034 = vsub.f32 %v2933, %v3033
        %v3035 = vsub.f32 %v2934, %v3033
        %v3036 = vmul.f32 %v3034, %v3034
        %v3037 = vmul.f32 %v3035, %v3035
        %v3038 = vsel %vm1690, %v3036, 0.0
        %v3039 = vsel %vm1690, %v3037, 0.0
        %v3040 = vadd.f32 %v3038, %v3039
        %3041 = vadd.xlane.f32.xlu0 %v3040
        %v3042 = vpop.xlane.xlu0 %3041
        %v3043 = vmul.f32 %v3042, 0.00390625
        %v3044 = vadd.f32 %v3043, 1e-05
        %v3045 = vrsqrt.pop %v3044
        %v3046 = vmul.f32 %v3045, %v3044
        %v3047 = vmul.f32 %v3046, %v3045
        %v3048 = vmul.f32 0.5, %v3047
        %v3049 = vsub.f32 1.5, %v3048
        %v3050 = vmul.f32 %v3045, %v3049
        %vm3051 = vweird.f32 %v3044
        %vm3052 = vweird.f32 %v3045
        %vm3053 = vmor %vm3051, %vm3052
        %v3054 = vsel %vm3053, %v3045, %v3050
        %v3055 = vmul.f32 %v3034, %v3054
        %v3056 = vmul.f32 %v3035, %v3054
        %v3057 = vmax.f32 %v3055, 0.0
        %v3058 = vmax.f32 %v3056, 0.0
        %v3061 = vrot.slane %v2965, 7
        %v3062 = vsel %vm1690, %v2964, %v3061
        %v3064 = vlaneseq
        %vm3065 = vcmp.ge.s32.totalorder %v3064, 0
        %vm3066 = vcmp.lt.s32.totalorder %v3064, 256
        %vm3067 = vmand %vm3065, %vm3066
        %3068 = vst.msk [vmem:[%s368] ss:$4 sm:$0x3] %vm3067, %v3062
        %v3071 = vrot.slane %v2996, 7
        %v3072 = vsel %vm1690, %v2995, %v3071
        %s3074 = scalar_lea.vmem %s368, 1 [#allocation14]
        %3075 = vst.msk [vmem:[%s3074] ss:$4 sm:$0x3] %vm3067, %v3072
        %v3078 = vrot.slane %v3027, 7
        %v3079 = vsel %vm1690, %v3026, %v3078
        %s3081 = scalar_lea.vmem %s368, 2 [#allocation14]
        %3082 = vst.msk [vmem:[%s3081] ss:$4 sm:$0x3] %vm3067, %v3079
        %v3085 = vrot.slane %v3058, 7
        %v3086 = vsel %vm1690, %v3057, %v3085
        %s3088 = scalar_lea.vmem %s368, 3 [#allocation14]
        %3089 = vst.msk [vmem:[%s3088] ss:$4 sm:$0x3] %vm3067, %v3086
        %s3090 = sand.u32 %s173, 1
        %s3091 = scalar_lea.sflag [#allocation4], %s3090
        %s3092 = sand.u32 %s173, 1
        %s3093 = smul.addr %s3092, 8
        %s3094 = scalar_lea.vmem [#allocation14], %s3093
        // Predicated region
        $region69: #{tpu_custom_call.1} parent=43 // pred_check
          %p3095 = pneg %p183
        $region70: #{tpu_custom_call.1} parent=43 // pred_check_branch
          %3097 = sbr.rel (%p3095) target = $region72
        $region71: #{tpu_custom_call.1} parent=43 // pred_region
          %3099 = vsyncadd %s3091, 0
          %s3100 = smul.addr %s29, 2
          %s3101 = smul.addr %s3100, 4
          %s3102 = scalar_lea.hbm %s6, %s3101
          %s3104 = sshll.u32 %s3094, 4
          %s3105 = int_to_ptr.vmem [resolvable:$true] %s3104
          %s3106 = sshll.u32 %s3102, 4
          %s3107 = int_to_ptr.hbm [resolvable:$true] %s3106
          %3109 = dma.vmem_to_hbm [thread:$0]  %s3105, 128, %s3107, %s3091
        $region72: #{tpu_custom_call.1} parent=43 // pred_fallthru
          _
      $region44: #{tpu_custom_call.1} parent=5 // pred_fallthru
        _
      %p3110 = scmp.le.s32.totalorder 2, %s24
      // Predicated region
      $region73: #{tpu_custom_call.1} parent=5 // pred_check
        %p3111 = pneg %p3110
      $region74: #{tpu_custom_call.1} parent=5 // pred_check_branch
        %3113 = sbr.rel (%p3111) target = $region76
      $region75: #{tpu_custom_call.1} parent=5 // pred_region
        %s3114 = ssub.s32 %s24, 2
        // Predicated region
        $region77: #{tpu_custom_call.1} parent=75 // pred_check
          %p3115 = pneg %p189
        $region78: #{tpu_custom_call.1} parent=75 // pred_check_branch
          %3117 = sbr.rel (%p3115) target = $region80
        $region79: #{tpu_custom_call.1} parent=75 // pred_region
          %s3118 = sand.u32 %s174, 1
          %s3119 = scalar_lea.sflag [#allocation4], %s3118
          %s3120 = sand.u32 %s174, 1
          %s3121 = smul.addr %s3120, 8
          %s3122 = scalar_lea.vmem [#allocation14], %s3121
          %3124 = dma.done %s3119, 128
        $region80: #{tpu_custom_call.1} parent=75 // pred_fallthru
          _
      $region76: #{tpu_custom_call.1} parent=5 // pred_fallthru
        _
    $region6: #{tpu_custom_call.1} parent=1 // loop_footer
      %s28 = sadd.s32 1, %s24
    $region7: #{tpu_custom_call.1} parent=1 // loop_footer_branch
      %23 = sbr.rel target = $region3
    $region8: #{tpu_custom_call.1} parent=1 // loop_exit
      _
    %3125 = vsyncpa [#allocation3], 1
    %s3126 = scalar_lea.sflag [#allocation3], 1
    %3127 = vsyncpa %s3126, 1
    %3128 = vsyncpa [#allocation7], 1
    %s3129 = scalar_lea.sflag [#allocation7], 1
    %3130 = vsyncpa %s3129, 1
    %3131 = vsyncpa [#allocation10], 1
    %3132 = vsyncpa [#allocation4], 1
    %s3133 = scalar_lea.sflag [#allocation4], 1
    %3134 = vsyncpa %s3133, 1
    %3135 = vsyncpa [#allocation5], 1
    %s3136 = scalar_lea.sflag [#allocation5], 1
    %3137 = vsyncpa %s3136, 1
    %3138 = vsyncpa [#allocation13], 1

</llo_original>
